<compile_context>
chip_gen: v5e
topology: v5e:2x2
jax: 0.10.0
libtpu: 0.0.40
codegen_flags: <defaults>
</compile_context>

<pallas_src>
import functools

import jax
import jax.numpy as jnp
from jax import lax
from jax.experimental import pallas as pl
from jax.experimental.pallas import tpu as pltpu

BN_EPS = 1e-5
SUBLANE = 8          # sublane-aligned left spatial pad of the activation scratch
_MAX_TILE_M = 128    # rows*Wo per MXU call.  TODO(synk): target 256 on v6e/v7x at WRN scale.


def _choose_row_tile(ho, wo, max_m=_MAX_TILE_M):
    """Largest divisor of Ho whose (rows * Wo) matmul M-dim stays <= max_m."""
    best = 1
    for t in range(1, ho + 1):
        if ho % t == 0 and t * wo <= max_m:
            best = t
    return best


# ----------------------------------------------------------------------------
# Fused kernel (one output-row tile of one image per grid step):
#   a    = relu(x * scale + bias)                        (folded BatchNorm, VPU)
#   out  = conv_ksxks(a, W, stride) * alpha [+ res]      (9 accumulated per-tap matmuls)
#   r    = a                        (identity shortcut)               [optional]
#        | conv_1x1(a, Wsc, stride) (channel-changing shortcut)       [optional]
#   hsum / hsq = per-channel sum / sum-of-squares of the conv output  [optional]
# ----------------------------------------------------------------------------
def _make_fused_kernel(*, ks, stride, alpha, H, W, Cin, Cout, TR,
                       shortcut, emit_stats, has_residual):
    pad = ks // 2
    Wo = (W + 2 * pad - ks) // stride + 1
    R_in = (TR - 1) * stride + ks          # input rows needed by one output-row tile
    lpw = SUBLANE if pad > 0 else 0        # sublane-aligned left pad on the W axis
    Wp = lpw + W + pad
    M = TR * Wo
    # emit_stats sums the raw accumulator; only valid when that equals the conv output.
    assert not emit_stats or (alpha == 1.0 and not has_residual)

    def kernel(*refs):
        it = iter(refs)
        x_ref = next(it)                                    # (1, H, W, Cin)
        s_ref = next(it)                                    # (1, Cin) f32
        b_ref = next(it)                                    # (1, Cin) f32
        w_ref = next(it)                                    # (ks*ks, Cin, Cout) bf16
        wsc_ref = next(it) if shortcut == "conv" else None  # (Cin, Cout) bf16
        res_ref = next(it) if has_residual else None        # (1, TR, Wo, Cout)
        o_ref = next(it)                                    # (1, TR, Wo, Cout)
        r_ref = next(it) if shortcut is not None else None  # (1, TR, Wo, Cout)
        sum_ref = next(it) if emit_stats else None          # (1, 1, 1, Cout)
        sq_ref = next(it) if emit_stats else None           # (1, 1, 1, Cout)
        a_pad = next(it)                                    # VMEM (R_in, Wp, Cin) f32

        rt = pl.program_id(1)
        row0 = rt * (TR * stride) - pad      # first input row of this tile's window

        scale = s_ref[...]                   # (1, Cin) -- broadcasts over (1, W, Cin)
        bias = b_ref[...]

        # --- Stage this tile's zero-padded activation window (BN fold + ReLU on the
        # --- VPU).  Rows outside [0, H) are zeroed via a validity factor, the W halo
        # --- is two 1-wide column stores.  Tiles are fully independent (no cross-step
        # --- scratch state), so both grid axes can be megacore-parallel.
        rows = []
        for r in range(R_in):
            src = row0 + r
            src_c = jnp.clip(src, 0, H - 1)
            valid = jnp.logical_and(src >= 0, src < H).astype(jnp.float32)
            row = x_ref[0, pl.ds(src_c, 1), :, :].astype(jnp.float32)   # (1, W, Cin)
            act = jnp.maximum(row * scale + bias, 0.0)
            rows.append(act * valid)
        win = jnp.concatenate(rows, axis=0)                              # (R_in, W, Cin)
        if pad > 0:
            zcol = jnp.zeros((R_in, pad, Cin), jnp.float32)
            a_pad[:, lpw - pad:lpw, :] = zcol
            a_pad[:, lpw + W:lpw + W + pad, :] = zcol
        a_pad[:, lpw:lpw + W, :] = win

        # --- 9 accumulated per-tap matmuls straight from a_pad (no im2col slab);
        # --- bf16 MXU inputs, f32 accumulation.  stride > 1 uses strided tap loads.
        acc = jnp.zeros((M, Cout), jnp.float32)
        r_acc = None
        for kh in range(ks):
            for kw in range(ks):
                t = kh * ks + kw
                c0 = lpw - pad + kw
                if stride == 1:
                    patch = a_pad[kh:kh + TR, c0:c0 + Wo, :]
                else:
                    # TODO(synk): deinterleave even/odd W columns once per tile (XLU)
                    # instead of strided sublane loads, once vld becomes the limiter.
                    patch = a_pad[pl.ds(kh, TR, stride=stride),
                                  pl.ds(c0, Wo, stride=stride), :]
                p2 = patch.reshape(M, Cin).astype(jnp.bfloat16)
                acc = acc + jnp.dot(p2, w_ref[t],
                                    preferred_element_type=jnp.float32)
                if shortcut == "conv" and kh == pad and kw == pad:
                    # Centre tap is exactly a[::stride, ::stride, :] -> fused 1x1 conv.
                    r_acc = jnp.dot(p2, wsc_ref[...],
                                    preferred_element_type=jnp.float32)

        if emit_stats:
            # Per-(image, row-tile) channel moments of h for the BN2 fold; reduced to
            # global moments in plain JAX over only O(N*RT*Cout) values.
            sum_ref[...] = jnp.sum(acc, axis=0).reshape(1, 1, 1, Cout)
            sq_ref[...] = jnp.sum(acc * acc, axis=0).reshape(1, 1, 1, Cout)

        out = acc.reshape(TR, Wo, Cout)
        if alpha != 1.0:
            out = out * alpha
        if has_residual:
            out = out + res_ref[0].astype(jnp.float32)
        o_ref[0] = out.astype(o_ref.dtype)

        if shortcut == "conv":
            r_ref[0] = r_acc.reshape(TR, Wo, Cout).astype(r_ref.dtype)
        elif shortcut == "identity":
            # stride == 1, Cin == Cout: the shortcut is the activation itself.
            r_ref[0] = a_pad[pad:pad + TR, lpw:lpw + W, :].astype(r_ref.dtype)

    return kernel, R_in, Wp


def _fused_conv_call(x, scale, bias, w_taps, *, ks, stride, alpha=1.0,
                     shortcut=None, wsc=None, residual=None, emit_stats=False,
                     out_dtype=jnp.float32, shortcut_dtype=jnp.bfloat16):
    """Fused BN+ReLU+conv (+shortcut / residual / stats), true (unpadded) shapes.

    x:      (N, H, W, Cin)          f32 or bf16
    scale:  (1, Cin) f32            folded-BN scale
    bias:   (1, Cin) f32            folded-BN bias
    w_taps: (ks*ks, Cin, Cout) bf16 per-tap weights (actual Cin -> no zero K on MXU)
    """
    N, H, W, Cin = x.shape
    Cout = w_taps.shape[-1]
    pad = ks // 2
    Ho = (H + 2 * pad - ks) // stride + 1
    Wo = (W + 2 * pad - ks) // stride + 1
    TR = _choose_row_tile(Ho, Wo)
    RT = Ho // TR

    kernel, R_in, Wp = _make_fused_kernel(
        ks=ks, stride=stride, alpha=alpha, H=H, W=W, Cin=Cin, Cout=Cout, TR=TR,
        shortcut=shortcut, emit_stats=emit_stats, has_residual=residual is not None)

    in_arrays = [x, scale.astype(jnp.float32), bias.astype(jnp.float32), w_taps]
    in_specs = [
        # Full image per grid step; the block index does not depend on the row-tile
        # axis, so it is DMA'd once per image, not once per tile.
        pl.BlockSpec((1, H, W, Cin), lambda n, rt: (n, 0, 0, 0)),
        pl.BlockSpec((1, Cin), lambda n, rt: (0, 0)),
        pl.BlockSpec((1, Cin), lambda n, rt: (0, 0)),
        # TODO(synk): at WRN widths single-buffer these constant-index (never
        # re-fetched) weight blocks to halve their VMEM footprint.
        pl.BlockSpec((ks * ks, Cin, Cout), lambda n, rt: (0, 0, 0)),
    ]
    if shortcut == "conv":
        in_arrays.append(wsc)
        in_specs.append(pl.BlockSpec((Cin, Cout), lambda n, rt: (0, 0)))
    if residual is not None:
        in_arrays.append(residual)
        in_specs.append(pl.BlockSpec((1, TR, Wo, Cout), lambda n, rt: (n, rt, 0, 0)))

    out_shapes = [jax.ShapeDtypeStruct((N, Ho, Wo, Cout), out_dtype)]
    out_specs = [pl.BlockSpec((1, TR, Wo, Cout), lambda n, rt: (n, rt, 0, 0))]
    if shortcut is not None:
        out_shapes.append(jax.ShapeDtypeStruct((N, Ho, Wo, Cout), shortcut_dtype))
        out_specs.append(pl.BlockSpec((1, TR, Wo, Cout), lambda n, rt: (n, rt, 0, 0)))
    if emit_stats:
        out_shapes += [jax.ShapeDtypeStruct((N, RT, 1, Cout), jnp.float32)] * 2
        out_specs += [pl.BlockSpec((1, 1, 1, Cout), lambda n, rt: (n, rt, 0, 0))] * 2

    return pl.pallas_call(
        kernel,
        out_shape=tuple(out_shapes),
        grid_spec=pltpu.PrefetchScalarGridSpec(
            num_scalar_prefetch=0,
            grid=(N, RT),
            in_specs=in_specs,
            out_specs=tuple(out_specs),
            scratch_shapes=[
                pltpu.VMEM((R_in, Wp, Cin), jnp.float32),   # padded activation window
            ],
        ),
        compiler_params=pltpu.CompilerParams(
            dimension_semantics=("parallel", "parallel"),
            vmem_limit_bytes=32 * 1024 * 1024),
    )(*in_arrays)


# ----------------------------------------------------------------------------
# ResidualBlock forward (wrapper / glue)
# ----------------------------------------------------------------------------
def _pack_conv_weight(w_hwio):
    """(ks, ks, Cin, Cout) -> (ks*ks, Cin, Cout) bf16 per-tap weights (true Cin/Cout)."""
    ksz, _, cin, cout = w_hwio.shape
    return (w_hwio.astype(jnp.float32)
            .reshape(ksz * ksz, cin, cout)
            .astype(jnp.bfloat16))


def residual_block_forward(x_nchw, params, stride):
    x = jnp.transpose(x_nchw, (0, 2, 3, 1)).astype(jnp.float32)      # NCHW -> NHWC
    N, H, W, Cin = x.shape
    Cout = params["w_conv1"].shape[-1]

    if Cin == Cout and stride != 1:
        # The original module keeps the identity shortcut whenever channels match;
        # with stride != 1 that is shape-incompatible (PyTorch's x.add_(r) would
        # fail), so surface it instead of silently mismatching.
        raise ValueError("ResidualBlock with inp_cha == op_cha requires stride == 1")

    # BN1 fold (training-mode batch statistics, biased variance) in plain JAX.
    # TODO(synk): when chaining blocks, emit these moments from the previous block's
    # conv2 kernel (the same emit_stats path used below) to skip this HBM read of x.
    mean1 = jnp.mean(x, axis=(0, 1, 2))
    var1 = jnp.mean(jnp.square(x - mean1[None, None, None, :]), axis=(0, 1, 2))
    s1 = params["bn1_gamma"] / jnp.sqrt(var1 + BN_EPS)
    scale1 = s1.reshape(1, Cin)
    bias1 = (params["bn1_beta"] - mean1 * s1).reshape(1, Cin)

    w1 = _pack_conv_weight(params["w_conv1"])

    # conv1 (+ fused shortcut + fused per-channel moments of h for the BN2 fold).
    # h and r are emitted as bf16 at the true channel count -> minimal HBM traffic.
    if Cin != Cout:
        wsc = _pack_conv_weight(params["w_shortcut"]).reshape(Cin, Cout)
        h, r, hsum, hsq = _fused_conv_call(
            x, scale1, bias1, w1, ks=3, stride=stride,
            shortcut="conv", wsc=wsc, emit_stats=True, out_dtype=jnp.bfloat16)
    else:
        h, r, hsum, hsq = _fused_conv_call(
            x, scale1, bias1, w1, ks=3, stride=stride,
            shortcut="identity", emit_stats=True, out_dtype=jnp.bfloat16)
    Ho, Wo = h.shape[1], h.shape[2]

    # BN2 fold from the in-kernel moments (no extra HBM passes over h).  Single-pass
    # E[h^2]-E[h]^2 variance (clamped at 0), computed from f32 accumulator sums.
    count = N * Ho * Wo
    mean2 = jnp.sum(hsum, axis=(0, 1, 2)) / count
    var2 = jnp.maximum(jnp.sum(hsq, axis=(0, 1, 2)) / count - mean2 * mean2, 0.0)
    s2 = params["bn2_gamma"] / jnp.sqrt(var2 + BN_EPS)
    scale2 = s2.reshape(1, Cout)
    bias2 = (params["bn2_beta"] - mean2 * s2).reshape(1, Cout)

    w2 = _pack_conv_weight(params["w_conv2"])

    # out = conv2(relu(bn2(h))) * 0.2 + r   (single fused kernel call, f32 output)
    (out,) = _fused_conv_call(h, scale2, bias2, w2, ks=3, stride=1,
                              alpha=0.2, residual=r, out_dtype=jnp.float32)

    # TODO(synk): BatchNorm running-stats buffer updates (training side effect) are
    # not modeled.
    return jnp.transpose(out, (0, 3, 1, 2))                          # NHWC -> NCHW


def make_residual_block_params(key, inp_cha, op_cha):
    ks = jax.random.split(key, 7)

    def conv_w(k, cin, cout, ksz):
        bound = 1.0 / float(cin * ksz * ksz) ** 0.5   # PyTorch Conv2d default init bound
        return jax.random.uniform(k, (ksz, ksz, cin, cout), jnp.float32, -bound, bound)

    params = {
        "bn1_gamma": 1.0 + 0.1 * jax.random.normal(ks[0], (inp_cha,), jnp.float32),
        "bn1_beta": 0.1 * jax.random.normal(ks[1], (inp_cha,), jnp.float32),
        "w_conv1": conv_w(ks[2], inp_cha, op_cha, 3),
        "bn2_gamma": 1.0 + 0.1 * jax.random.normal(ks[3], (op_cha,), jnp.float32),
        "bn2_beta": 0.1 * jax.random.normal(ks[4], (op_cha,), jnp.float32),
        "w_conv2": conv_w(ks[5], op_cha, op_cha, 3),
    }
    if inp_cha != op_cha:
        params["w_shortcut"] = conv_w(ks[6], inp_cha, op_cha, 1)
    return params


# ----------------------------------------------------------------------------
# Pure-JAX reference (for correctness check)
# ----------------------------------------------------------------------------
def reference_forward(x_nchw, params, stride):
    x = x_nchw.astype(jnp.float32)

    def bn_relu(t, gamma, beta):
        mean = jnp.mean(t, axis=(0, 2, 3), keepdims=True)
        var = jnp.mean(jnp.square(t - mean), axis=(0, 2, 3), keepdims=True)
        tn = (t - mean) / jnp.sqrt(var + BN_EPS)
        return jnp.maximum(tn * gamma[None, :, None, None] + beta[None, :, None, None], 0.0)

    def conv(t, w_hwio, s, ksz):
        w = jnp.transpose(w_hwio, (3, 2, 0, 1))  # HWIO -> OIHW
        return lax.conv_general_dilated(
            t, w, window_strides=(s, s), padding=[(ksz // 2, ksz // 2)] * 2,
            dimension_numbers=("NCHW", "OIHW", "NCHW"),
            precision=lax.Precision.HIGHEST)

    a = bn_relu(x, params["bn1_gamma"], params["bn1_beta"])
    r = conv(a, params["w_shortcut"], stride, 1) if "w_shortcut" in params else a
    h = conv(a, params["w_conv1"], stride, 3)
    b = bn_relu(h, params["bn2_gamma"], params["bn2_beta"])
    return conv(b, params["w_conv2"], 1, 3) * 0.2 + r


if __name__ == "__main__":
    key = jax.random.PRNGKey(0)
    k1, k2, k3, k4 = jax.random.split(key, 4)

    # Case 1: channel-expanding strided block (1x1 conv shortcut path, strided taps).
    N, C_IN, C_OUT, H, W, STRIDE = 2, 4, 8, 16, 16, 2
    x = jax.random.normal(k1, (N, C_IN, H, W), jnp.float32)
    params = make_residual_block_params(k2, C_IN, C_OUT)
    fwd = jax.jit(functools.partial(residual_block_forward, stride=STRIDE))
    out = jax.block_until_ready(fwd(x, params))
    ref = reference_forward(x, params, STRIDE)
    assert out.shape == (N, C_OUT, H // STRIDE, W // STRIDE), out.shape
    err1 = float(jnp.max(jnp.abs(out - ref)))
    if not jnp.allclose(out, ref, atol=5e-2, rtol=5e-2):
        raise AssertionError(f"strided block mismatch vs reference, max abs err={err1}")

    # Case 2: same-channel stride-1 block (identity shortcut path, 2 row tiles).
    x2 = jax.random.normal(k3, (2, 8, 16, 16), jnp.float32)
    params2 = make_residual_block_params(k4, 8, 8)
    fwd2 = jax.jit(functools.partial(residual_block_forward, stride=1))
    out2 = jax.block_until_ready(fwd2(x2, params2))
    ref2 = reference_forward(x2, params2, 1)
    assert out2.shape == (2, 8, 16, 16), out2.shape
    err2 = float(jnp.max(jnp.abs(out2 - ref2)))
    if not jnp.allclose(out2, ref2, atol=5e-2, rtol=5e-2):
        raise AssertionError(f"identity block mismatch vs reference, max abs err={err2}")

    print("KERNEL_OK")
</pallas_src>

<mosaic_0001>
module attributes {stable_mosaic.version = 11 : i64} {
  func.func @kernel(%arg0: i32, %arg1: i32, %arg2: memref<1x8x8x8xbf16, #tpu.memory_space<vmem>>, %arg3: memref<1x8xf32, #tpu.memory_space<vmem>>, %arg4: memref<1x8xf32, #tpu.memory_space<vmem>>, %arg5: memref<9x8x8xbf16, #tpu.memory_space<vmem>>, %arg6: memref<1x8x8x8xbf16, #tpu.memory_space<vmem>>, %arg7: memref<1x8x8x8xf32, #tpu.memory_space<vmem>>, %arg8: memref<10x17x8xf32, #tpu.memory_space<vmem>>) attributes {dimension_semantics = [#tpu.dimension_semantics<parallel>, #tpu.dimension_semantics<parallel>], iteration_bounds = array<i64: 2, 1>, scalar_prefetch = 0 : i64, scratch_operands = 1 : i64, tpu.core_type = #tpu.core_type<tc>, window_params = [{transform_indices = @transform_0, window_bounds = array<i64: 1, 8, 8, 8>}, {pipeline_mode = #tpu.pipeline_mode<synchronous>, transform_indices = @transform_1, window_bounds = array<i64: 1, 8>}, {pipeline_mode = #tpu.pipeline_mode<synchronous>, transform_indices = @transform_2, window_bounds = array<i64: 1, 8>}, {pipeline_mode = #tpu.pipeline_mode<synchronous>, transform_indices = @transform_3, window_bounds = array<i64: 9, 8, 8>}, {transform_indices = @transform_4, window_bounds = array<i64: 1, 8, 8, 8>}, {transform_indices = @transform_5, window_bounds = array<i64: 1, 8, 8, 8>}]} {
    %c8_i32 = arith.constant 8 : i32
    %0 = arith.muli %arg1, %c8_i32 : i32
    %c1_i32 = arith.constant 1 : i32
    %1 = arith.subi %0, %c1_i32 : i32
    %c0 = arith.constant 0 : index
    %c0_0 = arith.constant 0 : index
    %2 = vector.load %arg3[%c0, %c0_0] : memref<1x8xf32, #tpu.memory_space<vmem>>, vector<1x8xf32>
    %c0_1 = arith.constant 0 : index
    %c0_2 = arith.constant 0 : index
    %3 = vector.load %arg4[%c0_1, %c0_2] : memref<1x8xf32, #tpu.memory_space<vmem>>, vector<1x8xf32>
    %c0_i32 = arith.constant 0 : i32
    %4 = arith.addi %1, %c0_i32 : i32
    %c0_i32_3 = arith.constant 0 : i32
    %c7_i32 = arith.constant 7 : i32
    %5 = arith.maxsi %c0_i32_3, %4 : i32
    %6 = arith.minsi %c7_i32, %5 : i32
    %c0_i32_4 = arith.constant 0 : i32
    %7 = arith.cmpi sge, %4, %c0_i32_4 : i32
    %c8_i32_5 = arith.constant 8 : i32
    %8 = arith.cmpi slt, %4, %c8_i32_5 : i32
    %9 = arith.andi %7, %8 : i1
    %10 = arith.extui %9 : i1 to i32
    %11 = arith.sitofp %10 : i32 to f32
    %c0_6 = arith.constant 0 : index
    %12 = arith.index_cast %6 : i32 to index
    %c0_7 = arith.constant 0 : index
    %c0_8 = arith.constant 0 : index
    %13 = vector.load %arg2[%c0_6, %12, %c0_7, %c0_8] : memref<1x8x8x8xbf16, #tpu.memory_space<vmem>>, vector<1x1x8x8xbf16>
    %14 = vector.shape_cast %13 : vector<1x1x8x8xbf16> to vector<1x8x8xbf16>
    %15 = arith.extf %14 : vector<1x8x8xbf16> to vector<1x8x8xf32>
    %16 = vector.shape_cast %2 : vector<1x8xf32> to vector<1x1x8xf32>
    %17 = vector.broadcast %16 : vector<1x1x8xf32> to vector<1x8x8xf32>
    %18 = arith.mulf %15, %17 : vector<1x8x8xf32>
    %19 = vector.shape_cast %3 : vector<1x8xf32> to vector<1x1x8xf32>
    %20 = vector.broadcast %19 : vector<1x1x8xf32> to vector<1x8x8xf32>
    %21 = arith.addf %18, %20 : vector<1x8x8xf32>
    %cst = arith.constant 0.000000e+00 : f32
    %22 = vector.broadcast %cst : f32 to vector<1x8x8xf32>
    %23 = arith.maximumf %21, %22 : vector<1x8x8xf32>
    %24 = vector.broadcast %11 : f32 to vector<1x8x8xf32>
    %25 = arith.mulf %23, %24 : vector<1x8x8xf32>
    %c1_i32_9 = arith.constant 1 : i32
    %26 = arith.addi %1, %c1_i32_9 : i32
    %c0_i32_10 = arith.constant 0 : i32
    %c7_i32_11 = arith.constant 7 : i32
    %27 = arith.maxsi %c0_i32_10, %26 : i32
    %28 = arith.minsi %c7_i32_11, %27 : i32
    %c0_i32_12 = arith.constant 0 : i32
    %29 = arith.cmpi sge, %26, %c0_i32_12 : i32
    %c8_i32_13 = arith.constant 8 : i32
    %30 = arith.cmpi slt, %26, %c8_i32_13 : i32
    %31 = arith.andi %29, %30 : i1
    %32 = arith.extui %31 : i1 to i32
    %33 = arith.sitofp %32 : i32 to f32
    %c0_14 = arith.constant 0 : index
    %34 = arith.index_cast %28 : i32 to index
    %c0_15 = arith.constant 0 : index
    %c0_16 = arith.constant 0 : index
    %35 = vector.load %arg2[%c0_14, %34, %c0_15, %c0_16] : memref<1x8x8x8xbf16, #tpu.memory_space<vmem>>, vector<1x1x8x8xbf16>
    %36 = vector.shape_cast %35 : vector<1x1x8x8xbf16> to vector<1x8x8xbf16>
    %37 = arith.extf %36 : vector<1x8x8xbf16> to vector<1x8x8xf32>
    %38 = vector.shape_cast %2 : vector<1x8xf32> to vector<1x1x8xf32>
    %39 = vector.broadcast %38 : vector<1x1x8xf32> to vector<1x8x8xf32>
    %40 = arith.mulf %37, %39 : vector<1x8x8xf32>
    %41 = vector.shape_cast %3 : vector<1x8xf32> to vector<1x1x8xf32>
    %42 = vector.broadcast %41 : vector<1x1x8xf32> to vector<1x8x8xf32>
    %43 = arith.addf %40, %42 : vector<1x8x8xf32>
    %cst_17 = arith.constant 0.000000e+00 : f32
    %44 = vector.broadcast %cst_17 : f32 to vector<1x8x8xf32>
    %45 = arith.maximumf %43, %44 : vector<1x8x8xf32>
    %46 = vector.broadcast %33 : f32 to vector<1x8x8xf32>
    %47 = arith.mulf %45, %46 : vector<1x8x8xf32>
    %c2_i32 = arith.constant 2 : i32
    %48 = arith.addi %1, %c2_i32 : i32
    %c0_i32_18 = arith.constant 0 : i32
    %c7_i32_19 = arith.constant 7 : i32
    %49 = arith.maxsi %c0_i32_18, %48 : i32
    %50 = arith.minsi %c7_i32_19, %49 : i32
    %c0_i32_20 = arith.constant 0 : i32
    %51 = arith.cmpi sge, %48, %c0_i32_20 : i32
    %c8_i32_21 = arith.constant 8 : i32
    %52 = arith.cmpi slt, %48, %c8_i32_21 : i32
    %53 = arith.andi %51, %52 : i1
    %54 = arith.extui %53 : i1 to i32
    %55 = arith.sitofp %54 : i32 to f32
    %c0_22 = arith.constant 0 : index
    %56 = arith.index_cast %50 : i32 to index
    %c0_23 = arith.constant 0 : index
    %c0_24 = arith.constant 0 : index
    %57 = vector.load %arg2[%c0_22, %56, %c0_23, %c0_24] : memref<1x8x8x8xbf16, #tpu.memory_space<vmem>>, vector<1x1x8x8xbf16>
    %58 = vector.shape_cast %57 : vector<1x1x8x8xbf16> to vector<1x8x8xbf16>
    %59 = arith.extf %58 : vector<1x8x8xbf16> to vector<1x8x8xf32>
    %60 = vector.shape_cast %2 : vector<1x8xf32> to vector<1x1x8xf32>
    %61 = vector.broadcast %60 : vector<1x1x8xf32> to vector<1x8x8xf32>
    %62 = arith.mulf %59, %61 : vector<1x8x8xf32>
    %63 = vector.shape_cast %3 : vector<1x8xf32> to vector<1x1x8xf32>
    %64 = vector.broadcast %63 : vector<1x1x8xf32> to vector<1x8x8xf32>
    %65 = arith.addf %62, %64 : vector<1x8x8xf32>
    %cst_25 = arith.constant 0.000000e+00 : f32
    %66 = vector.broadcast %cst_25 : f32 to vector<1x8x8xf32>
    %67 = arith.maximumf %65, %66 : vector<1x8x8xf32>
    %68 = vector.broadcast %55 : f32 to vector<1x8x8xf32>
    %69 = arith.mulf %67, %68 : vector<1x8x8xf32>
    %c3_i32 = arith.constant 3 : i32
    %70 = arith.addi %1, %c3_i32 : i32
    %c0_i32_26 = arith.constant 0 : i32
    %c7_i32_27 = arith.constant 7 : i32
    %71 = arith.maxsi %c0_i32_26, %70 : i32
    %72 = arith.minsi %c7_i32_27, %71 : i32
    %c0_i32_28 = arith.constant 0 : i32
    %73 = arith.cmpi sge, %70, %c0_i32_28 : i32
    %c8_i32_29 = arith.constant 8 : i32
    %74 = arith.cmpi slt, %70, %c8_i32_29 : i32
    %75 = arith.andi %73, %74 : i1
    %76 = arith.extui %75 : i1 to i32
    %77 = arith.sitofp %76 : i32 to f32
    %c0_30 = arith.constant 0 : index
    %78 = arith.index_cast %72 : i32 to index
    %c0_31 = arith.constant 0 : index
    %c0_32 = arith.constant 0 : index
    %79 = vector.load %arg2[%c0_30, %78, %c0_31, %c0_32] : memref<1x8x8x8xbf16, #tpu.memory_space<vmem>>, vector<1x1x8x8xbf16>
    %80 = vector.shape_cast %79 : vector<1x1x8x8xbf16> to vector<1x8x8xbf16>
    %81 = arith.extf %80 : vector<1x8x8xbf16> to vector<1x8x8xf32>
    %82 = vector.shape_cast %2 : vector<1x8xf32> to vector<1x1x8xf32>
    %83 = vector.broadcast %82 : vector<1x1x8xf32> to vector<1x8x8xf32>
    %84 = arith.mulf %81, %83 : vector<1x8x8xf32>
    %85 = vector.shape_cast %3 : vector<1x8xf32> to vector<1x1x8xf32>
    %86 = vector.broadcast %85 : vector<1x1x8xf32> to vector<1x8x8xf32>
    %87 = arith.addf %84, %86 : vector<1x8x8xf32>
    %cst_33 = arith.constant 0.000000e+00 : f32
    %88 = vector.broadcast %cst_33 : f32 to vector<1x8x8xf32>
    %89 = arith.maximumf %87, %88 : vector<1x8x8xf32>
    %90 = vector.broadcast %77 : f32 to vector<1x8x8xf32>
    %91 = arith.mulf %89, %90 : vector<1x8x8xf32>
    %c4_i32 = arith.constant 4 : i32
    %92 = arith.addi %1, %c4_i32 : i32
    %c0_i32_34 = arith.constant 0 : i32
    %c7_i32_35 = arith.constant 7 : i32
    %93 = arith.maxsi %c0_i32_34, %92 : i32
    %94 = arith.minsi %c7_i32_35, %93 : i32
    %c0_i32_36 = arith.constant 0 : i32
    %95 = arith.cmpi sge, %92, %c0_i32_36 : i32
    %c8_i32_37 = arith.constant 8 : i32
    %96 = arith.cmpi slt, %92, %c8_i32_37 : i32
    %97 = arith.andi %95, %96 : i1
    %98 = arith.extui %97 : i1 to i32
    %99 = arith.sitofp %98 : i32 to f32
    %c0_38 = arith.constant 0 : index
    %100 = arith.index_cast %94 : i32 to index
    %c0_39 = arith.constant 0 : index
    %c0_40 = arith.constant 0 : index
    %101 = vector.load %arg2[%c0_38, %100, %c0_39, %c0_40] : memref<1x8x8x8xbf16, #tpu.memory_space<vmem>>, vector<1x1x8x8xbf16>
    %102 = vector.shape_cast %101 : vector<1x1x8x8xbf16> to vector<1x8x8xbf16>
    %103 = arith.extf %102 : vector<1x8x8xbf16> to vector<1x8x8xf32>
    %104 = vector.shape_cast %2 : vector<1x8xf32> to vector<1x1x8xf32>
    %105 = vector.broadcast %104 : vector<1x1x8xf32> to vector<1x8x8xf32>
    %106 = arith.mulf %103, %105 : vector<1x8x8xf32>
    %107 = vector.shape_cast %3 : vector<1x8xf32> to vector<1x1x8xf32>
    %108 = vector.broadcast %107 : vector<1x1x8xf32> to vector<1x8x8xf32>
    %109 = arith.addf %106, %108 : vector<1x8x8xf32>
    %cst_41 = arith.constant 0.000000e+00 : f32
    %110 = vector.broadcast %cst_41 : f32 to vector<1x8x8xf32>
    %111 = arith.maximumf %109, %110 : vector<1x8x8xf32>
    %112 = vector.broadcast %99 : f32 to vector<1x8x8xf32>
    %113 = arith.mulf %111, %112 : vector<1x8x8xf32>
    %c5_i32 = arith.constant 5 : i32
    %114 = arith.addi %1, %c5_i32 : i32
    %c0_i32_42 = arith.constant 0 : i32
    %c7_i32_43 = arith.constant 7 : i32
    %115 = arith.maxsi %c0_i32_42, %114 : i32
    %116 = arith.minsi %c7_i32_43, %115 : i32
    %c0_i32_44 = arith.constant 0 : i32
    %117 = arith.cmpi sge, %114, %c0_i32_44 : i32
    %c8_i32_45 = arith.constant 8 : i32
    %118 = arith.cmpi slt, %114, %c8_i32_45 : i32
    %119 = arith.andi %117, %118 : i1
    %120 = arith.extui %119 : i1 to i32
    %121 = arith.sitofp %120 : i32 to f32
    %c0_46 = arith.constant 0 : index
    %122 = arith.index_cast %116 : i32 to index
    %c0_47 = arith.constant 0 : index
    %c0_48 = arith.constant 0 : index
    %123 = vector.load %arg2[%c0_46, %122, %c0_47, %c0_48] : memref<1x8x8x8xbf16, #tpu.memory_space<vmem>>, vector<1x1x8x8xbf16>
    %124 = vector.shape_cast %123 : vector<1x1x8x8xbf16> to vector<1x8x8xbf16>
    %125 = arith.extf %124 : vector<1x8x8xbf16> to vector<1x8x8xf32>
    %126 = vector.shape_cast %2 : vector<1x8xf32> to vector<1x1x8xf32>
    %127 = vector.broadcast %126 : vector<1x1x8xf32> to vector<1x8x8xf32>
    %128 = arith.mulf %125, %127 : vector<1x8x8xf32>
    %129 = vector.shape_cast %3 : vector<1x8xf32> to vector<1x1x8xf32>
    %130 = vector.broadcast %129 : vector<1x1x8xf32> to vector<1x8x8xf32>
    %131 = arith.addf %128, %130 : vector<1x8x8xf32>
    %cst_49 = arith.constant 0.000000e+00 : f32
    %132 = vector.broadcast %cst_49 : f32 to vector<1x8x8xf32>
    %133 = arith.maximumf %131, %132 : vector<1x8x8xf32>
    %134 = vector.broadcast %121 : f32 to vector<1x8x8xf32>
    %135 = arith.mulf %133, %134 : vector<1x8x8xf32>
    %c6_i32 = arith.constant 6 : i32
    %136 = arith.addi %1, %c6_i32 : i32
    %c0_i32_50 = arith.constant 0 : i32
    %c7_i32_51 = arith.constant 7 : i32
    %137 = arith.maxsi %c0_i32_50, %136 : i32
    %138 = arith.minsi %c7_i32_51, %137 : i32
    %c0_i32_52 = arith.constant 0 : i32
    %139 = arith.cmpi sge, %136, %c0_i32_52 : i32
    %c8_i32_53 = arith.constant 8 : i32
    %140 = arith.cmpi slt, %136, %c8_i32_53 : i32
    %141 = arith.andi %139, %140 : i1
    %142 = arith.extui %141 : i1 to i32
    %143 = arith.sitofp %142 : i32 to f32
    %c0_54 = arith.constant 0 : index
    %144 = arith.index_cast %138 : i32 to index
    %c0_55 = arith.constant 0 : index
    %c0_56 = arith.constant 0 : index
    %145 = vector.load %arg2[%c0_54, %144, %c0_55, %c0_56] : memref<1x8x8x8xbf16, #tpu.memory_space<vmem>>, vector<1x1x8x8xbf16>
    %146 = vector.shape_cast %145 : vector<1x1x8x8xbf16> to vector<1x8x8xbf16>
    %147 = arith.extf %146 : vector<1x8x8xbf16> to vector<1x8x8xf32>
    %148 = vector.shape_cast %2 : vector<1x8xf32> to vector<1x1x8xf32>
    %149 = vector.broadcast %148 : vector<1x1x8xf32> to vector<1x8x8xf32>
    %150 = arith.mulf %147, %149 : vector<1x8x8xf32>
    %151 = vector.shape_cast %3 : vector<1x8xf32> to vector<1x1x8xf32>
    %152 = vector.broadcast %151 : vector<1x1x8xf32> to vector<1x8x8xf32>
    %153 = arith.addf %150, %152 : vector<1x8x8xf32>
    %cst_57 = arith.constant 0.000000e+00 : f32
    %154 = vector.broadcast %cst_57 : f32 to vector<1x8x8xf32>
    %155 = arith.maximumf %153, %154 : vector<1x8x8xf32>
    %156 = vector.broadcast %143 : f32 to vector<1x8x8xf32>
    %157 = arith.mulf %155, %156 : vector<1x8x8xf32>
    %c7_i32_58 = arith.constant 7 : i32
    %158 = arith.addi %1, %c7_i32_58 : i32
    %c0_i32_59 = arith.constant 0 : i32
    %c7_i32_60 = arith.constant 7 : i32
    %159 = arith.maxsi %c0_i32_59, %158 : i32
    %160 = arith.minsi %c7_i32_60, %159 : i32
    %c0_i32_61 = arith.constant 0 : i32
    %161 = arith.cmpi sge, %158, %c0_i32_61 : i32
    %c8_i32_62 = arith.constant 8 : i32
    %162 = arith.cmpi slt, %158, %c8_i32_62 : i32
    %163 = arith.andi %161, %162 : i1
    %164 = arith.extui %163 : i1 to i32
    %165 = arith.sitofp %164 : i32 to f32
    %c0_63 = arith.constant 0 : index
    %166 = arith.index_cast %160 : i32 to index
    %c0_64 = arith.constant 0 : index
    %c0_65 = arith.constant 0 : index
    %167 = vector.load %arg2[%c0_63, %166, %c0_64, %c0_65] : memref<1x8x8x8xbf16, #tpu.memory_space<vmem>>, vector<1x1x8x8xbf16>
    %168 = vector.shape_cast %167 : vector<1x1x8x8xbf16> to vector<1x8x8xbf16>
    %169 = arith.extf %168 : vector<1x8x8xbf16> to vector<1x8x8xf32>
    %170 = vector.shape_cast %2 : vector<1x8xf32> to vector<1x1x8xf32>
    %171 = vector.broadcast %170 : vector<1x1x8xf32> to vector<1x8x8xf32>
    %172 = arith.mulf %169, %171 : vector<1x8x8xf32>
    %173 = vector.shape_cast %3 : vector<1x8xf32> to vector<1x1x8xf32>
    %174 = vector.broadcast %173 : vector<1x1x8xf32> to vector<1x8x8xf32>
    %175 = arith.addf %172, %174 : vector<1x8x8xf32>
    %cst_66 = arith.constant 0.000000e+00 : f32
    %176 = vector.broadcast %cst_66 : f32 to vector<1x8x8xf32>
    %177 = arith.maximumf %175, %176 : vector<1x8x8xf32>
    %178 = vector.broadcast %165 : f32 to vector<1x8x8xf32>
    %179 = arith.mulf %177, %178 : vector<1x8x8xf32>
    %c8_i32_67 = arith.constant 8 : i32
    %180 = arith.addi %1, %c8_i32_67 : i32
    %c0_i32_68 = arith.constant 0 : i32
    %c7_i32_69 = arith.constant 7 : i32
    %181 = arith.maxsi %c0_i32_68, %180 : i32
    %182 = arith.minsi %c7_i32_69, %181 : i32
    %c0_i32_70 = arith.constant 0 : i32
    %183 = arith.cmpi sge, %180, %c0_i32_70 : i32
    %c8_i32_71 = arith.constant 8 : i32
    %184 = arith.cmpi slt, %180, %c8_i32_71 : i32
    %185 = arith.andi %183, %184 : i1
    %186 = arith.extui %185 : i1 to i32
    %187 = arith.sitofp %186 : i32 to f32
    %c0_72 = arith.constant 0 : index
    %188 = arith.index_cast %182 : i32 to index
    %c0_73 = arith.constant 0 : index
    %c0_74 = arith.constant 0 : index
    %189 = vector.load %arg2[%c0_72, %188, %c0_73, %c0_74] : memref<1x8x8x8xbf16, #tpu.memory_space<vmem>>, vector<1x1x8x8xbf16>
    %190 = vector.shape_cast %189 : vector<1x1x8x8xbf16> to vector<1x8x8xbf16>
    %191 = arith.extf %190 : vector<1x8x8xbf16> to vector<1x8x8xf32>
    %192 = vector.shape_cast %2 : vector<1x8xf32> to vector<1x1x8xf32>
    %193 = vector.broadcast %192 : vector<1x1x8xf32> to vector<1x8x8xf32>
    %194 = arith.mulf %191, %193 : vector<1x8x8xf32>
    %195 = vector.shape_cast %3 : vector<1x8xf32> to vector<1x1x8xf32>
    %196 = vector.broadcast %195 : vector<1x1x8xf32> to vector<1x8x8xf32>
    %197 = arith.addf %194, %196 : vector<1x8x8xf32>
    %cst_75 = arith.constant 0.000000e+00 : f32
    %198 = vector.broadcast %cst_75 : f32 to vector<1x8x8xf32>
    %199 = arith.maximumf %197, %198 : vector<1x8x8xf32>
    %200 = vector.broadcast %187 : f32 to vector<1x8x8xf32>
    %201 = arith.mulf %199, %200 : vector<1x8x8xf32>
    %c9_i32 = arith.constant 9 : i32
    %202 = arith.addi %1, %c9_i32 : i32
    %c0_i32_76 = arith.constant 0 : i32
    %c7_i32_77 = arith.constant 7 : i32
    %203 = arith.maxsi %c0_i32_76, %202 : i32
    %204 = arith.minsi %c7_i32_77, %203 : i32
    %c0_i32_78 = arith.constant 0 : i32
    %205 = arith.cmpi sge, %202, %c0_i32_78 : i32
    %c8_i32_79 = arith.constant 8 : i32
    %206 = arith.cmpi slt, %202, %c8_i32_79 : i32
    %207 = arith.andi %205, %206 : i1
    %208 = arith.extui %207 : i1 to i32
    %209 = arith.sitofp %208 : i32 to f32
    %c0_80 = arith.constant 0 : index
    %210 = arith.index_cast %204 : i32 to index
    %c0_81 = arith.constant 0 : index
    %c0_82 = arith.constant 0 : index
    %211 = vector.load %arg2[%c0_80, %210, %c0_81, %c0_82] : memref<1x8x8x8xbf16, #tpu.memory_space<vmem>>, vector<1x1x8x8xbf16>
    %212 = vector.shape_cast %211 : vector<1x1x8x8xbf16> to vector<1x8x8xbf16>
    %213 = arith.extf %212 : vector<1x8x8xbf16> to vector<1x8x8xf32>
    %214 = vector.shape_cast %2 : vector<1x8xf32> to vector<1x1x8xf32>
    %215 = vector.broadcast %214 : vector<1x1x8xf32> to vector<1x8x8xf32>
    %216 = arith.mulf %213, %215 : vector<1x8x8xf32>
    %217 = vector.shape_cast %3 : vector<1x8xf32> to vector<1x1x8xf32>
    %218 = vector.broadcast %217 : vector<1x1x8xf32> to vector<1x8x8xf32>
    %219 = arith.addf %216, %218 : vector<1x8x8xf32>
    %cst_83 = arith.constant 0.000000e+00 : f32
    %220 = vector.broadcast %cst_83 : f32 to vector<1x8x8xf32>
    %221 = arith.maximumf %219, %220 : vector<1x8x8xf32>
    %222 = vector.broadcast %209 : f32 to vector<1x8x8xf32>
    %223 = arith.mulf %221, %222 : vector<1x8x8xf32>
    %224 = tpu.concatenate %25, %47, %69, %91, %113, %135, %157, %179, %201, %223 in 0 : vector<1x8x8xf32>, vector<1x8x8xf32>, vector<1x8x8xf32>, vector<1x8x8xf32>, vector<1x8x8xf32>, vector<1x8x8xf32>, vector<1x8x8xf32>, vector<1x8x8xf32>, vector<1x8x8xf32>, vector<1x8x8xf32> -> vector<10x8x8xf32>
    %cst_84 = arith.constant 0.000000e+00 : f32
    %225 = vector.broadcast %cst_84 : f32 to vector<10x1x8xf32>
    %c0_85 = arith.constant 0 : index
    %c7 = arith.constant 7 : index
    %c0_86 = arith.constant 0 : index
    %226 = vector.load %arg8[%c0_85, %c7, %c0_86] : memref<10x17x8xf32, #tpu.memory_space<vmem>>, vector<10x1x8xf32>
    tpu.vector_store %arg8[%c0_85, %c7, %c0_86], %225 {strides = array<i32>} : memref<10x17x8xf32, #tpu.memory_space<vmem>>, vector<10x1x8xf32>,
    %c0_87 = arith.constant 0 : index
    %c16 = arith.constant 16 : index
    %c0_88 = arith.constant 0 : index
    %227 = vector.load %arg8[%c0_87, %c16, %c0_88] : memref<10x17x8xf32, #tpu.memory_space<vmem>>, vector<10x1x8xf32>
    tpu.vector_store %arg8[%c0_87, %c16, %c0_88], %225 {strides = array<i32>} : memref<10x17x8xf32, #tpu.memory_space<vmem>>, vector<10x1x8xf32>,
    %c0_89 = arith.constant 0 : index
    %c8 = arith.constant 8 : index
    %c0_90 = arith.constant 0 : index
    %228 = vector.load %arg8[%c0_89, %c8, %c0_90] : memref<10x17x8xf32, #tpu.memory_space<vmem>>, vector<10x8x8xf32>
    tpu.vector_store %arg8[%c0_89, %c8, %c0_90], %224 {strides = array<i32>} : memref<10x17x8xf32, #tpu.memory_space<vmem>>, vector<10x8x8xf32>,
    %cst_91 = arith.constant 0.000000e+00 : f32
    %229 = vector.broadcast %cst_91 : f32 to vector<64x8xf32>
    %c0_92 = arith.constant 0 : index
    %c7_93 = arith.constant 7 : index
    %c0_94 = arith.constant 0 : index
    %230 = vector.load %arg8[%c0_92, %c7_93, %c0_94] : memref<10x17x8xf32, #tpu.memory_space<vmem>>, vector<8x8x8xf32>
    %231 = vector.shape_cast %230 : vector<8x8x8xf32> to vector<64x8xf32>
    %232 = arith.truncf %231 : vector<64x8xf32> to vector<64x8xbf16>
    %c0_95 = arith.constant 0 : index
    %c0_96 = arith.constant 0 : index
    %c0_97 = arith.constant 0 : index
    %233 = vector.load %arg5[%c0_95, %c0_96, %c0_97] : memref<9x8x8xbf16, #tpu.memory_space<vmem>>, vector<1x8x8xbf16>
    %234 = vector.shape_cast %233 : vector<1x8x8xbf16> to vector<8x8xbf16>
    %cst_98 = arith.constant dense<0.000000e+00> : vector<64x8xf32>
    %235 = tpu.matmul %232, %234, %cst_98 {dimension_numbers = #tpu.dot_dimension_numbers<[1], [0], [0], [1], [0, 0, 1, 1], [], []>} : vector<64x8xbf16>, vector<8x8xbf16>, vector<64x8xf32> -> vector<64x8xf32>
    %236 = arith.addf %229, %235 : vector<64x8xf32>
    %c0_99 = arith.constant 0 : index
    %c8_100 = arith.constant 8 : index
    %c0_101 = arith.constant 0 : index
    %237 = vector.load %arg8[%c0_99, %c8_100, %c0_101] : memref<10x17x8xf32, #tpu.memory_space<vmem>>, vector<8x8x8xf32>
    %238 = vector.shape_cast %237 : vector<8x8x8xf32> to vector<64x8xf32>
    %239 = arith.truncf %238 : vector<64x8xf32> to vector<64x8xbf16>
    %c1 = arith.constant 1 : index
    %c0_102 = arith.constant 0 : index
    %c0_103 = arith.constant 0 : index
    %240 = vector.load %arg5[%c1, %c0_102, %c0_103] : memref<9x8x8xbf16, #tpu.memory_space<vmem>>, vector<1x8x8xbf16>
    %241 = vector.shape_cast %240 : vector<1x8x8xbf16> to vector<8x8xbf16>
    %cst_104 = arith.constant dense<0.000000e+00> : vector<64x8xf32>
    %242 = tpu.matmul %239, %241, %cst_104 {dimension_numbers = #tpu.dot_dimension_numbers<[1], [0], [0], [1], [0, 0, 1, 1], [], []>} : vector<64x8xbf16>, vector<8x8xbf16>, vector<64x8xf32> -> vector<64x8xf32>
    %243 = arith.addf %236, %242 : vector<64x8xf32>
    %c0_105 = arith.constant 0 : index
    %c9 = arith.constant 9 : index
    %c0_106 = arith.constant 0 : index
    %244 = vector.load %arg8[%c0_105, %c9, %c0_106] : memref<10x17x8xf32, #tpu.memory_space<vmem>>, vector<8x8x8xf32>
    %245 = vector.shape_cast %244 : vector<8x8x8xf32> to vector<64x8xf32>
    %246 = arith.truncf %245 : vector<64x8xf32> to vector<64x8xbf16>
    %c2 = arith.constant 2 : index
    %c0_107 = arith.constant 0 : index
    %c0_108 = arith.constant 0 : index
    %247 = vector.load %arg5[%c2, %c0_107, %c0_108] : memref<9x8x8xbf16, #tpu.memory_space<vmem>>, vector<1x8x8xbf16>
    %248 = vector.shape_cast %247 : vector<1x8x8xbf16> to vector<8x8xbf16>
    %cst_109 = arith.constant dense<0.000000e+00> : vector<64x8xf32>
    %249 = tpu.matmul %246, %248, %cst_109 {dimension_numbers = #tpu.dot_dimension_numbers<[1], [0], [0], [1], [0, 0, 1, 1], [], []>} : vector<64x8xbf16>, vector<8x8xbf16>, vector<64x8xf32> -> vector<64x8xf32>
    %250 = arith.addf %243, %249 : vector<64x8xf32>
    %c1_110 = arith.constant 1 : index
    %c7_111 = arith.constant 7 : index
    %c0_112 = arith.constant 0 : index
    %251 = vector.load %arg8[%c1_110, %c7_111, %c0_112] : memref<10x17x8xf32, #tpu.memory_space<vmem>>, vector<8x8x8xf32>
    %252 = vector.shape_cast %251 : vector<8x8x8xf32> to vector<64x8xf32>
    %253 = arith.truncf %252 : vector<64x8xf32> to vector<64x8xbf16>
    %c3 = arith.constant 3 : index
    %c0_113 = arith.constant 0 : index
    %c0_114 = arith.constant 0 : index
    %254 = vector.load %arg5[%c3, %c0_113, %c0_114] : memref<9x8x8xbf16, #tpu.memory_space<vmem>>, vector<1x8x8xbf16>
    %255 = vector.shape_cast %254 : vector<1x8x8xbf16> to vector<8x8xbf16>
    %cst_115 = arith.constant dense<0.000000e+00> : vector<64x8xf32>
    %256 = tpu.matmul %253, %255, %cst_115 {dimension_numbers = #tpu.dot_dimension_numbers<[1], [0], [0], [1], [0, 0, 1, 1], [], []>} : vector<64x8xbf16>, vector<8x8xbf16>, vector<64x8xf32> -> vector<64x8xf32>
    %257 = arith.addf %250, %256 : vector<64x8xf32>
    %c1_116 = arith.constant 1 : index
    %c8_117 = arith.constant 8 : index
    %c0_118 = arith.constant 0 : index
    %258 = vector.load %arg8[%c1_116, %c8_117, %c0_118] : memref<10x17x8xf32, #tpu.memory_space<vmem>>, vector<8x8x8xf32>
    %259 = vector.shape_cast %258 : vector<8x8x8xf32> to vector<64x8xf32>
    %260 = arith.truncf %259 : vector<64x8xf32> to vector<64x8xbf16>
    %c4 = arith.constant 4 : index
    %c0_119 = arith.constant 0 : index
    %c0_120 = arith.constant 0 : index
    %261 = vector.load %arg5[%c4, %c0_119, %c0_120] : memref<9x8x8xbf16, #tpu.memory_space<vmem>>, vector<1x8x8xbf16>
    %262 = vector.shape_cast %261 : vector<1x8x8xbf16> to vector<8x8xbf16>
    %cst_121 = arith.constant dense<0.000000e+00> : vector<64x8xf32>
    %263 = tpu.matmul %260, %262, %cst_121 {dimension_numbers = #tpu.dot_dimension_numbers<[1], [0], [0], [1], [0, 0, 1, 1], [], []>} : vector<64x8xbf16>, vector<8x8xbf16>, vector<64x8xf32> -> vector<64x8xf32>
    %264 = arith.addf %257, %263 : vector<64x8xf32>
    %c1_122 = arith.constant 1 : index
    %c9_123 = arith.constant 9 : index
    %c0_124 = arith.constant 0 : index
    %265 = vector.load %arg8[%c1_122, %c9_123, %c0_124] : memref<10x17x8xf32, #tpu.memory_space<vmem>>, vector<8x8x8xf32>
    %266 = vector.shape_cast %265 : vector<8x8x8xf32> to vector<64x8xf32>
    %267 = arith.truncf %266 : vector<64x8xf32> to vector<64x8xbf16>
    %c5 = arith.constant 5 : index
    %c0_125 = arith.constant 0 : index
    %c0_126 = arith.constant 0 : index
    %268 = vector.load %arg5[%c5, %c0_125, %c0_126] : memref<9x8x8xbf16, #tpu.memory_space<vmem>>, vector<1x8x8xbf16>
    %269 = vector.shape_cast %268 : vector<1x8x8xbf16> to vector<8x8xbf16>
    %cst_127 = arith.constant dense<0.000000e+00> : vector<64x8xf32>
    %270 = tpu.matmul %267, %269, %cst_127 {dimension_numbers = #tpu.dot_dimension_numbers<[1], [0], [0], [1], [0, 0, 1, 1], [], []>} : vector<64x8xbf16>, vector<8x8xbf16>, vector<64x8xf32> -> vector<64x8xf32>
    %271 = arith.addf %264, %270 : vector<64x8xf32>
    %c2_128 = arith.constant 2 : index
    %c7_129 = arith.constant 7 : index
    %c0_130 = arith.constant 0 : index
    %272 = vector.load %arg8[%c2_128, %c7_129, %c0_130] : memref<10x17x8xf32, #tpu.memory_space<vmem>>, vector<8x8x8xf32>
    %273 = vector.shape_cast %272 : vector<8x8x8xf32> to vector<64x8xf32>
    %274 = arith.truncf %273 : vector<64x8xf32> to vector<64x8xbf16>
    %c6 = arith.constant 6 : index
    %c0_131 = arith.constant 0 : index
    %c0_132 = arith.constant 0 : index
    %275 = vector.load %arg5[%c6, %c0_131, %c0_132] : memref<9x8x8xbf16, #tpu.memory_space<vmem>>, vector<1x8x8xbf16>
    %276 = vector.shape_cast %275 : vector<1x8x8xbf16> to vector<8x8xbf16>
    %cst_133 = arith.constant dense<0.000000e+00> : vector<64x8xf32>
    %277 = tpu.matmul %274, %276, %cst_133 {dimension_numbers = #tpu.dot_dimension_numbers<[1], [0], [0], [1], [0, 0, 1, 1], [], []>} : vector<64x8xbf16>, vector<8x8xbf16>, vector<64x8xf32> -> vector<64x8xf32>
    %278 = arith.addf %271, %277 : vector<64x8xf32>
    %c2_134 = arith.constant 2 : index
    %c8_135 = arith.constant 8 : index
    %c0_136 = arith.constant 0 : index
    %279 = vector.load %arg8[%c2_134, %c8_135, %c0_136] : memref<10x17x8xf32, #tpu.memory_space<vmem>>, vector<8x8x8xf32>
    %280 = vector.shape_cast %279 : vector<8x8x8xf32> to vector<64x8xf32>
    %281 = arith.truncf %280 : vector<64x8xf32> to vector<64x8xbf16>
    %c7_137 = arith.constant 7 : index
    %c0_138 = arith.constant 0 : index
    %c0_139 = arith.constant 0 : index
    %282 = vector.load %arg5[%c7_137, %c0_138, %c0_139] : memref<9x8x8xbf16, #tpu.memory_space<vmem>>, vector<1x8x8xbf16>
    %283 = vector.shape_cast %282 : vector<1x8x8xbf16> to vector<8x8xbf16>
    %cst_140 = arith.constant dense<0.000000e+00> : vector<64x8xf32>
    %284 = tpu.matmul %281, %283, %cst_140 {dimension_numbers = #tpu.dot_dimension_numbers<[1], [0], [0], [1], [0, 0, 1, 1], [], []>} : vector<64x8xbf16>, vector<8x8xbf16>, vector<64x8xf32> -> vector<64x8xf32>
    %285 = arith.addf %278, %284 : vector<64x8xf32>
    %c2_141 = arith.constant 2 : index
    %c9_142 = arith.constant 9 : index
    %c0_143 = arith.constant 0 : index
    %286 = vector.load %arg8[%c2_141, %c9_142, %c0_143] : memref<10x17x8xf32, #tpu.memory_space<vmem>>, vector<8x8x8xf32>
    %287 = vector.shape_cast %286 : vector<8x8x8xf32> to vector<64x8xf32>
    %288 = arith.truncf %287 : vector<64x8xf32> to vector<64x8xbf16>
    %c8_144 = arith.constant 8 : index
    %c0_145 = arith.constant 0 : index
    %c0_146 = arith.constant 0 : index
    %289 = vector.load %arg5[%c8_144, %c0_145, %c0_146] : memref<9x8x8xbf16, #tpu.memory_space<vmem>>, vector<1x8x8xbf16>
    %290 = vector.shape_cast %289 : vector<1x8x8xbf16> to vector<8x8xbf16>
    %cst_147 = arith.constant dense<0.000000e+00> : vector<64x8xf32>
    %291 = tpu.matmul %288, %290, %cst_147 {dimension_numbers = #tpu.dot_dimension_numbers<[1], [0], [0], [1], [0, 0, 1, 1], [], []>} : vector<64x8xbf16>, vector<8x8xbf16>, vector<64x8xf32> -> vector<64x8xf32>
    %292 = arith.addf %285, %291 : vector<64x8xf32>
    %293 = vector.shape_cast %292 : vector<64x8xf32> to vector<8x8x8xf32>
    %cst_148 = arith.constant 2.000000e-01 : f32
    %294 = vector.broadcast %cst_148 : f32 to vector<8x8x8xf32>
    %295 = arith.mulf %293, %294 : vector<8x8x8xf32>
    %c0_149 = arith.constant 0 : index
    %c0_150 = arith.constant 0 : index
    %c0_151 = arith.constant 0 : index
    %c0_152 = arith.constant 0 : index
    %296 = vector.load %arg6[%c0_149, %c0_150, %c0_151, %c0_152] : memref<1x8x8x8xbf16, #tpu.memory_space<vmem>>, vector<1x8x8x8xbf16>
    %297 = vector.shape_cast %296 : vector<1x8x8x8xbf16> to vector<8x8x8xbf16>
    %298 = arith.extf %297 : vector<8x8x8xbf16> to vector<8x8x8xf32>
    %299 = arith.addf %295, %298 : vector<8x8x8xf32>
    %c0_153 = arith.constant 0 : index
    %c0_154 = arith.constant 0 : index
    %c0_155 = arith.constant 0 : index
    %c0_156 = arith.constant 0 : index
    %300 = vector.load %arg7[%c0_153, %c0_154, %c0_155, %c0_156] : memref<1x8x8x8xf32, #tpu.memory_space<vmem>>, vector<1x8x8x8xf32>
    %301 = vector.shape_cast %300 : vector<1x8x8x8xf32> to vector<8x8x8xf32>
    %302 = vector.shape_cast %299 : vector<8x8x8xf32> to vector<1x8x8x8xf32>
    tpu.vector_store %arg7[%c0_153, %c0_154, %c0_155, %c0_156], %302 {strides = array<i32>} : memref<1x8x8x8xf32, #tpu.memory_space<vmem>>, vector<1x8x8x8xf32>,
    return
  }
  func.func @transform_0(%arg0: i32, %arg1: i32) -> (i32, i32, i32, i32) {
    %c0_i32 = arith.constant 0 : i32
    %c0_i32_0 = arith.constant 0 : i32
    %c0_i32_1 = arith.constant 0 : i32
    %c0_i32_2 = arith.constant 0 : i32
    return %arg0, %c0_i32, %c0_i32_0, %c0_i32_1 : i32, i32, i32, i32
  }
  func.func @transform_1(%arg0: i32, %arg1: i32) -> (i32, i32) {
    %c0_i32 = arith.constant 0 : i32
    %c0_i32_0 = arith.constant 0 : i32
    %c0_i32_1 = arith.constant 0 : i32
    return %c0_i32, %c0_i32_0 : i32, i32
  }
  func.func @transform_2(%arg0: i32, %arg1: i32) -> (i32, i32) {
    %c0_i32 = arith.constant 0 : i32
    %c0_i32_0 = arith.constant 0 : i32
    %c0_i32_1 = arith.constant 0 : i32
    return %c0_i32, %c0_i32_0 : i32, i32
  }
  func.func @transform_3(%arg0: i32, %arg1: i32) -> (i32, i32, i32) {
    %c0_i32 = arith.constant 0 : i32
    %c0_i32_0 = arith.constant 0 : i32
    %c0_i32_1 = arith.constant 0 : i32
    %c0_i32_2 = arith.constant 0 : i32
    return %c0_i32, %c0_i32_0, %c0_i32_1 : i32, i32, i32
  }
  func.func @transform_4(%arg0: i32, %arg1: i32) -> (i32, i32, i32, i32) {
    %c0_i32 = arith.constant 0 : i32
    %c0_i32_0 = arith.constant 0 : i32
    %c0_i32_1 = arith.constant 0 : i32
    return %arg0, %arg1, %c0_i32, %c0_i32_0 : i32, i32, i32, i32
  }
  func.func @transform_5(%arg0: i32, %arg1: i32) -> (i32, i32, i32, i32) {
    %c0_i32 = arith.constant 0 : i32
    %c0_i32_0 = arith.constant 0 : i32
    %c0_i32_1 = arith.constant 0 : i32
    return %arg0, %arg1, %c0_i32, %c0_i32_0 : i32, i32, i32, i32
  }
}

module attributes {stable_mosaic.version = 11 : i64} {
  func.func @kernel(%arg0: i32, %arg1: i32, %arg2: memref<1x16x16x4xf32, #tpu.memory_space<vmem>>, %arg3: memref<1x4xf32, #tpu.memory_space<vmem>>, %arg4: memref<1x4xf32, #tpu.memory_space<vmem>>, %arg5: memref<9x4x8xbf16, #tpu.memory_space<vmem>>, %arg6: memref<4x8xbf16, #tpu.memory_space<vmem>>, %arg7: memref<1x8x8x8xbf16, #tpu.memory_space<vmem>>, %arg8: memref<1x8x8x8xbf16, #tpu.memory_space<vmem>>, %arg9: memref<1x1x1x8xf32, #tpu.memory_space<vmem>>, %arg10: memref<1x1x1x8xf32, #tpu.memory_space<vmem>>, %arg11: memref<17x25x4xf32, #tpu.memory_space<vmem>>) attributes {dimension_semantics = [#tpu.dimension_semantics<parallel>, #tpu.dimension_semantics<parallel>], iteration_bounds = array<i64: 2, 1>, scalar_prefetch = 0 : i64, scratch_operands = 1 : i64, tpu.core_type = #tpu.core_type<tc>, window_params = [{transform_indices = @transform_0, window_bounds = array<i64: 1, 16, 16, 4>}, {pipeline_mode = #tpu.pipeline_mode<synchronous>, transform_indices = @transform_1, window_bounds = array<i64: 1, 4>}, {pipeline_mode = #tpu.pipeline_mode<synchronous>, transform_indices = @transform_2, window_bounds = array<i64: 1, 4>}, {pipeline_mode = #tpu.pipeline_mode<synchronous>, transform_indices = @transform_3, window_bounds = array<i64: 9, 4, 8>}, {pipeline_mode = #tpu.pipeline_mode<synchronous>, transform_indices = @transform_4, window_bounds = array<i64: 4, 8>}, {transform_indices = @transform_5, window_bounds = array<i64: 1, 8, 8, 8>}, {transform_indices = @transform_6, window_bounds = array<i64: 1, 8, 8, 8>}, {transform_indices = @transform_7, window_bounds = array<i64: 1, 1, 1, 8>}, {transform_indices = @transform_8, window_bounds = array<i64: 1, 1, 1, 8>}]} {
    %c16_i32 = arith.constant 16 : i32
    %0 = arith.muli %arg1, %c16_i32 : i32
    %c1_i32 = arith.constant 1 : i32
    %1 = arith.subi %0, %c1_i32 : i32
    %c0 = arith.constant 0 : index
    %c0_0 = arith.constant 0 : index
    %2 = vector.load %arg3[%c0, %c0_0] : memref<1x4xf32, #tpu.memory_space<vmem>>, vector<1x4xf32>
    %c0_1 = arith.constant 0 : index
    %c0_2 = arith.constant 0 : index
    %3 = vector.load %arg4[%c0_1, %c0_2] : memref<1x4xf32, #tpu.memory_space<vmem>>, vector<1x4xf32>
    %c0_i32 = arith.constant 0 : i32
    %4 = arith.addi %1, %c0_i32 : i32
    %c0_i32_3 = arith.constant 0 : i32
    %c15_i32 = arith.constant 15 : i32
    %5 = arith.maxsi %c0_i32_3, %4 : i32
    %6 = arith.minsi %c15_i32, %5 : i32
    %c0_i32_4 = arith.constant 0 : i32
    %7 = arith.cmpi sge, %4, %c0_i32_4 : i32
    %c16_i32_5 = arith.constant 16 : i32
    %8 = arith.cmpi slt, %4, %c16_i32_5 : i32
    %9 = arith.andi %7, %8 : i1
    %10 = arith.extui %9 : i1 to i32
    %11 = arith.sitofp %10 : i32 to f32
    %c0_6 = arith.constant 0 : index
    %12 = arith.index_cast %6 : i32 to index
    %c0_7 = arith.constant 0 : index
    %c0_8 = arith.constant 0 : index
    %13 = vector.load %arg2[%c0_6, %12, %c0_7, %c0_8] : memref<1x16x16x4xf32, #tpu.memory_space<vmem>>, vector<1x1x16x4xf32>
    %14 = vector.shape_cast %13 : vector<1x1x16x4xf32> to vector<1x16x4xf32>
    %15 = vector.shape_cast %2 : vector<1x4xf32> to vector<1x1x4xf32>
    %16 = vector.broadcast %15 : vector<1x1x4xf32> to vector<1x16x4xf32>
    %17 = arith.mulf %14, %16 : vector<1x16x4xf32>
    %18 = vector.shape_cast %3 : vector<1x4xf32> to vector<1x1x4xf32>
    %19 = vector.broadcast %18 : vector<1x1x4xf32> to vector<1x16x4xf32>
    %20 = arith.addf %17, %19 : vector<1x16x4xf32>
    %cst = arith.constant 0.000000e+00 : f32
    %21 = vector.broadcast %cst : f32 to vector<1x16x4xf32>
    %22 = arith.maximumf %20, %21 : vector<1x16x4xf32>
    %23 = vector.broadcast %11 : f32 to vector<1x16x4xf32>
    %24 = arith.mulf %22, %23 : vector<1x16x4xf32>
    %c1_i32_9 = arith.constant 1 : i32
    %25 = arith.addi %1, %c1_i32_9 : i32
    %c0_i32_10 = arith.constant 0 : i32
    %c15_i32_11 = arith.constant 15 : i32
    %26 = arith.maxsi %c0_i32_10, %25 : i32
    %27 = arith.minsi %c15_i32_11, %26 : i32
    %c0_i32_12 = arith.constant 0 : i32
    %28 = arith.cmpi sge, %25, %c0_i32_12 : i32
    %c16_i32_13 = arith.constant 16 : i32
    %29 = arith.cmpi slt, %25, %c16_i32_13 : i32
    %30 = arith.andi %28, %29 : i1
    %31 = arith.extui %30 : i1 to i32
    %32 = arith.sitofp %31 : i32 to f32
    %c0_14 = arith.constant 0 : index
    %33 = arith.index_cast %27 : i32 to index
    %c0_15 = arith.constant 0 : index
    %c0_16 = arith.constant 0 : index
    %34 = vector.load %arg2[%c0_14, %33, %c0_15, %c0_16] : memref<1x16x16x4xf32, #tpu.memory_space<vmem>>, vector<1x1x16x4xf32>
    %35 = vector.shape_cast %34 : vector<1x1x16x4xf32> to vector<1x16x4xf32>
    %36 = vector.shape_cast %2 : vector<1x4xf32> to vector<1x1x4xf32>
    %37 = vector.broadcast %36 : vector<1x1x4xf32> to vector<1x16x4xf32>
    %38 = arith.mulf %35, %37 : vector<1x16x4xf32>
    %39 = vector.shape_cast %3 : vector<1x4xf32> to vector<1x1x4xf32>
    %40 = vector.broadcast %39 : vector<1x1x4xf32> to vector<1x16x4xf32>
    %41 = arith.addf %38, %40 : vector<1x16x4xf32>
    %cst_17 = arith.constant 0.000000e+00 : f32
    %42 = vector.broadcast %cst_17 : f32 to vector<1x16x4xf32>
    %43 = arith.maximumf %41, %42 : vector<1x16x4xf32>
    %44 = vector.broadcast %32 : f32 to vector<1x16x4xf32>
    %45 = arith.mulf %43, %44 : vector<1x16x4xf32>
    %c2_i32 = arith.constant 2 : i32
    %46 = arith.addi %1, %c2_i32 : i32
    %c0_i32_18 = arith.constant 0 : i32
    %c15_i32_19 = arith.constant 15 : i32
    %47 = arith.maxsi %c0_i32_18, %46 : i32
    %48 = arith.minsi %c15_i32_19, %47 : i32
    %c0_i32_20 = arith.constant 0 : i32
    %49 = arith.cmpi sge, %46, %c0_i32_20 : i32
    %c16_i32_21 = arith.constant 16 : i32
    %50 = arith.cmpi slt, %46, %c16_i32_21 : i32
    %51 = arith.andi %49, %50 : i1
    %52 = arith.extui %51 : i1 to i32
    %53 = arith.sitofp %52 : i32 to f32
    %c0_22 = arith.constant 0 : index
    %54 = arith.index_cast %48 : i32 to index
    %c0_23 = arith.constant 0 : index
    %c0_24 = arith.constant 0 : index
    %55 = vector.load %arg2[%c0_22, %54, %c0_23, %c0_24] : memref<1x16x16x4xf32, #tpu.memory_space<vmem>>, vector<1x1x16x4xf32>
    %56 = vector.shape_cast %55 : vector<1x1x16x4xf32> to vector<1x16x4xf32>
    %57 = vector.shape_cast %2 : vector<1x4xf32> to vector<1x1x4xf32>
    %58 = vector.broadcast %57 : vector<1x1x4xf32> to vector<1x16x4xf32>
    %59 = arith.mulf %56, %58 : vector<1x16x4xf32>
    %60 = vector.shape_cast %3 : vector<1x4xf32> to vector<1x1x4xf32>
    %61 = vector.broadcast %60 : vector<1x1x4xf32> to vector<1x16x4xf32>
    %62 = arith.addf %59, %61 : vector<1x16x4xf32>
    %cst_25 = arith.constant 0.000000e+00 : f32
    %63 = vector.broadcast %cst_25 : f32 to vector<1x16x4xf32>
    %64 = arith.maximumf %62, %63 : vector<1x16x4xf32>
    %65 = vector.broadcast %53 : f32 to vector<1x16x4xf32>
    %66 = arith.mulf %64, %65 : vector<1x16x4xf32>
    %c3_i32 = arith.constant 3 : i32
    %67 = arith.addi %1, %c3_i32 : i32
    %c0_i32_26 = arith.constant 0 : i32
    %c15_i32_27 = arith.constant 15 : i32
    %68 = arith.maxsi %c0_i32_26, %67 : i32
    %69 = arith.minsi %c15_i32_27, %68 : i32
    %c0_i32_28 = arith.constant 0 : i32
    %70 = arith.cmpi sge, %67, %c0_i32_28 : i32
    %c16_i32_29 = arith.constant 16 : i32
    %71 = arith.cmpi slt, %67, %c16_i32_29 : i32
    %72 = arith.andi %70, %71 : i1
    %73 = arith.extui %72 : i1 to i32
    %74 = arith.sitofp %73 : i32 to f32
    %c0_30 = arith.constant 0 : index
    %75 = arith.index_cast %69 : i32 to index
    %c0_31 = arith.constant 0 : index
    %c0_32 = arith.constant 0 : index
    %76 = vector.load %arg2[%c0_30, %75, %c0_31, %c0_32] : memref<1x16x16x4xf32, #tpu.memory_space<vmem>>, vector<1x1x16x4xf32>
    %77 = vector.shape_cast %76 : vector<1x1x16x4xf32> to vector<1x16x4xf32>
    %78 = vector.shape_cast %2 : vector<1x4xf32> to vector<1x1x4xf32>
    %79 = vector.broadcast %78 : vector<1x1x4xf32> to vector<1x16x4xf32>
    %80 = arith.mulf %77, %79 : vector<1x16x4xf32>
    %81 = vector.shape_cast %3 : vector<1x4xf32> to vector<1x1x4xf32>
    %82 = vector.broadcast %81 : vector<1x1x4xf32> to vector<1x16x4xf32>
    %83 = arith.addf %80, %82 : vector<1x16x4xf32>
    %cst_33 = arith.constant 0.000000e+00 : f32
    %84 = vector.broadcast %cst_33 : f32 to vector<1x16x4xf32>
    %85 = arith.maximumf %83, %84 : vector<1x16x4xf32>
    %86 = vector.broadcast %74 : f32 to vector<1x16x4xf32>
    %87 = arith.mulf %85, %86 : vector<1x16x4xf32>
    %c4_i32 = arith.constant 4 : i32
    %88 = arith.addi %1, %c4_i32 : i32
    %c0_i32_34 = arith.constant 0 : i32
    %c15_i32_35 = arith.constant 15 : i32
    %89 = arith.maxsi %c0_i32_34, %88 : i32
    %90 = arith.minsi %c15_i32_35, %89 : i32
    %c0_i32_36 = arith.constant 0 : i32
    %91 = arith.cmpi sge, %88, %c0_i32_36 : i32
    %c16_i32_37 = arith.constant 16 : i32
    %92 = arith.cmpi slt, %88, %c16_i32_37 : i32
    %93 = arith.andi %91, %92 : i1
    %94 = arith.extui %93 : i1 to i32
    %95 = arith.sitofp %94 : i32 to f32
    %c0_38 = arith.constant 0 : index
    %96 = arith.index_cast %90 : i32 to index
    %c0_39 = arith.constant 0 : index
    %c0_40 = arith.constant 0 : index
    %97 = vector.load %arg2[%c0_38, %96, %c0_39, %c0_40] : memref<1x16x16x4xf32, #tpu.memory_space<vmem>>, vector<1x1x16x4xf32>
    %98 = vector.shape_cast %97 : vector<1x1x16x4xf32> to vector<1x16x4xf32>
    %99 = vector.shape_cast %2 : vector<1x4xf32> to vector<1x1x4xf32>
    %100 = vector.broadcast %99 : vector<1x1x4xf32> to vector<1x16x4xf32>
    %101 = arith.mulf %98, %100 : vector<1x16x4xf32>
    %102 = vector.shape_cast %3 : vector<1x4xf32> to vector<1x1x4xf32>
    %103 = vector.broadcast %102 : vector<1x1x4xf32> to vector<1x16x4xf32>
    %104 = arith.addf %101, %103 : vector<1x16x4xf32>
    %cst_41 = arith.constant 0.000000e+00 : f32
    %105 = vector.broadcast %cst_41 : f32 to vector<1x16x4xf32>
    %106 = arith.maximumf %104, %105 : vector<1x16x4xf32>
    %107 = vector.broadcast %95 : f32 to vector<1x16x4xf32>
    %108 = arith.mulf %106, %107 : vector<1x16x4xf32>
    %c5_i32 = arith.constant 5 : i32
    %109 = arith.addi %1, %c5_i32 : i32
    %c0_i32_42 = arith.constant 0 : i32
    %c15_i32_43 = arith.constant 15 : i32
    %110 = arith.maxsi %c0_i32_42, %109 : i32
    %111 = arith.minsi %c15_i32_43, %110 : i32
    %c0_i32_44 = arith.constant 0 : i32
    %112 = arith.cmpi sge, %109, %c0_i32_44 : i32
    %c16_i32_45 = arith.constant 16 : i32
    %113 = arith.cmpi slt, %109, %c16_i32_45 : i32
    %114 = arith.andi %112, %113 : i1
    %115 = arith.extui %114 : i1 to i32
    %116 = arith.sitofp %115 : i32 to f32
    %c0_46 = arith.constant 0 : index
    %117 = arith.index_cast %111 : i32 to index
    %c0_47 = arith.constant 0 : index
    %c0_48 = arith.constant 0 : index
    %118 = vector.load %arg2[%c0_46, %117, %c0_47, %c0_48] : memref<1x16x16x4xf32, #tpu.memory_space<vmem>>, vector<1x1x16x4xf32>
    %119 = vector.shape_cast %118 : vector<1x1x16x4xf32> to vector<1x16x4xf32>
    %120 = vector.shape_cast %2 : vector<1x4xf32> to vector<1x1x4xf32>
    %121 = vector.broadcast %120 : vector<1x1x4xf32> to vector<1x16x4xf32>
    %122 = arith.mulf %119, %121 : vector<1x16x4xf32>
    %123 = vector.shape_cast %3 : vector<1x4xf32> to vector<1x1x4xf32>
    %124 = vector.broadcast %123 : vector<1x1x4xf32> to vector<1x16x4xf32>
    %125 = arith.addf %122, %124 : vector<1x16x4xf32>
    %cst_49 = arith.constant 0.000000e+00 : f32
    %126 = vector.broadcast %cst_49 : f32 to vector<1x16x4xf32>
    %127 = arith.maximumf %125, %126 : vector<1x16x4xf32>
    %128 = vector.broadcast %116 : f32 to vector<1x16x4xf32>
    %129 = arith.mulf %127, %128 : vector<1x16x4xf32>
    %c6_i32 = arith.constant 6 : i32
    %130 = arith.addi %1, %c6_i32 : i32
    %c0_i32_50 = arith.constant 0 : i32
    %c15_i32_51 = arith.constant 15 : i32
    %131 = arith.maxsi %c0_i32_50, %130 : i32
    %132 = arith.minsi %c15_i32_51, %131 : i32
    %c0_i32_52 = arith.constant 0 : i32
    %133 = arith.cmpi sge, %130, %c0_i32_52 : i32
    %c16_i32_53 = arith.constant 16 : i32
    %134 = arith.cmpi slt, %130, %c16_i32_53 : i32
    %135 = arith.andi %133, %134 : i1
    %136 = arith.extui %135 : i1 to i32
    %137 = arith.sitofp %136 : i32 to f32
    %c0_54 = arith.constant 0 : index
    %138 = arith.index_cast %132 : i32 to index
    %c0_55 = arith.constant 0 : index
    %c0_56 = arith.constant 0 : index
    %139 = vector.load %arg2[%c0_54, %138, %c0_55, %c0_56] : memref<1x16x16x4xf32, #tpu.memory_space<vmem>>, vector<1x1x16x4xf32>
    %140 = vector.shape_cast %139 : vector<1x1x16x4xf32> to vector<1x16x4xf32>
    %141 = vector.shape_cast %2 : vector<1x4xf32> to vector<1x1x4xf32>
    %142 = vector.broadcast %141 : vector<1x1x4xf32> to vector<1x16x4xf32>
    %143 = arith.mulf %140, %142 : vector<1x16x4xf32>
    %144 = vector.shape_cast %3 : vector<1x4xf32> to vector<1x1x4xf32>
    %145 = vector.broadcast %144 : vector<1x1x4xf32> to vector<1x16x4xf32>
    %146 = arith.addf %143, %145 : vector<1x16x4xf32>
    %cst_57 = arith.constant 0.000000e+00 : f32
    %147 = vector.broadcast %cst_57 : f32 to vector<1x16x4xf32>
    %148 = arith.maximumf %146, %147 : vector<1x16x4xf32>
    %149 = vector.broadcast %137 : f32 to vector<1x16x4xf32>
    %150 = arith.mulf %148, %149 : vector<1x16x4xf32>
    %c7_i32 = arith.constant 7 : i32
    %151 = arith.addi %1, %c7_i32 : i32
    %c0_i32_58 = arith.constant 0 : i32
    %c15_i32_59 = arith.constant 15 : i32
    %152 = arith.maxsi %c0_i32_58, %151 : i32
    %153 = arith.minsi %c15_i32_59, %152 : i32
    %c0_i32_60 = arith.constant 0 : i32
    %154 = arith.cmpi sge, %151, %c0_i32_60 : i32
    %c16_i32_61 = arith.constant 16 : i32
    %155 = arith.cmpi slt, %151, %c16_i32_61 : i32
    %156 = arith.andi %154, %155 : i1
    %157 = arith.extui %156 : i1 to i32
    %158 = arith.sitofp %157 : i32 to f32
    %c0_62 = arith.constant 0 : index
    %159 = arith.index_cast %153 : i32 to index
    %c0_63 = arith.constant 0 : index
    %c0_64 = arith.constant 0 : index
    %160 = vector.load %arg2[%c0_62, %159, %c0_63, %c0_64] : memref<1x16x16x4xf32, #tpu.memory_space<vmem>>, vector<1x1x16x4xf32>
    %161 = vector.shape_cast %160 : vector<1x1x16x4xf32> to vector<1x16x4xf32>
    %162 = vector.shape_cast %2 : vector<1x4xf32> to vector<1x1x4xf32>
    %163 = vector.broadcast %162 : vector<1x1x4xf32> to vector<1x16x4xf32>
    %164 = arith.mulf %161, %163 : vector<1x16x4xf32>
    %165 = vector.shape_cast %3 : vector<1x4xf32> to vector<1x1x4xf32>
    %166 = vector.broadcast %165 : vector<1x1x4xf32> to vector<1x16x4xf32>
    %167 = arith.addf %164, %166 : vector<1x16x4xf32>
    %cst_65 = arith.constant 0.000000e+00 : f32
    %168 = vector.broadcast %cst_65 : f32 to vector<1x16x4xf32>
    %169 = arith.maximumf %167, %168 : vector<1x16x4xf32>
    %170 = vector.broadcast %158 : f32 to vector<1x16x4xf32>
    %171 = arith.mulf %169, %170 : vector<1x16x4xf32>
    %c8_i32 = arith.constant 8 : i32
    %172 = arith.addi %1, %c8_i32 : i32
    %c0_i32_66 = arith.constant 0 : i32
    %c15_i32_67 = arith.constant 15 : i32
    %173 = arith.maxsi %c0_i32_66, %172 : i32
    %174 = arith.minsi %c15_i32_67, %173 : i32
    %c0_i32_68 = arith.constant 0 : i32
    %175 = arith.cmpi sge, %172, %c0_i32_68 : i32
    %c16_i32_69 = arith.constant 16 : i32
    %176 = arith.cmpi slt, %172, %c16_i32_69 : i32
    %177 = arith.andi %175, %176 : i1
    %178 = arith.extui %177 : i1 to i32
    %179 = arith.sitofp %178 : i32 to f32
    %c0_70 = arith.constant 0 : index
    %180 = arith.index_cast %174 : i32 to index
    %c0_71 = arith.constant 0 : index
    %c0_72 = arith.constant 0 : index
    %181 = vector.load %arg2[%c0_70, %180, %c0_71, %c0_72] : memref<1x16x16x4xf32, #tpu.memory_space<vmem>>, vector<1x1x16x4xf32>
    %182 = vector.shape_cast %181 : vector<1x1x16x4xf32> to vector<1x16x4xf32>
    %183 = vector.shape_cast %2 : vector<1x4xf32> to vector<1x1x4xf32>
    %184 = vector.broadcast %183 : vector<1x1x4xf32> to vector<1x16x4xf32>
    %185 = arith.mulf %182, %184 : vector<1x16x4xf32>
    %186 = vector.shape_cast %3 : vector<1x4xf32> to vector<1x1x4xf32>
    %187 = vector.broadcast %186 : vector<1x1x4xf32> to vector<1x16x4xf32>
    %188 = arith.addf %185, %187 : vector<1x16x4xf32>
    %cst_73 = arith.constant 0.000000e+00 : f32
    %189 = vector.broadcast %cst_73 : f32 to vector<1x16x4xf32>
    %190 = arith.maximumf %188, %189 : vector<1x16x4xf32>
    %191 = vector.broadcast %179 : f32 to vector<1x16x4xf32>
    %192 = arith.mulf %190, %191 : vector<1x16x4xf32>
    %c9_i32 = arith.constant 9 : i32
    %193 = arith.addi %1, %c9_i32 : i32
    %c0_i32_74 = arith.constant 0 : i32
    %c15_i32_75 = arith.constant 15 : i32
    %194 = arith.maxsi %c0_i32_74, %193 : i32
    %195 = arith.minsi %c15_i32_75, %194 : i32
    %c0_i32_76 = arith.constant 0 : i32
    %196 = arith.cmpi sge, %193, %c0_i32_76 : i32
    %c16_i32_77 = arith.constant 16 : i32
    %197 = arith.cmpi slt, %193, %c16_i32_77 : i32
    %198 = arith.andi %196, %197 : i1
    %199 = arith.extui %198 : i1 to i32
    %200 = arith.sitofp %199 : i32 to f32
    %c0_78 = arith.constant 0 : index
    %201 = arith.index_cast %195 : i32 to index
    %c0_79 = arith.constant 0 : index
    %c0_80 = arith.constant 0 : index
    %202 = vector.load %arg2[%c0_78, %201, %c0_79, %c0_80] : memref<1x16x16x4xf32, #tpu.memory_space<vmem>>, vector<1x1x16x4xf32>
    %203 = vector.shape_cast %202 : vector<1x1x16x4xf32> to vector<1x16x4xf32>
    %204 = vector.shape_cast %2 : vector<1x4xf32> to vector<1x1x4xf32>
    %205 = vector.broadcast %204 : vector<1x1x4xf32> to vector<1x16x4xf32>
    %206 = arith.mulf %203, %205 : vector<1x16x4xf32>
    %207 = vector.shape_cast %3 : vector<1x4xf32> to vector<1x1x4xf32>
    %208 = vector.broadcast %207 : vector<1x1x4xf32> to vector<1x16x4xf32>
    %209 = arith.addf %206, %208 : vector<1x16x4xf32>
    %cst_81 = arith.constant 0.000000e+00 : f32
    %210 = vector.broadcast %cst_81 : f32 to vector<1x16x4xf32>
    %211 = arith.maximumf %209, %210 : vector<1x16x4xf32>
    %212 = vector.broadcast %200 : f32 to vector<1x16x4xf32>
    %213 = arith.mulf %211, %212 : vector<1x16x4xf32>
    %c10_i32 = arith.constant 10 : i32
    %214 = arith.addi %1, %c10_i32 : i32
    %c0_i32_82 = arith.constant 0 : i32
    %c15_i32_83 = arith.constant 15 : i32
    %215 = arith.maxsi %c0_i32_82, %214 : i32
    %216 = arith.minsi %c15_i32_83, %215 : i32
    %c0_i32_84 = arith.constant 0 : i32
    %217 = arith.cmpi sge, %214, %c0_i32_84 : i32
    %c16_i32_85 = arith.constant 16 : i32
    %218 = arith.cmpi slt, %214, %c16_i32_85 : i32
    %219 = arith.andi %217, %218 : i1
    %220 = arith.extui %219 : i1 to i32
    %221 = arith.sitofp %220 : i32 to f32
    %c0_86 = arith.constant 0 : index
    %222 = arith.index_cast %216 : i32 to index
    %c0_87 = arith.constant 0 : index
    %c0_88 = arith.constant 0 : index
    %223 = vector.load %arg2[%c0_86, %222, %c0_87, %c0_88] : memref<1x16x16x4xf32, #tpu.memory_space<vmem>>, vector<1x1x16x4xf32>
    %224 = vector.shape_cast %223 : vector<1x1x16x4xf32> to vector<1x16x4xf32>
    %225 = vector.shape_cast %2 : vector<1x4xf32> to vector<1x1x4xf32>
    %226 = vector.broadcast %225 : vector<1x1x4xf32> to vector<1x16x4xf32>
    %227 = arith.mulf %224, %226 : vector<1x16x4xf32>
    %228 = vector.shape_cast %3 : vector<1x4xf32> to vector<1x1x4xf32>
    %229 = vector.broadcast %228 : vector<1x1x4xf32> to vector<1x16x4xf32>
    %230 = arith.addf %227, %229 : vector<1x16x4xf32>
    %cst_89 = arith.constant 0.000000e+00 : f32
    %231 = vector.broadcast %cst_89 : f32 to vector<1x16x4xf32>
    %232 = arith.maximumf %230, %231 : vector<1x16x4xf32>
    %233 = vector.broadcast %221 : f32 to vector<1x16x4xf32>
    %234 = arith.mulf %232, %233 : vector<1x16x4xf32>
    %c11_i32 = arith.constant 11 : i32
    %235 = arith.addi %1, %c11_i32 : i32
    %c0_i32_90 = arith.constant 0 : i32
    %c15_i32_91 = arith.constant 15 : i32
    %236 = arith.maxsi %c0_i32_90, %235 : i32
    %237 = arith.minsi %c15_i32_91, %236 : i32
    %c0_i32_92 = arith.constant 0 : i32
    %238 = arith.cmpi sge, %235, %c0_i32_92 : i32
    %c16_i32_93 = arith.constant 16 : i32
    %239 = arith.cmpi slt, %235, %c16_i32_93 : i32
    %240 = arith.andi %238, %239 : i1
    %241 = arith.extui %240 : i1 to i32
    %242 = arith.sitofp %241 : i32 to f32
    %c0_94 = arith.constant 0 : index
    %243 = arith.index_cast %237 : i32 to index
    %c0_95 = arith.constant 0 : index
    %c0_96 = arith.constant 0 : index
    %244 = vector.load %arg2[%c0_94, %243, %c0_95, %c0_96] : memref<1x16x16x4xf32, #tpu.memory_space<vmem>>, vector<1x1x16x4xf32>
    %245 = vector.shape_cast %244 : vector<1x1x16x4xf32> to vector<1x16x4xf32>
    %246 = vector.shape_cast %2 : vector<1x4xf32> to vector<1x1x4xf32>
    %247 = vector.broadcast %246 : vector<1x1x4xf32> to vector<1x16x4xf32>
    %248 = arith.mulf %245, %247 : vector<1x16x4xf32>
    %249 = vector.shape_cast %3 : vector<1x4xf32> to vector<1x1x4xf32>
    %250 = vector.broadcast %249 : vector<1x1x4xf32> to vector<1x16x4xf32>
    %251 = arith.addf %248, %250 : vector<1x16x4xf32>
    %cst_97 = arith.constant 0.000000e+00 : f32
    %252 = vector.broadcast %cst_97 : f32 to vector<1x16x4xf32>
    %253 = arith.maximumf %251, %252 : vector<1x16x4xf32>
    %254 = vector.broadcast %242 : f32 to vector<1x16x4xf32>
    %255 = arith.mulf %253, %254 : vector<1x16x4xf32>
    %c12_i32 = arith.constant 12 : i32
    %256 = arith.addi %1, %c12_i32 : i32
    %c0_i32_98 = arith.constant 0 : i32
    %c15_i32_99 = arith.constant 15 : i32
    %257 = arith.maxsi %c0_i32_98, %256 : i32
    %258 = arith.minsi %c15_i32_99, %257 : i32
    %c0_i32_100 = arith.constant 0 : i32
    %259 = arith.cmpi sge, %256, %c0_i32_100 : i32
    %c16_i32_101 = arith.constant 16 : i32
    %260 = arith.cmpi slt, %256, %c16_i32_101 : i32
    %261 = arith.andi %259, %260 : i1
    %262 = arith.extui %261 : i1 to i32
    %263 = arith.sitofp %262 : i32 to f32
    %c0_102 = arith.constant 0 : index
    %264 = arith.index_cast %258 : i32 to index
    %c0_103 = arith.constant 0 : index
    %c0_104 = arith.constant 0 : index
    %265 = vector.load %arg2[%c0_102, %264, %c0_103, %c0_104] : memref<1x16x16x4xf32, #tpu.memory_space<vmem>>, vector<1x1x16x4xf32>
    %266 = vector.shape_cast %265 : vector<1x1x16x4xf32> to vector<1x16x4xf32>
    %267 = vector.shape_cast %2 : vector<1x4xf32> to vector<1x1x4xf32>
    %268 = vector.broadcast %267 : vector<1x1x4xf32> to vector<1x16x4xf32>
    %269 = arith.mulf %266, %268 : vector<1x16x4xf32>
    %270 = vector.shape_cast %3 : vector<1x4xf32> to vector<1x1x4xf32>
    %271 = vector.broadcast %270 : vector<1x1x4xf32> to vector<1x16x4xf32>
    %272 = arith.addf %269, %271 : vector<1x16x4xf32>
    %cst_105 = arith.constant 0.000000e+00 : f32
    %273 = vector.broadcast %cst_105 : f32 to vector<1x16x4xf32>
    %274 = arith.maximumf %272, %273 : vector<1x16x4xf32>
    %275 = vector.broadcast %263 : f32 to vector<1x16x4xf32>
    %276 = arith.mulf %274, %275 : vector<1x16x4xf32>
    %c13_i32 = arith.constant 13 : i32
    %277 = arith.addi %1, %c13_i32 : i32
    %c0_i32_106 = arith.constant 0 : i32
    %c15_i32_107 = arith.constant 15 : i32
    %278 = arith.maxsi %c0_i32_106, %277 : i32
    %279 = arith.minsi %c15_i32_107, %278 : i32
    %c0_i32_108 = arith.constant 0 : i32
    %280 = arith.cmpi sge, %277, %c0_i32_108 : i32
    %c16_i32_109 = arith.constant 16 : i32
    %281 = arith.cmpi slt, %277, %c16_i32_109 : i32
    %282 = arith.andi %280, %281 : i1
    %283 = arith.extui %282 : i1 to i32
    %284 = arith.sitofp %283 : i32 to f32
    %c0_110 = arith.constant 0 : index
    %285 = arith.index_cast %279 : i32 to index
    %c0_111 = arith.constant 0 : index
    %c0_112 = arith.constant 0 : index
    %286 = vector.load %arg2[%c0_110, %285, %c0_111, %c0_112] : memref<1x16x16x4xf32, #tpu.memory_space<vmem>>, vector<1x1x16x4xf32>
    %287 = vector.shape_cast %286 : vector<1x1x16x4xf32> to vector<1x16x4xf32>
    %288 = vector.shape_cast %2 : vector<1x4xf32> to vector<1x1x4xf32>
    %289 = vector.broadcast %288 : vector<1x1x4xf32> to vector<1x16x4xf32>
    %290 = arith.mulf %287, %289 : vector<1x16x4xf32>
    %291 = vector.shape_cast %3 : vector<1x4xf32> to vector<1x1x4xf32>
    %292 = vector.broadcast %291 : vector<1x1x4xf32> to vector<1x16x4xf32>
    %293 = arith.addf %290, %292 : vector<1x16x4xf32>
    %cst_113 = arith.constant 0.000000e+00 : f32
    %294 = vector.broadcast %cst_113 : f32 to vector<1x16x4xf32>
    %295 = arith.maximumf %293, %294 : vector<1x16x4xf32>
    %296 = vector.broadcast %284 : f32 to vector<1x16x4xf32>
    %297 = arith.mulf %295, %296 : vector<1x16x4xf32>
    %c14_i32 = arith.constant 14 : i32
    %298 = arith.addi %1, %c14_i32 : i32
    %c0_i32_114 = arith.constant 0 : i32
    %c15_i32_115 = arith.constant 15 : i32
    %299 = arith.maxsi %c0_i32_114, %298 : i32
    %300 = arith.minsi %c15_i32_115, %299 : i32
    %c0_i32_116 = arith.constant 0 : i32
    %301 = arith.cmpi sge, %298, %c0_i32_116 : i32
    %c16_i32_117 = arith.constant 16 : i32
    %302 = arith.cmpi slt, %298, %c16_i32_117 : i32
    %303 = arith.andi %301, %302 : i1
    %304 = arith.extui %303 : i1 to i32
    %305 = arith.sitofp %304 : i32 to f32
    %c0_118 = arith.constant 0 : index
    %306 = arith.index_cast %300 : i32 to index
    %c0_119 = arith.constant 0 : index
    %c0_120 = arith.constant 0 : index
    %307 = vector.load %arg2[%c0_118, %306, %c0_119, %c0_120] : memref<1x16x16x4xf32, #tpu.memory_space<vmem>>, vector<1x1x16x4xf32>
    %308 = vector.shape_cast %307 : vector<1x1x16x4xf32> to vector<1x16x4xf32>
    %309 = vector.shape_cast %2 : vector<1x4xf32> to vector<1x1x4xf32>
    %310 = vector.broadcast %309 : vector<1x1x4xf32> to vector<1x16x4xf32>
    %311 = arith.mulf %308, %310 : vector<1x16x4xf32>
    %312 = vector.shape_cast %3 : vector<1x4xf32> to vector<1x1x4xf32>
    %313 = vector.broadcast %312 : vector<1x1x4xf32> to vector<1x16x4xf32>
    %314 = arith.addf %311, %313 : vector<1x16x4xf32>
    %cst_121 = arith.constant 0.000000e+00 : f32
    %315 = vector.broadcast %cst_121 : f32 to vector<1x16x4xf32>
    %316 = arith.maximumf %314, %315 : vector<1x16x4xf32>
    %317 = vector.broadcast %305 : f32 to vector<1x16x4xf32>
    %318 = arith.mulf %316, %317 : vector<1x16x4xf32>
    %c15_i32_122 = arith.constant 15 : i32
    %319 = arith.addi %1, %c15_i32_122 : i32
    %c0_i32_123 = arith.constant 0 : i32
    %c15_i32_124 = arith.constant 15 : i32
    %320 = arith.maxsi %c0_i32_123, %319 : i32
    %321 = arith.minsi %c15_i32_124, %320 : i32
    %c0_i32_125 = arith.constant 0 : i32
    %322 = arith.cmpi sge, %319, %c0_i32_125 : i32
    %c16_i32_126 = arith.constant 16 : i32
    %323 = arith.cmpi slt, %319, %c16_i32_126 : i32
    %324 = arith.andi %322, %323 : i1
    %325 = arith.extui %324 : i1 to i32
    %326 = arith.sitofp %325 : i32 to f32
    %c0_127 = arith.constant 0 : index
    %327 = arith.index_cast %321 : i32 to index
    %c0_128 = arith.constant 0 : index
    %c0_129 = arith.constant 0 : index
    %328 = vector.load %arg2[%c0_127, %327, %c0_128, %c0_129] : memref<1x16x16x4xf32, #tpu.memory_space<vmem>>, vector<1x1x16x4xf32>
    %329 = vector.shape_cast %328 : vector<1x1x16x4xf32> to vector<1x16x4xf32>
    %330 = vector.shape_cast %2 : vector<1x4xf32> to vector<1x1x4xf32>
    %331 = vector.broadcast %330 : vector<1x1x4xf32> to vector<1x16x4xf32>
    %332 = arith.mulf %329, %331 : vector<1x16x4xf32>
    %333 = vector.shape_cast %3 : vector<1x4xf32> to vector<1x1x4xf32>
    %334 = vector.broadcast %333 : vector<1x1x4xf32> to vector<1x16x4xf32>
    %335 = arith.addf %332, %334 : vector<1x16x4xf32>
    %cst_130 = arith.constant 0.000000e+00 : f32
    %336 = vector.broadcast %cst_130 : f32 to vector<1x16x4xf32>
    %337 = arith.maximumf %335, %336 : vector<1x16x4xf32>
    %338 = vector.broadcast %326 : f32 to vector<1x16x4xf32>
    %339 = arith.mulf %337, %338 : vector<1x16x4xf32>
    %c16_i32_131 = arith.constant 16 : i32
    %340 = arith.addi %1, %c16_i32_131 : i32
    %c0_i32_132 = arith.constant 0 : i32
    %c15_i32_133 = arith.constant 15 : i32
    %341 = arith.maxsi %c0_i32_132, %340 : i32
    %342 = arith.minsi %c15_i32_133, %341 : i32
    %c0_i32_134 = arith.constant 0 : i32
    %343 = arith.cmpi sge, %340, %c0_i32_134 : i32
    %c16_i32_135 = arith.constant 16 : i32
    %344 = arith.cmpi slt, %340, %c16_i32_135 : i32
    %345 = arith.andi %343, %344 : i1
    %346 = arith.extui %345 : i1 to i32
    %347 = arith.sitofp %346 : i32 to f32
    %c0_136 = arith.constant 0 : index
    %348 = arith.index_cast %342 : i32 to index
    %c0_137 = arith.constant 0 : index
    %c0_138 = arith.constant 0 : index
    %349 = vector.load %arg2[%c0_136, %348, %c0_137, %c0_138] : memref<1x16x16x4xf32, #tpu.memory_space<vmem>>, vector<1x1x16x4xf32>
    %350 = vector.shape_cast %349 : vector<1x1x16x4xf32> to vector<1x16x4xf32>
    %351 = vector.shape_cast %2 : vector<1x4xf32> to vector<1x1x4xf32>
    %352 = vector.broadcast %351 : vector<1x1x4xf32> to vector<1x16x4xf32>
    %353 = arith.mulf %350, %352 : vector<1x16x4xf32>
    %354 = vector.shape_cast %3 : vector<1x4xf32> to vector<1x1x4xf32>
    %355 = vector.broadcast %354 : vector<1x1x4xf32> to vector<1x16x4xf32>
    %356 = arith.addf %353, %355 : vector<1x16x4xf32>
    %cst_139 = arith.constant 0.000000e+00 : f32
    %357 = vector.broadcast %cst_139 : f32 to vector<1x16x4xf32>
    %358 = arith.maximumf %356, %357 : vector<1x16x4xf32>
    %359 = vector.broadcast %347 : f32 to vector<1x16x4xf32>
    %360 = arith.mulf %358, %359 : vector<1x16x4xf32>
    %361 = tpu.concatenate %24, %45, %66, %87, %108, %129, %150, %171, %192, %213, %234, %255, %276, %297, %318, %339 in 0 : vector<1x16x4xf32>, vector<1x16x4xf32>, vector<1x16x4xf32>, vector<1x16x4xf32>, vector<1x16x4xf32>, vector<1x16x4xf32>, vector<1x16x4xf32>, vector<1x16x4xf32>, vector<1x16x4xf32>, vector<1x16x4xf32>, vector<1x16x4xf32>, vector<1x16x4xf32>, vector<1x16x4xf32>, vector<1x16x4xf32>, vector<1x16x4xf32>, vector<1x16x4xf32> -> vector<16x16x4xf32>
    %362 = tpu.concatenate %361, %360 in 0 : vector<16x16x4xf32>, vector<1x16x4xf32> -> vector<17x16x4xf32>
    %cst_140 = arith.constant 0.000000e+00 : f32
    %363 = vector.broadcast %cst_140 : f32 to vector<17x1x4xf32>
    %c0_141 = arith.constant 0 : index
    %c7 = arith.constant 7 : index
    %c0_142 = arith.constant 0 : index
    %364 = vector.load %arg11[%c0_141, %c7, %c0_142] : memref<17x25x4xf32, #tpu.memory_space<vmem>>, vector<17x1x4xf32>
    tpu.vector_store %arg11[%c0_141, %c7, %c0_142], %363 {strides = array<i32>} : memref<17x25x4xf32, #tpu.memory_space<vmem>>, vector<17x1x4xf32>,
    %c0_143 = arith.constant 0 : index
    %c24 = arith.constant 24 : index
    %c0_144 = arith.constant 0 : index
    %365 = vector.load %arg11[%c0_143, %c24, %c0_144] : memref<17x25x4xf32, #tpu.memory_space<vmem>>, vector<17x1x4xf32>
    tpu.vector_store %arg11[%c0_143, %c24, %c0_144], %363 {strides = array<i32>} : memref<17x25x4xf32, #tpu.memory_space<vmem>>, vector<17x1x4xf32>,
    %c0_145 = arith.constant 0 : index
    %c8 = arith.constant 8 : index
    %c0_146 = arith.constant 0 : index
    %366 = vector.load %arg11[%c0_145, %c8, %c0_146] : memref<17x25x4xf32, #tpu.memory_space<vmem>>, vector<17x16x4xf32>
    tpu.vector_store %arg11[%c0_145, %c8, %c0_146], %362 {strides = array<i32>} : memref<17x25x4xf32, #tpu.memory_space<vmem>>, vector<17x16x4xf32>,
    %cst_147 = arith.constant 0.000000e+00 : f32
    %367 = vector.broadcast %cst_147 : f32 to vector<64x8xf32>
    %c0_148 = arith.constant 0 : index
    %c7_149 = arith.constant 7 : index
    %c0_150 = arith.constant 0 : index
    %368 = tpu.strided_load %arg11[%c0_148, %c7_149, %c0_150] {strides = array<i32: 2, 2, 1>} : memref<17x25x4xf32, #tpu.memory_space<vmem>>, vector<8x8x4xf32>
    %369 = vector.shape_cast %368 : vector<8x8x4xf32> to vector<64x4xf32>
    %370 = arith.truncf %369 : vector<64x4xf32> to vector<64x4xbf16>
    %c0_151 = arith.constant 0 : index
    %c0_152 = arith.constant 0 : index
    %c0_153 = arith.constant 0 : index
    %371 = vector.load %arg5[%c0_151, %c0_152, %c0_153] : memref<9x4x8xbf16, #tpu.memory_space<vmem>>, vector<1x4x8xbf16>
    %372 = vector.shape_cast %371 : vector<1x4x8xbf16> to vector<4x8xbf16>
    %cst_154 = arith.constant dense<0.000000e+00> : vector<64x8xf32>
    %373 = tpu.matmul %370, %372, %cst_154 {dimension_numbers = #tpu.dot_dimension_numbers<[1], [0], [0], [1], [0, 0, 1, 1], [], []>} : vector<64x4xbf16>, vector<4x8xbf16>, vector<64x8xf32> -> vector<64x8xf32>
    %374 = arith.addf %367, %373 : vector<64x8xf32>
    %c0_155 = arith.constant 0 : index
    %c8_156 = arith.constant 8 : index
    %c0_157 = arith.constant 0 : index
    %375 = tpu.strided_load %arg11[%c0_155, %c8_156, %c0_157] {strides = array<i32: 2, 2, 1>} : memref<17x25x4xf32, #tpu.memory_space<vmem>>, vector<8x8x4xf32>
    %376 = vector.shape_cast %375 : vector<8x8x4xf32> to vector<64x4xf32>
    %377 = arith.truncf %376 : vector<64x4xf32> to vector<64x4xbf16>
    %c1 = arith.constant 1 : index
    %c0_158 = arith.constant 0 : index
    %c0_159 = arith.constant 0 : index
    %378 = vector.load %arg5[%c1, %c0_158, %c0_159] : memref<9x4x8xbf16, #tpu.memory_space<vmem>>, vector<1x4x8xbf16>
    %379 = vector.shape_cast %378 : vector<1x4x8xbf16> to vector<4x8xbf16>
    %cst_160 = arith.constant dense<0.000000e+00> : vector<64x8xf32>
    %380 = tpu.matmul %377, %379, %cst_160 {dimension_numbers = #tpu.dot_dimension_numbers<[1], [0], [0], [1], [0, 0, 1, 1], [], []>} : vector<64x4xbf16>, vector<4x8xbf16>, vector<64x8xf32> -> vector<64x8xf32>
    %381 = arith.addf %374, %380 : vector<64x8xf32>
    %c0_161 = arith.constant 0 : index
    %c9 = arith.constant 9 : index
    %c0_162 = arith.constant 0 : index
    %382 = tpu.strided_load %arg11[%c0_161, %c9, %c0_162] {strides = array<i32: 2, 2, 1>} : memref<17x25x4xf32, #tpu.memory_space<vmem>>, vector<8x8x4xf32>
    %383 = vector.shape_cast %382 : vector<8x8x4xf32> to vector<64x4xf32>
    %384 = arith.truncf %383 : vector<64x4xf32> to vector<64x4xbf16>
    %c2 = arith.constant 2 : index
    %c0_163 = arith.constant 0 : index
    %c0_164 = arith.constant 0 : index
    %385 = vector.load %arg5[%c2, %c0_163, %c0_164] : memref<9x4x8xbf16, #tpu.memory_space<vmem>>, vector<1x4x8xbf16>
    %386 = vector.shape_cast %385 : vector<1x4x8xbf16> to vector<4x8xbf16>
    %cst_165 = arith.constant dense<0.000000e+00> : vector<64x8xf32>
    %387 = tpu.matmul %384, %386, %cst_165 {dimension_numbers = #tpu.dot_dimension_numbers<[1], [0], [0], [1], [0, 0, 1, 1], [], []>} : vector<64x4xbf16>, vector<4x8xbf16>, vector<64x8xf32> -> vector<64x8xf32>
    %388 = arith.addf %381, %387 : vector<64x8xf32>
    %c1_166 = arith.constant 1 : index
    %c7_167 = arith.constant 7 : index
    %c0_168 = arith.constant 0 : index
    %389 = tpu.strided_load %arg11[%c1_166, %c7_167, %c0_168] {strides = array<i32: 2, 2, 1>} : memref<17x25x4xf32, #tpu.memory_space<vmem>>, vector<8x8x4xf32>
    %390 = vector.shape_cast %389 : vector<8x8x4xf32> to vector<64x4xf32>
    %391 = arith.truncf %390 : vector<64x4xf32> to vector<64x4xbf16>
    %c3 = arith.constant 3 : index
    %c0_169 = arith.constant 0 : index
    %c0_170 = arith.constant 0 : index
    %392 = vector.load %arg5[%c3, %c0_169, %c0_170] : memref<9x4x8xbf16, #tpu.memory_space<vmem>>, vector<1x4x8xbf16>
    %393 = vector.shape_cast %392 : vector<1x4x8xbf16> to vector<4x8xbf16>
    %cst_171 = arith.constant dense<0.000000e+00> : vector<64x8xf32>
    %394 = tpu.matmul %391, %393, %cst_171 {dimension_numbers = #tpu.dot_dimension_numbers<[1], [0], [0], [1], [0, 0, 1, 1], [], []>} : vector<64x4xbf16>, vector<4x8xbf16>, vector<64x8xf32> -> vector<64x8xf32>
    %395 = arith.addf %388, %394 : vector<64x8xf32>
    %c1_172 = arith.constant 1 : index
    %c8_173 = arith.constant 8 : index
    %c0_174 = arith.constant 0 : index
    %396 = tpu.strided_load %arg11[%c1_172, %c8_173, %c0_174] {strides = array<i32: 2, 2, 1>} : memref<17x25x4xf32, #tpu.memory_space<vmem>>, vector<8x8x4xf32>
    %397 = vector.shape_cast %396 : vector<8x8x4xf32> to vector<64x4xf32>
    %398 = arith.truncf %397 : vector<64x4xf32> to vector<64x4xbf16>
    %c4 = arith.constant 4 : index
    %c0_175 = arith.constant 0 : index
    %c0_176 = arith.constant 0 : index
    %399 = vector.load %arg5[%c4, %c0_175, %c0_176] : memref<9x4x8xbf16, #tpu.memory_space<vmem>>, vector<1x4x8xbf16>
    %400 = vector.shape_cast %399 : vector<1x4x8xbf16> to vector<4x8xbf16>
    %cst_177 = arith.constant dense<0.000000e+00> : vector<64x8xf32>
    %401 = tpu.matmul %398, %400, %cst_177 {dimension_numbers = #tpu.dot_dimension_numbers<[1], [0], [0], [1], [0, 0, 1, 1], [], []>} : vector<64x4xbf16>, vector<4x8xbf16>, vector<64x8xf32> -> vector<64x8xf32>
    %402 = arith.addf %395, %401 : vector<64x8xf32>
    %c0_178 = arith.constant 0 : index
    %c0_179 = arith.constant 0 : index
    %403 = vector.load %arg6[%c0_178, %c0_179] : memref<4x8xbf16, #tpu.memory_space<vmem>>, vector<4x8xbf16>
    %cst_180 = arith.constant dense<0.000000e+00> : vector<64x8xf32>
    %404 = tpu.matmul %398, %403, %cst_180 {dimension_numbers = #tpu.dot_dimension_numbers<[1], [0], [0], [1], [0, 0, 1, 1], [], []>} : vector<64x4xbf16>, vector<4x8xbf16>, vector<64x8xf32> -> vector<64x8xf32>
    %c1_181 = arith.constant 1 : index
    %c9_182 = arith.constant 9 : index
    %c0_183 = arith.constant 0 : index
    %405 = tpu.strided_load %arg11[%c1_181, %c9_182, %c0_183] {strides = array<i32: 2, 2, 1>} : memref<17x25x4xf32, #tpu.memory_space<vmem>>, vector<8x8x4xf32>
    %406 = vector.shape_cast %405 : vector<8x8x4xf32> to vector<64x4xf32>
    %407 = arith.truncf %406 : vector<64x4xf32> to vector<64x4xbf16>
    %c5 = arith.constant 5 : index
    %c0_184 = arith.constant 0 : index
    %c0_185 = arith.constant 0 : index
    %408 = vector.load %arg5[%c5, %c0_184, %c0_185] : memref<9x4x8xbf16, #tpu.memory_space<vmem>>, vector<1x4x8xbf16>
    %409 = vector.shape_cast %408 : vector<1x4x8xbf16> to vector<4x8xbf16>
    %cst_186 = arith.constant dense<0.000000e+00> : vector<64x8xf32>
    %410 = tpu.matmul %407, %409, %cst_186 {dimension_numbers = #tpu.dot_dimension_numbers<[1], [0], [0], [1], [0, 0, 1, 1], [], []>} : vector<64x4xbf16>, vector<4x8xbf16>, vector<64x8xf32> -> vector<64x8xf32>
    %411 = arith.addf %402, %410 : vector<64x8xf32>
    %c2_187 = arith.constant 2 : index
    %c7_188 = arith.constant 7 : index
    %c0_189 = arith.constant 0 : index
    %412 = tpu.strided_load %arg11[%c2_187, %c7_188, %c0_189] {strides = array<i32: 2, 2, 1>} : memref<17x25x4xf32, #tpu.memory_space<vmem>>, vector<8x8x4xf32>
    %413 = vector.shape_cast %412 : vector<8x8x4xf32> to vector<64x4xf32>
    %414 = arith.truncf %413 : vector<64x4xf32> to vector<64x4xbf16>
    %c6 = arith.constant 6 : index
    %c0_190 = arith.constant 0 : index
    %c0_191 = arith.constant 0 : index
    %415 = vector.load %arg5[%c6, %c0_190, %c0_191] : memref<9x4x8xbf16, #tpu.memory_space<vmem>>, vector<1x4x8xbf16>
    %416 = vector.shape_cast %415 : vector<1x4x8xbf16> to vector<4x8xbf16>
    %cst_192 = arith.constant dense<0.000000e+00> : vector<64x8xf32>
    %417 = tpu.matmul %414, %416, %cst_192 {dimension_numbers = #tpu.dot_dimension_numbers<[1], [0], [0], [1], [0, 0, 1, 1], [], []>} : vector<64x4xbf16>, vector<4x8xbf16>, vector<64x8xf32> -> vector<64x8xf32>
    %418 = arith.addf %411, %417 : vector<64x8xf32>
    %c2_193 = arith.constant 2 : index
    %c8_194 = arith.constant 8 : index
    %c0_195 = arith.constant 0 : index
    %419 = tpu.strided_load %arg11[%c2_193, %c8_194, %c0_195] {strides = array<i32: 2, 2, 1>} : memref<17x25x4xf32, #tpu.memory_space<vmem>>, vector<8x8x4xf32>
    %420 = vector.shape_cast %419 : vector<8x8x4xf32> to vector<64x4xf32>
    %421 = arith.truncf %420 : vector<64x4xf32> to vector<64x4xbf16>
    %c7_196 = arith.constant 7 : index
    %c0_197 = arith.constant 0 : index
    %c0_198 = arith.constant 0 : index
    %422 = vector.load %arg5[%c7_196, %c0_197, %c0_198] : memref<9x4x8xbf16, #tpu.memory_space<vmem>>, vector<1x4x8xbf16>
    %423 = vector.shape_cast %422 : vector<1x4x8xbf16> to vector<4x8xbf16>
    %cst_199 = arith.constant dense<0.000000e+00> : vector<64x8xf32>
    %424 = tpu.matmul %421, %423, %cst_199 {dimension_numbers = #tpu.dot_dimension_numbers<[1], [0], [0], [1], [0, 0, 1, 1], [], []>} : vector<64x4xbf16>, vector<4x8xbf16>, vector<64x8xf32> -> vector<64x8xf32>
    %425 = arith.addf %418, %424 : vector<64x8xf32>
    %c2_200 = arith.constant 2 : index
    %c9_201 = arith.constant 9 : index
    %c0_202 = arith.constant 0 : index
    %426 = tpu.strided_load %arg11[%c2_200, %c9_201, %c0_202] {strides = array<i32: 2, 2, 1>} : memref<17x25x4xf32, #tpu.memory_space<vmem>>, vector<8x8x4xf32>
    %427 = vector.shape_cast %426 : vector<8x8x4xf32> to vector<64x4xf32>
    %428 = arith.truncf %427 : vector<64x4xf32> to vector<64x4xbf16>
    %c8_203 = arith.constant 8 : index
    %c0_204 = arith.constant 0 : index
    %c0_205 = arith.constant 0 : index
    %429 = vector.load %arg5[%c8_203, %c0_204, %c0_205] : memref<9x4x8xbf16, #tpu.memory_space<vmem>>, vector<1x4x8xbf16>
    %430 = vector.shape_cast %429 : vector<1x4x8xbf16> to vector<4x8xbf16>
    %cst_206 = arith.constant dense<0.000000e+00> : vector<64x8xf32>
    %431 = tpu.matmul %428, %430, %cst_206 {dimension_numbers = #tpu.dot_dimension_numbers<[1], [0], [0], [1], [0, 0, 1, 1], [], []>} : vector<64x4xbf16>, vector<4x8xbf16>, vector<64x8xf32> -> vector<64x8xf32>
    %432 = arith.addf %425, %431 : vector<64x8xf32>
    %cst_207 = arith.constant dense<0.000000e+00> : vector<8xf32>
    %433 = vector.multi_reduction <add>, %432, %cst_207 [0] : vector<64x8xf32> to vector<8xf32>
    %434 = vector.shape_cast %433 : vector<8xf32> to vector<1x1x1x8xf32>
    %c0_208 = arith.constant 0 : index
    %c0_209 = arith.constant 0 : index
    %c0_210 = arith.constant 0 : index
    %c0_211 = arith.constant 0 : index
    %435 = vector.load %arg9[%c0_208, %c0_209, %c0_210, %c0_211] : memref<1x1x1x8xf32, #tpu.memory_space<vmem>>, vector<1x1x1x8xf32>
    tpu.vector_store %arg9[%c0_208, %c0_209, %c0_210, %c0_211], %434 {strides = array<i32>} : memref<1x1x1x8xf32, #tpu.memory_space<vmem>>, vector<1x1x1x8xf32>,
    %436 = arith.mulf %432, %432 : vector<64x8xf32>
    %cst_212 = arith.constant dense<0.000000e+00> : vector<8xf32>
    %437 = vector.multi_reduction <add>, %436, %cst_212 [0] : vector<64x8xf32> to vector<8xf32>
    %438 = vector.shape_cast %437 : vector<8xf32> to vector<1x1x1x8xf32>
    %c0_213 = arith.constant 0 : index
    %c0_214 = arith.constant 0 : index
    %c0_215 = arith.constant 0 : index
    %c0_216 = arith.constant 0 : index
    %439 = vector.load %arg10[%c0_213, %c0_214, %c0_215, %c0_216] : memref<1x1x1x8xf32, #tpu.memory_space<vmem>>, vector<1x1x1x8xf32>
    tpu.vector_store %arg10[%c0_213, %c0_214, %c0_215, %c0_216], %438 {strides = array<i32>} : memref<1x1x1x8xf32, #tpu.memory_space<vmem>>, vector<1x1x1x8xf32>,
    %440 = vector.shape_cast %432 : vector<64x8xf32> to vector<8x8x8xf32>
    %441 = arith.truncf %440 : vector<8x8x8xf32> to vector<8x8x8xbf16>
    %c0_217 = arith.constant 0 : index
    %c0_218 = arith.constant 0 : index
    %c0_219 = arith.constant 0 : index
    %c0_220 = arith.constant 0 : index
    %442 = vector.load %arg7[%c0_217, %c0_218, %c0_219, %c0_220] : memref<1x8x8x8xbf16, #tpu.memory_space<vmem>>, vector<1x8x8x8xbf16>
    %443 = vector.shape_cast %442 : vector<1x8x8x8xbf16> to vector<8x8x8xbf16>
    %444 = vector.shape_cast %441 : vector<8x8x8xbf16> to vector<1x8x8x8xbf16>
    tpu.vector_store %arg7[%c0_217, %c0_218, %c0_219, %c0_220], %444 {strides = array<i32>} : memref<1x8x8x8xbf16, #tpu.memory_space<vmem>>, vector<1x8x8x8xbf16>,
    %445 = vector.shape_cast %404 : vector<64x8xf32> to vector<8x8x8xf32>
    %446 = arith.truncf %445 : vector<8x8x8xf32> to vector<8x8x8xbf16>
    %c0_221 = arith.constant 0 : index
    %c0_222 = arith.constant 0 : index
    %c0_223 = arith.constant 0 : index
    %c0_224 = arith.constant 0 : index
    %447 = vector.load %arg8[%c0_221, %c0_222, %c0_223, %c0_224] : memref<1x8x8x8xbf16, #tpu.memory_space<vmem>>, vector<1x8x8x8xbf16>
    %448 = vector.shape_cast %447 : vector<1x8x8x8xbf16> to vector<8x8x8xbf16>
    %449 = vector.shape_cast %446 : vector<8x8x8xbf16> to vector<1x8x8x8xbf16>
    tpu.vector_store %arg8[%c0_221, %c0_222, %c0_223, %c0_224], %449 {strides = array<i32>} : memref<1x8x8x8xbf16, #tpu.memory_space<vmem>>, vector<1x8x8x8xbf16>,
    return
  }
  func.func @transform_0(%arg0: i32, %arg1: i32) -> (i32, i32, i32, i32) {
    %c0_i32 = arith.constant 0 : i32
    %c0_i32_0 = arith.constant 0 : i32
    %c0_i32_1 = arith.constant 0 : i32
    %c0_i32_2 = arith.constant 0 : i32
    return %arg0, %c0_i32, %c0_i32_0, %c0_i32_1 : i32, i32, i32, i32
  }
  func.func @transform_1(%arg0: i32, %arg1: i32) -> (i32, i32) {
    %c0_i32 = arith.constant 0 : i32
    %c0_i32_0 = arith.constant 0 : i32
    %c0_i32_1 = arith.constant 0 : i32
    return %c0_i32, %c0_i32_0 : i32, i32
  }
  func.func @transform_2(%arg0: i32, %arg1: i32) -> (i32, i32) {
    %c0_i32 = arith.constant 0 : i32
    %c0_i32_0 = arith.constant 0 : i32
    %c0_i32_1 = arith.constant 0 : i32
    return %c0_i32, %c0_i32_0 : i32, i32
  }
  func.func @transform_3(%arg0: i32, %arg1: i32) -> (i32, i32, i32) {
    %c0_i32 = arith.constant 0 : i32
    %c0_i32_0 = arith.constant 0 : i32
    %c0_i32_1 = arith.constant 0 : i32
    %c0_i32_2 = arith.constant 0 : i32
    return %c0_i32, %c0_i32_0, %c0_i32_1 : i32, i32, i32
  }
  func.func @transform_4(%arg0: i32, %arg1: i32) -> (i32, i32) {
    %c0_i32 = arith.constant 0 : i32
    %c0_i32_0 = arith.constant 0 : i32
    %c0_i32_1 = arith.constant 0 : i32
    return %c0_i32, %c0_i32_0 : i32, i32
  }
  func.func @transform_5(%arg0: i32, %arg1: i32) -> (i32, i32, i32, i32) {
    %c0_i32 = arith.constant 0 : i32
    %c0_i32_0 = arith.constant 0 : i32
    %c0_i32_1 = arith.constant 0 : i32
    return %arg0, %arg1, %c0_i32, %c0_i32_0 : i32, i32, i32, i32
  }
  func.func @transform_6(%arg0: i32, %arg1: i32) -> (i32, i32, i32, i32) {
    %c0_i32 = arith.constant 0 : i32
    %c0_i32_0 = arith.constant 0 : i32
    %c0_i32_1 = arith.constant 0 : i32
    return %arg0, %arg1, %c0_i32, %c0_i32_0 : i32, i32, i32, i32
  }
  func.func @transform_7(%arg0: i32, %arg1: i32) -> (i32, i32, i32, i32) {
    %c0_i32 = arith.constant 0 : i32
    %c0_i32_0 = arith.constant 0 : i32
    %c0_i32_1 = arith.constant 0 : i32
    return %arg0, %arg1, %c0_i32, %c0_i32_0 : i32, i32, i32, i32
  }
  func.func @transform_8(%arg0: i32, %arg1: i32) -> (i32, i32, i32, i32) {
    %c0_i32 = arith.constant 0 : i32
    %c0_i32_0 = arith.constant 0 : i32
    %c0_i32_1 = arith.constant 0 : i32
    return %arg0, %arg1, %c0_i32, %c0_i32_0 : i32, i32, i32, i32
  }
}

</mosaic_0001>

<llo_original>
// kernel: residual_block_forward.3
$region0: #{residual_block_forward.3}
  #allocation0 [shape = 'u32[]', space=smem, size = 0x4, offset = 0x4, fixed_abs, tag = 'smem constant byte address 0x4 - core index']
  #allocation1 [shape = 'u32[72,128]{1,0:T(1,128)}', space=vmem, size = 0x9000, scoped, tag = 'internal scratch']
  #allocation2 [shape = 'f32[10,17,8]{2,1,0:T(8,128)}', space=vmem, size = 0x1e000, scoped, tag = 'scratch operand']
  %s0 = inlined_call_operand.vmem [shape: bf16[2,8,8,8], index: 0, kind: input, shape index: {}]
  %s1 = inlined_call_operand.vmem [shape: f32[1,8], index: 1, kind: input, shape index: {}]
  %s2 = inlined_call_operand.vmem [shape: f32[1,8], index: 2, kind: input, shape index: {}]
  %s3 = inlined_call_operand.vmem [shape: bf16[9,8,8], index: 3, kind: input, shape index: {}]
  %s4 = inlined_call_operand.vmem [shape: bf16[2,8,8,8], index: 4, kind: input, shape index: {}]
  %s5 = inlined_call_operand.vmem [shape: f32[2,8,8,8], index: 5, kind: output, shape index: {}]
  %s6 = sld [smem:[#allocation0]]
  $region53: #{residual_block_forward.3} parent=0
    _
  %s8 = ssub.s32 1, %s6
  %s9 = scalar_select 0, %s8, %s6
  loop: start=0, step=1, limit=4
  $region2: #{residual_block_forward.3} parent=0 // loop_pre_header
    _
  $region3: #{residual_block_forward.3} parent=0 // loop_header
    %s11 = sphi 0, %s15
    %p12 = scmp.ge.s32.totalorder %s11, 4
    %s18 = sphi 0, %s30
    %s19 = sphi 0, %s26
    %s20 = sphi 0, %s18
    %s21 = sphi 0, %s19
    %s22 = sphi 0, %s20
    %s23 = sphi 0, %s21
    %s33 = sphi 0, %s35
    %s36 = sphi 0, %s33
    %s37 = sphi 0, %s36
    %s53 = sphi 0, %s37
    %s57 = sphi 0, %s57
    %s59 = sphi 0, %s57
    %s60 = sphi 0, %s59
    %s74 = sphi 0, %s60
    %s78 = sphi 0, %s78
    %s80 = sphi 0, %s78
    %s81 = sphi 0, %s80
    %s95 = sphi 0, %s81
    %s99 = sphi 0, %s99
    %s101 = sphi 0, %s99
    %s102 = sphi 0, %s101
    %s116 = sphi 0, %s102
    %s124 = sphi 0, %s126
    %s127 = sphi 0, %s124
    %s128 = sphi 0, %s127
    %s144 = sphi 0, %s128
    %s152 = sphi 0, %s154
    %s155 = sphi 0, %s152
    %s156 = sphi 0, %s155
    %s172 = sphi 0, %s156
  $region4: #{residual_block_forward.3} parent=0 // loop_header_branch
    %14 = sbr.rel (%p12) target = $region8
  $region5: #{residual_block_forward.3} parent=0 // loop_body
    %s16 = ssub.s32 %s11, 1
    %s17 = ssub.s32 %s11, 2
    %s24 = sadd.s32 1, %s19
    %p25 = scmp.ge.s32.totalorder %s24, 1
    %s26 = scalar_select %p25, 0, %s24
    %s27 = sadd.s32 1, %s18
    %s28 = scalar_select %p25, %s27, %s18
    %p29 = scmp.ge.s32.totalorder %s28, 2
    %s30 = scalar_select %p29, 0, %s28
    %s31 = ssub.s32 %s18, %s30
    %p32 = scmp.eq.s32.totalorder %s31, 0
    %s34 = sadd.s32 %s33, 1
    %s35 = scalar_select %p32, %s33, %s34
    %p38 = pneg %p32
    %p39 = scmp.eq.s32.totalorder %s11, 1
    %p40 = por %p38, %p39
    %p41 = scmp.ne.s32.totalorder %s33, %s36
    %p42 = scmp.eq.s32.totalorder %s11, 0
    %p43 = por %p41, %p42
    %p44 = scmp.ne.s32.totalorder %s33, %s36
    %p45 = scmp.eq.s32.totalorder %s16, 1
    %p46 = por %p44, %p45
    %p47 = scmp.ne.s32.totalorder %s36, %s37
    %p48 = scmp.eq.s32.totalorder %s16, 0
    %p49 = por %p47, %p48
    %p50 = scmp.ne.s32.totalorder %s36, %s37
    %p51 = scmp.eq.s32.totalorder %s17, 1
    %p52 = por %p50, %p51
    %p54 = scmp.ne.s32.totalorder %s37, %s53
    %p55 = scmp.eq.s32.totalorder %s17, 0
    %p56 = por %p54, %p55
    %s58 = sadd.s32 %s57, 1
    %p61 = scmp.eq.s32.totalorder %s11, 1
    %p62 = scmp.ne.s32.totalorder %s57, %s59
    %p63 = scmp.eq.s32.totalorder %s11, 0
    %p64 = por %p62, %p63
    %p65 = scmp.ne.s32.totalorder %s57, %s59
    %p66 = scmp.eq.s32.totalorder %s16, 1
    %p67 = por %p65, %p66
    %p68 = scmp.ne.s32.totalorder %s59, %s60
    %p69 = scmp.eq.s32.totalorder %s16, 0
    %p70 = por %p68, %p69
    %p71 = scmp.ne.s32.totalorder %s59, %s60
    %p72 = scmp.eq.s32.totalorder %s17, 1
    %p73 = por %p71, %p72
    %p75 = scmp.ne.s32.totalorder %s60, %s74
    %p76 = scmp.eq.s32.totalorder %s17, 0
    %p77 = por %p75, %p76
    %s79 = sadd.s32 %s78, 1
    %p82 = scmp.eq.s32.totalorder %s11, 1
    %p83 = scmp.ne.s32.totalorder %s78, %s80
    %p84 = scmp.eq.s32.totalorder %s11, 0
    %p85 = por %p83, %p84
    %p86 = scmp.ne.s32.totalorder %s78, %s80
    %p87 = scmp.eq.s32.totalorder %s16, 1
    %p88 = por %p86, %p87
    %p89 = scmp.ne.s32.totalorder %s80, %s81
    %p90 = scmp.eq.s32.totalorder %s16, 0
    %p91 = por %p89, %p90
    %p92 = scmp.ne.s32.totalorder %s80, %s81
    %p93 = scmp.eq.s32.totalorder %s17, 1
    %p94 = por %p92, %p93
    %p96 = scmp.ne.s32.totalorder %s81, %s95
    %p97 = scmp.eq.s32.totalorder %s17, 0
    %p98 = por %p96, %p97
    %s100 = sadd.s32 %s99, 1
    %p103 = scmp.eq.s32.totalorder %s11, 1
    %p104 = scmp.ne.s32.totalorder %s99, %s101
    %p105 = scmp.eq.s32.totalorder %s11, 0
    %p106 = por %p104, %p105
    %p107 = scmp.ne.s32.totalorder %s99, %s101
    %p108 = scmp.eq.s32.totalorder %s16, 1
    %p109 = por %p107, %p108
    %p110 = scmp.ne.s32.totalorder %s101, %s102
    %p111 = scmp.eq.s32.totalorder %s16, 0
    %p112 = por %p110, %p111
    %p113 = scmp.ne.s32.totalorder %s101, %s102
    %p114 = scmp.eq.s32.totalorder %s17, 1
    %p115 = por %p113, %p114
    %p117 = scmp.ne.s32.totalorder %s102, %s116
    %p118 = scmp.eq.s32.totalorder %s17, 0
    %p119 = por %p117, %p118
    %s120 = ssub.s32 %s18, %s30
    %s121 = ssub.s32 %s19, %s26
    %s122 = sor.u32 %s120, %s121
    %p123 = scmp.eq.s32.totalorder %s122, 0
    %s125 = sadd.s32 %s124, 1
    %s126 = scalar_select %p123, %s124, %s125
    %p129 = pneg %p123
    %p130 = scmp.eq.s32.totalorder %s11, 1
    %p131 = por %p129, %p130
    %p132 = scmp.ne.s32.totalorder %s124, %s127
    %p133 = scmp.eq.s32.totalorder %s11, 0
    %p134 = por %p132, %p133
    %p135 = scmp.ne.s32.totalorder %s124, %s127
    %p136 = scmp.eq.s32.totalorder %s16, 1
    %p137 = por %p135, %p136
    %p138 = scmp.ne.s32.totalorder %s127, %s128
    %p139 = scmp.eq.s32.totalorder %s16, 0
    %p140 = por %p138, %p139
    %p141 = scmp.ne.s32.totalorder %s127, %s128
    %p142 = scmp.eq.s32.totalorder %s17, 1
    %p143 = por %p141, %p142
    %p145 = scmp.ne.s32.totalorder %s128, %s144
    %p146 = scmp.eq.s32.totalorder %s17, 0
    %p147 = por %p145, %p146
    %s148 = ssub.s32 %s18, %s30
    %s149 = ssub.s32 %s19, %s26
    %s150 = sor.u32 %s148, %s149
    %p151 = scmp.eq.s32.totalorder %s150, 0
    %s153 = sadd.s32 %s152, 1
    %s154 = scalar_select %p151, %s152, %s153
    %p157 = pneg %p151
    %p158 = scmp.eq.s32.totalorder %s11, 1
    %p159 = por %p157, %p158
    %p160 = scmp.ne.s32.totalorder %s152, %s155
    %p161 = scmp.eq.s32.totalorder %s11, 0
    %p162 = por %p160, %p161
    %p163 = scmp.ne.s32.totalorder %s152, %s155
    %p164 = scmp.eq.s32.totalorder %s16, 1
    %p165 = por %p163, %p164
    %p166 = scmp.ne.s32.totalorder %s155, %s156
    %p167 = scmp.eq.s32.totalorder %s16, 0
    %p168 = por %p166, %p167
    %p169 = scmp.ne.s32.totalorder %s155, %s156
    %p170 = scmp.eq.s32.totalorder %s17, 1
    %p171 = por %p169, %p170
    %p173 = scmp.ne.s32.totalorder %s156, %s172
    %p174 = scmp.eq.s32.totalorder %s17, 0
    %p175 = por %p173, %p174
    %p176 = scmp.le.s32.totalorder 1, %s11
    %p177 = scmp.lt.s32.totalorder %s11, 3
    %p178 = pnand %p176, %p177
    %p179 = pneg %p178
    // Predicated region
    $region9: #{residual_block_forward.3} parent=5 // pred_check
      _
    $region10: #{residual_block_forward.3} parent=5 // pred_check_branch
      %181 = sbr.rel (%p178) target = $region12
    $region11: #{residual_block_forward.3} parent=5 // pred_region
      %s182 = ssub.s32 %s11, 1
      // Predicated region
      $region13: #{residual_block_forward.3} parent=11 // pred_check
        %p183 = pneg %p70
      $region14: #{residual_block_forward.3} parent=11 // pred_check_branch
        %185 = sbr.rel (%p183) target = $region16
      $region15: #{residual_block_forward.3} parent=11 // pred_region
        _
      $region16: #{residual_block_forward.3} parent=11 // pred_fallthru
        _
      // Predicated region
      $region17: #{residual_block_forward.3} parent=11 // pred_check
        %p186 = pneg %p91
      $region18: #{residual_block_forward.3} parent=11 // pred_check_branch
        %188 = sbr.rel (%p186) target = $region20
      $region19: #{residual_block_forward.3} parent=11 // pred_region
        _
      $region20: #{residual_block_forward.3} parent=11 // pred_fallthru
        _
      // Predicated region
      $region21: #{residual_block_forward.3} parent=11 // pred_check
        %p189 = pneg %p112
      $region22: #{residual_block_forward.3} parent=11 // pred_check_branch
        %191 = sbr.rel (%p189) target = $region24
      $region23: #{residual_block_forward.3} parent=11 // pred_region
        _
      $region24: #{residual_block_forward.3} parent=11 // pred_fallthru
        _
    $region12: #{residual_block_forward.3} parent=5 // pred_fallthru
      _
    %p192 = scmp.lt.s32.totalorder %s11, 2
    // Predicated region
    $region25: #{residual_block_forward.3} parent=5 // pred_check
      %p193 = pneg %p192
    $region26: #{residual_block_forward.3} parent=5 // pred_check_branch
      %195 = sbr.rel (%p193) target = $region28
    $region27: #{residual_block_forward.3} parent=5 // pred_region
      // Predicated region
      $region29: #{residual_block_forward.3} parent=27 // pred_check
        %p196 = pneg %p43
      $region30: #{residual_block_forward.3} parent=27 // pred_check_branch
        %198 = sbr.rel (%p196) target = $region32
      $region31: #{residual_block_forward.3} parent=27 // pred_region
        %p199 = scmp.lt.s32.totalorder %s18, 1
        %s200 = scalar_select %p199, %s18, 1
        %s201 = smul.addr %s200, 8
        %s202 = smul.addr %s201, 4
        %s203 = scalar_lea.vmem %s0, %s202
      $region32: #{residual_block_forward.3} parent=27 // pred_fallthru
        _
      // Predicated region
      $region33: #{residual_block_forward.3} parent=27 // pred_check
        %p204 = pneg %p134
      $region34: #{residual_block_forward.3} parent=27 // pred_check_branch
        %206 = sbr.rel (%p204) target = $region36
      $region35: #{residual_block_forward.3} parent=27 // pred_region
        %s207 = smul.u32 8, %s19
        %p208 = scmp.lt.s32.totalorder %s18, 1
        %s209 = scalar_select %p208, %s18, 1
        %p210 = scmp.lt.s32.totalorder %s207, 7
        %s211 = scalar_select %p210, %s207, 7
        %s212 = smul.addr %s209, 8
        %s213 = sadd.s32 %s211, %s212
        %s214 = smul.addr %s213, 4
        %s215 = scalar_lea.vmem %s4, %s214
        %s216 = smul.u32 8, %s19
      $region36: #{residual_block_forward.3} parent=27 // pred_fallthru
        _
    $region28: #{residual_block_forward.3} parent=5 // pred_fallthru
      _
    %p217 = scmp.le.s32.totalorder 1, %s11
    %p218 = scmp.lt.s32.totalorder %s11, 3
    %p219 = pnand %p217, %p218
    %p220 = pneg %p219
    // Predicated region
    $region37: #{residual_block_forward.3} parent=5 // pred_check
      _
    $region38: #{residual_block_forward.3} parent=5 // pred_check_branch
      %222 = sbr.rel (%p219) target = $region40
    $region39: #{residual_block_forward.3} parent=5 // pred_region
      %s223 = ssub.s32 %s11, 1
      %p224 = scmp.lt.s32.totalorder %s20, 1
      %s225 = scalar_select %p224, %s20, 1
      %s226 = smul.addr %s225, 8
      %s227 = smul.addr %s226, 4
      %s228 = scalar_lea.vmem %s0, %s227
      %p229 = pneg %p49
      %p230 = pneg %p46
      %p231 = pneg %p70
      %p232 = pneg %p67
      %p233 = pneg %p91
      %p234 = pneg %p88
      %p235 = pneg %p112
      %p236 = pneg %p109
      %s237 = smul.u32 8, %s21
      %p238 = scmp.lt.s32.totalorder %s20, 1
      %s239 = scalar_select %p238, %s20, 1
      %p240 = scmp.lt.s32.totalorder %s237, 7
      %s241 = scalar_select %p240, %s237, 7
      %s242 = smul.addr %s239, 8
      %s243 = sadd.s32 %s241, %s242
      %s244 = smul.addr %s243, 4
      %s245 = scalar_lea.vmem %s4, %s244
      %p246 = pneg %p140
      %p247 = pneg %p137
      %p248 = pneg %p168
      %p249 = pneg %p165
      %s250 = smul.u32 8, %s21
      %p251 = scmp.lt.s32.totalorder %s20, 1
      %s252 = scalar_select %p251, %s20, 1
      %p253 = scmp.lt.s32.totalorder %s250, 7
      %s254 = scalar_select %p253, %s250, 7
      %s255 = smul.addr %s252, 8
      %s256 = sadd.s32 %s254, %s255
      %s257 = smul.addr %s256, 8
      %s258 = scalar_lea.vmem %s5, %s257
      %p259 = scmp.lt.s32.totalorder %s20, 1
      %s260 = scalar_select %p259, %s20, 1
      %s261 = smul.addr %s260, 8
      %s262 = smul.addr %s261, 4
      %s263 = scalar_lea.vmem %s0, %s262
      %s264 = smul.u32 8, %s21
      %p265 = scmp.lt.s32.totalorder %s20, 1
      %s266 = scalar_select %p265, %s20, 1
      %p267 = scmp.lt.s32.totalorder %s264, 7
      %s268 = scalar_select %p267, %s264, 7
      %s269 = smul.addr %s266, 8
      %s270 = sadd.s32 %s268, %s269
      %s271 = smul.addr %s270, 4
      %s272 = scalar_lea.vmem %s4, %s271
      %s273 = smul.u32 8, %s21
      %s274 = smul.u32 8, %s21
      %p275 = scmp.lt.s32.totalorder %s20, 1
      %s276 = scalar_select %p275, %s20, 1
      %p277 = scmp.lt.s32.totalorder %s274, 7
      %s278 = scalar_select %p277, %s274, 7
      %s279 = smul.addr %s276, 8
      %s280 = sadd.s32 %s278, %s279
      %s281 = smul.addr %s280, 8
      %s282 = scalar_lea.vmem %s5, %s281
      %s283 = smul.u32 8, %s21
      %s285 = smul.u32 %s21, 8
      %s286 = ssub.s32 %s285, 1
      %v287 = vld [vmem:[%s1] sm:$0x1]
      %v288 = vld [vmem:[%s2] sm:$0x1]
      %p289 = scmp.gt.s32.totalorder %s286, 0
      %s290 = scalar_select %p289, %s286, 0
      %p291 = scmp.lt.s32.totalorder %s290, 7
      %s292 = scalar_select %p291, %s290, 7
      %p293 = scmp.ge.s32.totalorder %s286, 0
      %p294 = scmp.lt.s32.totalorder %s286, 8
      %p295 = pnand %p293, %p294
      %p296 = pneg %p295
      %s297 = scalar_select %p296, 1, 0
      %s298 = scvt.s32.f32 %s297
      %s299 = smul.addr %s292, 4
      %s300 = scalar_lea.vmem %s263, %s299
      %v301 = vld [vmem:[%s300] sm:$0xf]
      %v302 = vunpack.c.l.bf16 %v301
      %v304 = vperm.slane %v287, 0
      %v306 = vmul.f32 %v302, %v304
      %v308 = vperm.slane %v288, 0
      %v310 = vadd.f32 %v306, %v308
      %v311 = vmax.f32 %v310, 0.0
      %v312 = vstv %s298
      %v313 = vmul.f32 %v311, %v312
      %p314 = scmp.gt.s32.totalorder %s285, 0
      %s315 = scalar_select %p314, %s285, 0
      %p316 = scmp.lt.s32.totalorder %s315, 7
      %s317 = scalar_select %p316, %s315, 7
      %p318 = scmp.ge.s32.totalorder %s285, 0
      %p319 = scmp.lt.s32.totalorder %s285, 8
      %p320 = pnand %p318, %p319
      %p321 = pneg %p320
      %s322 = scalar_select %p321, 1, 0
      %s323 = scvt.s32.f32 %s322
      %s324 = smul.addr %s317, 4
      %s325 = scalar_lea.vmem %s263, %s324
      %v326 = vld [vmem:[%s325] sm:$0xf]
      %v327 = vunpack.c.l.bf16 %v326
      %v328 = vmul.f32 %v327, %v304
      %v329 = vadd.f32 %v328, %v308
      %v330 = vmax.f32 %v329, 0.0
      %v331 = vstv %s323
      %v332 = vmul.f32 %v330, %v331
      %s333 = sadd.s32 %s285, 1
      %p334 = scmp.gt.s32.totalorder %s333, 0
      %s335 = scalar_select %p334, %s333, 0
      %p336 = scmp.lt.s32.totalorder %s335, 7
      %s337 = scalar_select %p336, %s335, 7
      %p338 = scmp.ge.s32.totalorder %s333, 0
      %p339 = scmp.lt.s32.totalorder %s333, 8
      %p340 = pnand %p338, %p339
      %p341 = pneg %p340
      %s342 = scalar_select %p341, 1, 0
      %s343 = scvt.s32.f32 %s342
      %s344 = smul.addr %s337, 4
      %s345 = scalar_lea.vmem %s263, %s344
      %v346 = vld [vmem:[%s345] sm:$0xf]
      %v347 = vunpack.c.l.bf16 %v346
      %v348 = vmul.f32 %v347, %v304
      %v349 = vadd.f32 %v348, %v308
      %v350 = vmax.f32 %v349, 0.0
      %v351 = vstv %s343
      %v352 = vmul.f32 %v350, %v351
      %s353 = sadd.s32 %s285, 2
      %p354 = scmp.gt.s32.totalorder %s353, 0
      %s355 = scalar_select %p354, %s353, 0
      %p356 = scmp.lt.s32.totalorder %s355, 7
      %s357 = scalar_select %p356, %s355, 7
      %p358 = scmp.ge.s32.totalorder %s353, 0
      %p359 = scmp.lt.s32.totalorder %s353, 8
      %p360 = pnand %p358, %p359
      %p361 = pneg %p360
      %s362 = scalar_select %p361, 1, 0
      %s363 = scvt.s32.f32 %s362
      %s364 = smul.addr %s357, 4
      %s365 = scalar_lea.vmem %s263, %s364
      %v366 = vld [vmem:[%s365] sm:$0xf]
      %v367 = vunpack.c.l.bf16 %v366
      %v368 = vmul.f32 %v367, %v304
      %v369 = vadd.f32 %v368, %v308
      %v370 = vmax.f32 %v369, 0.0
      %v371 = vstv %s363
      %v372 = vmul.f32 %v370, %v371
      %s373 = sadd.s32 %s285, 3
      %p374 = scmp.gt.s32.totalorder %s373, 0
      %s375 = scalar_select %p374, %s373, 0
      %p376 = scmp.lt.s32.totalorder %s375, 7
      %s377 = scalar_select %p376, %s375, 7
      %p378 = scmp.ge.s32.totalorder %s373, 0
      %p379 = scmp.lt.s32.totalorder %s373, 8
      %p380 = pnand %p378, %p379
      %p381 = pneg %p380
      %s382 = scalar_select %p381, 1, 0
      %s383 = scvt.s32.f32 %s382
      %s384 = smul.addr %s377, 4
      %s385 = scalar_lea.vmem %s263, %s384
      %v386 = vld [vmem:[%s385] sm:$0xf]
      %v387 = vunpack.c.l.bf16 %v386
      %v388 = vmul.f32 %v387, %v304
      %v389 = vadd.f32 %v388, %v308
      %v390 = vmax.f32 %v389, 0.0
      %v391 = vstv %s383
      %v392 = vmul.f32 %v390, %v391
      %s393 = sadd.s32 %s285, 4
      %p394 = scmp.gt.s32.totalorder %s393, 0
      %s395 = scalar_select %p394, %s393, 0
      %p396 = scmp.lt.s32.totalorder %s395, 7
      %s397 = scalar_select %p396, %s395, 7
      %p398 = scmp.ge.s32.totalorder %s393, 0
      %p399 = scmp.lt.s32.totalorder %s393, 8
      %p400 = pnand %p398, %p399
      %p401 = pneg %p400
      %s402 = scalar_select %p401, 1, 0
      %s403 = scvt.s32.f32 %s402
      %s404 = smul.addr %s397, 4
      %s405 = scalar_lea.vmem %s263, %s404
      %v406 = vld [vmem:[%s405] sm:$0xf]
      %v407 = vunpack.c.l.bf16 %v406
      %v408 = vmul.f32 %v407, %v304
      %v409 = vadd.f32 %v408, %v308
      %v410 = vmax.f32 %v409, 0.0
      %v411 = vstv %s403
      %v412 = vmul.f32 %v410, %v411
      %s413 = sadd.s32 %s285, 5
      %p414 = scmp.gt.s32.totalorder %s413, 0
      %s415 = scalar_select %p414, %s413, 0
      %p416 = scmp.lt.s32.totalorder %s415, 7
      %s417 = scalar_select %p416, %s415, 7
      %p418 = scmp.ge.s32.totalorder %s413, 0
      %p419 = scmp.lt.s32.totalorder %s413, 8
      %p420 = pnand %p418, %p419
      %p421 = pneg %p420
      %s422 = scalar_select %p421, 1, 0
      %s423 = scvt.s32.f32 %s422
      %s424 = smul.addr %s417, 4
      %s425 = scalar_lea.vmem %s263, %s424
      %v426 = vld [vmem:[%s425] sm:$0xf]
      %v427 = vunpack.c.l.bf16 %v426
      %v428 = vmul.f32 %v427, %v304
      %v429 = vadd.f32 %v428, %v308
      %v430 = vmax.f32 %v429, 0.0
      %v431 = vstv %s423
      %v432 = vmul.f32 %v430, %v431
      %s433 = sadd.s32 %s285, 6
      %p434 = scmp.gt.s32.totalorder %s433, 0
      %s435 = scalar_select %p434, %s433, 0
      %p436 = scmp.lt.s32.totalorder %s435, 7
      %s437 = scalar_select %p436, %s435, 7
      %p438 = scmp.ge.s32.totalorder %s433, 0
      %p439 = scmp.lt.s32.totalorder %s433, 8
      %p440 = pnand %p438, %p439
      %p441 = pneg %p440
      %s442 = scalar_select %p441, 1, 0
      %s443 = scvt.s32.f32 %s442
      %s444 = smul.addr %s437, 4
      %s445 = scalar_lea.vmem %s263, %s444
      %v446 = vld [vmem:[%s445] sm:$0xf]
      %v447 = vunpack.c.l.bf16 %v446
      %v448 = vmul.f32 %v447, %v304
      %v449 = vadd.f32 %v448, %v308
      %v450 = vmax.f32 %v449, 0.0
      %v451 = vstv %s443
      %v452 = vmul.f32 %v450, %v451
      %s453 = sadd.s32 %s285, 7
      %p454 = scmp.gt.s32.totalorder %s453, 0
      %s455 = scalar_select %p454, %s453, 0
      %p456 = scmp.lt.s32.totalorder %s455, 7
      %s457 = scalar_select %p456, %s455, 7
      %p458 = scmp.ge.s32.totalorder %s453, 0
      %p459 = scmp.lt.s32.totalorder %s453, 8
      %p460 = pnand %p458, %p459
      %p461 = pneg %p460
      %s462 = scalar_select %p461, 1, 0
      %s463 = scvt.s32.f32 %s462
      %s464 = smul.addr %s457, 4
      %s465 = scalar_lea.vmem %s263, %s464
      %v466 = vld [vmem:[%s465] sm:$0xf]
      %v467 = vunpack.c.l.bf16 %v466
      %v468 = vmul.f32 %v467, %v304
      %v469 = vadd.f32 %v468, %v308
      %v470 = vmax.f32 %v469, 0.0
      %v471 = vstv %s463
      %v472 = vmul.f32 %v470, %v471
      %s473 = sadd.s32 %s285, 8
      %p474 = scmp.gt.s32.totalorder %s473, 0
      %s475 = scalar_select %p474, %s473, 0
      %p476 = scmp.lt.s32.totalorder %s475, 7
      %s477 = scalar_select %p476, %s475, 7
      %p478 = scmp.ge.s32.totalorder %s473, 0
      %p479 = scmp.lt.s32.totalorder %s473, 8
      %p480 = pnand %p478, %p479
      %p481 = pneg %p480
      %s482 = scalar_select %p481, 1, 0
      %s483 = scvt.s32.f32 %s482
      %s484 = smul.addr %s477, 4
      %s485 = scalar_lea.vmem %s263, %s484
      %v486 = vld [vmem:[%s485] sm:$0xf]
      %v487 = vunpack.c.l.bf16 %v486
      %v488 = vmul.f32 %v487, %v304
      %v489 = vadd.f32 %v488, %v308
      %v490 = vmax.f32 %v489, 0.0
      %v491 = vstv %s483
      %v492 = vmul.f32 %v490, %v491
      %vm493 = vcmask 57344
      %494 = vst.msk [vmem:[#allocation2 + $0x7] sm:$0x1] %vm493, 0.0
      %495 = vst.msk [vmem:[#allocation2 + $0x1f] sm:$0x1] %vm493, 0.0
      %496 = vst.msk [vmem:[#allocation2 + $0x37] sm:$0x1] %vm493, 0.0
      %497 = vst.msk [vmem:[#allocation2 + $0x4f] sm:$0x1] %vm493, 0.0
      %498 = vst.msk [vmem:[#allocation2 + $0x67] sm:$0x1] %vm493, 0.0
      %499 = vst.msk [vmem:[#allocation2 + $0x7f] sm:$0x1] %vm493, 0.0
      %500 = vst.msk [vmem:[#allocation2 + $0x97] sm:$0x1] %vm493, 0.0
      %501 = vst.msk [vmem:[#allocation2 + $0xaf] sm:$0x1] %vm493, 0.0
      %502 = vst.msk [vmem:[#allocation2 + $0xc7] sm:$0x1] %vm493, 0.0
      %503 = vst.msk [vmem:[#allocation2 + $0xdf] sm:$0x1] %vm493, 0.0
      %504 = vst.msk [vmem:[#allocation2 + $0x10] sm:$0x1] %vm493, 0.0
      %505 = vst.msk [vmem:[#allocation2 + $0x28] sm:$0x1] %vm493, 0.0
      %506 = vst.msk [vmem:[#allocation2 + $0x40] sm:$0x1] %vm493, 0.0
      %507 = vst.msk [vmem:[#allocation2 + $0x58] sm:$0x1] %vm493, 0.0
      %508 = vst.msk [vmem:[#allocation2 + $0x70] sm:$0x1] %vm493, 0.0
      %509 = vst.msk [vmem:[#allocation2 + $0x88] sm:$0x1] %vm493, 0.0
      %510 = vst.msk [vmem:[#allocation2 + $0xa0] sm:$0x1] %vm493, 0.0
      %511 = vst.msk [vmem:[#allocation2 + $0xb8] sm:$0x1] %vm493, 0.0
      %512 = vst.msk [vmem:[#allocation2 + $0xd0] sm:$0x1] %vm493, 0.0
      %513 = vst.msk [vmem:[#allocation2 + $0xe8] sm:$0x1] %vm493, 0.0
      %vm514 = vcmask 64512
      %515 = vst.msk [vmem:[#allocation2 + $0x8] sm:$0xff] %vm514, %v313
      %516 = vst.msk [vmem:[#allocation2 + $0x20] sm:$0xff] %vm514, %v332
      %517 = vst.msk [vmem:[#allocation2 + $0x38] sm:$0xff] %vm514, %v352
      %518 = vst.msk [vmem:[#allocation2 + $0x50] sm:$0xff] %vm514, %v372
      %519 = vst.msk [vmem:[#allocation2 + $0x68] sm:$0xff] %vm514, %v392
      %520 = vst.msk [vmem:[#allocation2 + $0x80] sm:$0xff] %vm514, %v412
      %521 = vst.msk [vmem:[#allocation2 + $0x98] sm:$0xff] %vm514, %v432
      %522 = vst.msk [vmem:[#allocation2 + $0xb0] sm:$0xff] %vm514, %v452
      %523 = vst.msk [vmem:[#allocation2 + $0xc8] sm:$0xff] %vm514, %v472
      %524 = vst.msk [vmem:[#allocation2 + $0xe0] sm:$0xff] %vm514, %v492
      %v525 = vld [vmem:[#allocation2 + $0x7] sm:$0xff]
      %v526 = vld [vmem:[#allocation2 + $0x1f] sm:$0xff]
      %v527 = vld [vmem:[#allocation2 + $0x37] sm:$0xff]
      %v528 = vld [vmem:[#allocation2 + $0x4f] sm:$0xff]
      %v529 = vld [vmem:[#allocation2 + $0x67] sm:$0xff]
      %v530 = vld [vmem:[#allocation2 + $0x7f] sm:$0xff]
      %v531 = vld [vmem:[#allocation2 + $0x97] sm:$0xff]
      %v532 = vld [vmem:[#allocation2 + $0xaf] sm:$0xff]
      %v533 = vpack.c.bf16 %v526, %v525
      %v534 = vpack.c.bf16 %v528, %v527
      %v535 = vpack.c.bf16 %v530, %v529
      %v536 = vpack.c.bf16 %v532, %v531
      %v537 = vld [vmem:[%s3] sm:$0xf]
      %v538 = vld [vmem:[#allocation2 + $0x8] sm:$0xff]
      %v539 = vld [vmem:[#allocation2 + $0x20] sm:$0xff]
      %v540 = vld [vmem:[#allocation2 + $0x38] sm:$0xff]
      %v541 = vld [vmem:[#allocation2 + $0x50] sm:$0xff]
      %v542 = vld [vmem:[#allocation2 + $0x68] sm:$0xff]
      %v543 = vld [vmem:[#allocation2 + $0x80] sm:$0xff]
      %v544 = vld [vmem:[#allocation2 + $0x98] sm:$0xff]
      %v545 = vld [vmem:[#allocation2 + $0xb0] sm:$0xff]
      %v546 = vpack.c.bf16 %v539, %v538
      %v547 = vpack.c.bf16 %v541, %v540
      %v548 = vpack.c.bf16 %v543, %v542
      %v549 = vpack.c.bf16 %v545, %v544
      %s550 = scalar_lea.vmem %s3, 4
      %v551 = vld [vmem:[%s550] sm:$0xf]
      %v553 = vsel %vm514, %v546, 0
      %v556 = vsel %vm514, %v547, 0
      %v559 = vsel %vm514, %v548, 0
      %v562 = vsel %vm514, %v549, 0
      %vm564 = vcmask 1043456
      %v566 = vsel %vm564, %v551, 0
      %568 = vmatpush.bf16.msra.mxu0 0
      %569 = vmatpush.bf16.msra.mxu0 0
      %570 = vmatpush.bf16.msra.mxu0 0
      %571 = vmatpush.bf16.msra.mxu0 0
      %572 = vmatpush.bf16.msra.mxu0 0
      %573 = vmatpush.bf16.msra.mxu0 0
      %574 = vmatpush.bf16.msra.mxu0 0
      %575 = vmatpush.bf16.msra.mxu0 %v566
      %576 = vmatmul.bf16.gmra.mxu0 %v553
      %v577 = vpop.f32.mrf.mxu0
      %v578 = vadd.f32 0.0, %v577
      %v579 = vpop.f32.mrf.mxu0
      %v580 = vadd.f32 0.0, %v579
      %581 = vmatmul.bf16.gmra.mxu0 %v556
      %v582 = vpop.f32.mrf.mxu0
      %v583 = vadd.f32 0.0, %v582
      %v584 = vpop.f32.mrf.mxu0
      %v585 = vadd.f32 0.0, %v584
      %586 = vmatmul.bf16.gmra.mxu0 %v559
      %v587 = vpop.f32.mrf.mxu0
      %v588 = vadd.f32 0.0, %v587
      %v589 = vpop.f32.mrf.mxu0
      %v590 = vadd.f32 0.0, %v589
      %591 = vmatmul.bf16.gmra.mxu0 %v562
      %v592 = vpop.f32.mrf.mxu0
      %v593 = vadd.f32 0.0, %v592
      %v594 = vpop.f32.mrf.mxu0
      %v595 = vadd.f32 0.0, %v594
      %596 = vdwg.mxu0
      %v598 = vsel %vm514, %v533, 0
      %v601 = vsel %vm514, %v534, 0
      %v604 = vsel %vm514, %v535, 0
      %v607 = vsel %vm514, %v536, 0
      %v610 = vsel %vm564, %v537, 0
      %612 = vmatpush.bf16.msra.mxu0 0
      %613 = vmatpush.bf16.msra.mxu0 0
      %614 = vmatpush.bf16.msra.mxu0 0
      %615 = vmatpush.bf16.msra.mxu0 0
      %616 = vmatpush.bf16.msra.mxu0 0
      %617 = vmatpush.bf16.msra.mxu0 0
      %618 = vmatpush.bf16.msra.mxu0 0
      %619 = vmatpush.bf16.msra.mxu0 %v610
      %620 = vmatmul.bf16.gmra.mxu0 %v598
      %v621 = vpop.f32.mrf.mxu0
      %v622 = vadd.f32 %v578, %v621
      %v623 = vpop.f32.mrf.mxu0
      %v624 = vadd.f32 %v580, %v623
      %625 = vmatmul.bf16.gmra.mxu0 %v601
      %v626 = vpop.f32.mrf.mxu0
      %v627 = vadd.f32 %v583, %v626
      %v628 = vpop.f32.mrf.mxu0
      %v629 = vadd.f32 %v585, %v628
      %630 = vmatmul.bf16.gmra.mxu0 %v604
      %v631 = vpop.f32.mrf.mxu0
      %v632 = vadd.f32 %v588, %v631
      %v633 = vpop.f32.mrf.mxu0
      %v634 = vadd.f32 %v590, %v633
      %635 = vmatmul.bf16.gmra.mxu0 %v607
      %v636 = vpop.f32.mrf.mxu0
      %v637 = vadd.f32 %v593, %v636
      %v638 = vpop.f32.mrf.mxu0
      %v639 = vadd.f32 %v595, %v638
      %640 = vdwg.mxu0
      %v641 = vld [vmem:[#allocation2 + $0x9] sm:$0xff]
      %v642 = vld [vmem:[#allocation2 + $0x21] sm:$0xff]
      %v643 = vld [vmem:[#allocation2 + $0x39] sm:$0xff]
      %v644 = vld [vmem:[#allocation2 + $0x51] sm:$0xff]
      %v645 = vld [vmem:[#allocation2 + $0x69] sm:$0xff]
      %v646 = vld [vmem:[#allocation2 + $0x81] sm:$0xff]
      %v647 = vld [vmem:[#allocation2 + $0x99] sm:$0xff]
      %v648 = vld [vmem:[#allocation2 + $0xb1] sm:$0xff]
      %v649 = vpack.c.bf16 %v642, %v641
      %v650 = vpack.c.bf16 %v644, %v643
      %v651 = vpack.c.bf16 %v646, %v645
      %v652 = vpack.c.bf16 %v648, %v647
      %s653 = scalar_lea.vmem %s3, 8
      %v654 = vld [vmem:[%s653] sm:$0xf]
      %v656 = vsel %vm514, %v649, 0
      %v659 = vsel %vm514, %v650, 0
      %v662 = vsel %vm514, %v651, 0
      %v665 = vsel %vm514, %v652, 0
      %v668 = vsel %vm564, %v654, 0
      %670 = vmatpush.bf16.msra.mxu0 0
      %671 = vmatpush.bf16.msra.mxu0 0
      %672 = vmatpush.bf16.msra.mxu0 0
      %673 = vmatpush.bf16.msra.mxu0 0
      %674 = vmatpush.bf16.msra.mxu0 0
      %675 = vmatpush.bf16.msra.mxu0 0
      %676 = vmatpush.bf16.msra.mxu0 0
      %677 = vmatpush.bf16.msra.mxu0 %v668
      %678 = vmatmul.bf16.gmra.mxu0 %v656
      %v679 = vpop.f32.mrf.mxu0
      %v680 = vadd.f32 0.0, %v679
      %v681 = vpop.f32.mrf.mxu0
      %v682 = vadd.f32 0.0, %v681
      %683 = vmatmul.bf16.gmra.mxu0 %v659
      %v684 = vpop.f32.mrf.mxu0
      %v685 = vadd.f32 0.0, %v684
      %v686 = vpop.f32.mrf.mxu0
      %v687 = vadd.f32 0.0, %v686
      %688 = vmatmul.bf16.gmra.mxu0 %v662
      %v689 = vpop.f32.mrf.mxu0
      %v690 = vadd.f32 0.0, %v689
      %v691 = vpop.f32.mrf.mxu0
      %v692 = vadd.f32 0.0, %v691
      %693 = vmatmul.bf16.gmra.mxu0 %v665
      %v694 = vpop.f32.mrf.mxu0
      %v695 = vadd.f32 0.0, %v694
      %v696 = vpop.f32.mrf.mxu0
      %v697 = vadd.f32 0.0, %v696
      %698 = vdwg.mxu0
      %v699 = vadd.f32 %v622, %v680
      %v700 = vadd.f32 %v624, %v682
      %v701 = vadd.f32 %v627, %v685
      %v702 = vadd.f32 %v629, %v687
      %v703 = vadd.f32 %v632, %v690
      %v704 = vadd.f32 %v634, %v692
      %v705 = vadd.f32 %v637, %v695
      %v706 = vadd.f32 %v639, %v697
      %s707 = scalar_lea.vmem [#allocation2], 24
      %v708 = vld [vmem:[%s707 + $0x7] sm:$0xff]
      %v709 = vld [vmem:[%s707 + $0x1f] sm:$0xff]
      %v710 = vld [vmem:[%s707 + $0x37] sm:$0xff]
      %v711 = vld [vmem:[%s707 + $0x4f] sm:$0xff]
      %v712 = vld [vmem:[%s707 + $0x67] sm:$0xff]
      %v713 = vld [vmem:[%s707 + $0x7f] sm:$0xff]
      %v714 = vld [vmem:[%s707 + $0x97] sm:$0xff]
      %v715 = vld [vmem:[%s707 + $0xaf] sm:$0xff]
      %v716 = vpack.c.bf16 %v709, %v708
      %v717 = vpack.c.bf16 %v711, %v710
      %v718 = vpack.c.bf16 %v713, %v712
      %v719 = vpack.c.bf16 %v715, %v714
      %s720 = scalar_lea.vmem %s3, 12
      %v721 = vld [vmem:[%s720] sm:$0xf]
      %v723 = vsel %vm514, %v716, 0
      %v726 = vsel %vm514, %v717, 0
      %v729 = vsel %vm514, %v718, 0
      %v732 = vsel %vm514, %v719, 0
      %v735 = vsel %vm564, %v721, 0
      %737 = vmatpush.bf16.msra.mxu0 0
      %738 = vmatpush.bf16.msra.mxu0 0
      %739 = vmatpush.bf16.msra.mxu0 0
      %740 = vmatpush.bf16.msra.mxu0 0
      %741 = vmatpush.bf16.msra.mxu0 0
      %742 = vmatpush.bf16.msra.mxu0 0
      %743 = vmatpush.bf16.msra.mxu0 0
      %744 = vmatpush.bf16.msra.mxu0 %v735
      %745 = vmatmul.bf16.gmra.mxu0 %v723
      %v746 = vpop.f32.mrf.mxu0
      %v747 = vadd.f32 0.0, %v746
      %v748 = vpop.f32.mrf.mxu0
      %v749 = vadd.f32 0.0, %v748
      %750 = vmatmul.bf16.gmra.mxu0 %v726
      %v751 = vpop.f32.mrf.mxu0
      %v752 = vadd.f32 0.0, %v751
      %v753 = vpop.f32.mrf.mxu0
      %v754 = vadd.f32 0.0, %v753
      %755 = vmatmul.bf16.gmra.mxu0 %v729
      %v756 = vpop.f32.mrf.mxu0
      %v757 = vadd.f32 0.0, %v756
      %v758 = vpop.f32.mrf.mxu0
      %v759 = vadd.f32 0.0, %v758
      %760 = vmatmul.bf16.gmra.mxu0 %v732
      %v761 = vpop.f32.mrf.mxu0
      %v762 = vadd.f32 0.0, %v761
      %v763 = vpop.f32.mrf.mxu0
      %v764 = vadd.f32 0.0, %v763
      %765 = vdwg.mxu0
      %v766 = vadd.f32 %v699, %v747
      %v767 = vadd.f32 %v700, %v749
      %v768 = vadd.f32 %v701, %v752
      %v769 = vadd.f32 %v702, %v754
      %v770 = vadd.f32 %v703, %v757
      %v771 = vadd.f32 %v704, %v759
      %v772 = vadd.f32 %v705, %v762
      %v773 = vadd.f32 %v706, %v764
      %v774 = vld [vmem:[%s707 + $0x8] sm:$0xff]
      %v775 = vld [vmem:[%s707 + $0x20] sm:$0xff]
      %v776 = vld [vmem:[%s707 + $0x38] sm:$0xff]
      %v777 = vld [vmem:[%s707 + $0x50] sm:$0xff]
      %v778 = vld [vmem:[%s707 + $0x68] sm:$0xff]
      %v779 = vld [vmem:[%s707 + $0x80] sm:$0xff]
      %v780 = vld [vmem:[%s707 + $0x98] sm:$0xff]
      %v781 = vld [vmem:[%s707 + $0xb0] sm:$0xff]
      %v782 = vpack.c.bf16 %v775, %v774
      %v783 = vpack.c.bf16 %v777, %v776
      %v784 = vpack.c.bf16 %v779, %v778
      %v785 = vpack.c.bf16 %v781, %v780
      %s786 = scalar_lea.vmem %s3, 16
      %v787 = vld [vmem:[%s786] sm:$0xf]
      %v789 = vsel %vm514, %v782, 0
      %v792 = vsel %vm514, %v783, 0
      %v795 = vsel %vm514, %v784, 0
      %v798 = vsel %vm514, %v785, 0
      %v801 = vsel %vm564, %v787, 0
      %803 = vmatpush.bf16.msra.mxu0 0
      %804 = vmatpush.bf16.msra.mxu0 0
      %805 = vmatpush.bf16.msra.mxu0 0
      %806 = vmatpush.bf16.msra.mxu0 0
      %807 = vmatpush.bf16.msra.mxu0 0
      %808 = vmatpush.bf16.msra.mxu0 0
      %809 = vmatpush.bf16.msra.mxu0 0
      %810 = vmatpush.bf16.msra.mxu0 %v801
      %811 = vmatmul.bf16.gmra.mxu0 %v789
      %v812 = vpop.f32.mrf.mxu0
      %v813 = vadd.f32 0.0, %v812
      %v814 = vpop.f32.mrf.mxu0
      %v815 = vadd.f32 0.0, %v814
      %816 = vmatmul.bf16.gmra.mxu0 %v792
      %v817 = vpop.f32.mrf.mxu0
      %v818 = vadd.f32 0.0, %v817
      %v819 = vpop.f32.mrf.mxu0
      %v820 = vadd.f32 0.0, %v819
      %821 = vmatmul.bf16.gmra.mxu0 %v795
      %v822 = vpop.f32.mrf.mxu0
      %v823 = vadd.f32 0.0, %v822
      %v824 = vpop.f32.mrf.mxu0
      %v825 = vadd.f32 0.0, %v824
      %826 = vmatmul.bf16.gmra.mxu0 %v798
      %v827 = vpop.f32.mrf.mxu0
      %v828 = vadd.f32 0.0, %v827
      %v829 = vpop.f32.mrf.mxu0
      %v830 = vadd.f32 0.0, %v829
      %831 = vdwg.mxu0
      %v832 = vadd.f32 %v766, %v813
      %v833 = vadd.f32 %v767, %v815
      %v834 = vadd.f32 %v768, %v818
      %v835 = vadd.f32 %v769, %v820
      %v836 = vadd.f32 %v770, %v823
      %v837 = vadd.f32 %v771, %v825
      %v838 = vadd.f32 %v772, %v828
      %v839 = vadd.f32 %v773, %v830
      %v840 = vld [vmem:[%s707 + $0x9] sm:$0xff]
      %v841 = vld [vmem:[%s707 + $0x21] sm:$0xff]
      %v842 = vld [vmem:[%s707 + $0x39] sm:$0xff]
      %v843 = vld [vmem:[%s707 + $0x51] sm:$0xff]
      %v844 = vld [vmem:[%s707 + $0x69] sm:$0xff]
      %v845 = vld [vmem:[%s707 + $0x81] sm:$0xff]
      %v846 = vld [vmem:[%s707 + $0x99] sm:$0xff]
      %v847 = vld [vmem:[%s707 + $0xb1] sm:$0xff]
      %v848 = vpack.c.bf16 %v841, %v840
      %v849 = vpack.c.bf16 %v843, %v842
      %v850 = vpack.c.bf16 %v845, %v844
      %v851 = vpack.c.bf16 %v847, %v846
      %s852 = scalar_lea.vmem %s3, 20
      %v853 = vld [vmem:[%s852] sm:$0xf]
      %v855 = vsel %vm514, %v848, 0
      %v858 = vsel %vm514, %v849, 0
      %v861 = vsel %vm514, %v850, 0
      %v864 = vsel %vm514, %v851, 0
      %v867 = vsel %vm564, %v853, 0
      %869 = vmatpush.bf16.msra.mxu0 0
      %870 = vmatpush.bf16.msra.mxu0 0
      %871 = vmatpush.bf16.msra.mxu0 0
      %872 = vmatpush.bf16.msra.mxu0 0
      %873 = vmatpush.bf16.msra.mxu0 0
      %874 = vmatpush.bf16.msra.mxu0 0
      %875 = vmatpush.bf16.msra.mxu0 0
      %876 = vmatpush.bf16.msra.mxu0 %v867
      %877 = vmatmul.bf16.gmra.mxu0 %v855
      %v878 = vpop.f32.mrf.mxu0
      %v879 = vadd.f32 0.0, %v878
      %v880 = vpop.f32.mrf.mxu0
      %v881 = vadd.f32 0.0, %v880
      %882 = vmatmul.bf16.gmra.mxu0 %v858
      %v883 = vpop.f32.mrf.mxu0
      %v884 = vadd.f32 0.0, %v883
      %v885 = vpop.f32.mrf.mxu0
      %v886 = vadd.f32 0.0, %v885
      %887 = vmatmul.bf16.gmra.mxu0 %v861
      %v888 = vpop.f32.mrf.mxu0
      %v889 = vadd.f32 0.0, %v888
      %v890 = vpop.f32.mrf.mxu0
      %v891 = vadd.f32 0.0, %v890
      %892 = vmatmul.bf16.gmra.mxu0 %v864
      %v893 = vpop.f32.mrf.mxu0
      %v894 = vadd.f32 0.0, %v893
      %v895 = vpop.f32.mrf.mxu0
      %v896 = vadd.f32 0.0, %v895
      %897 = vdwg.mxu0
      %v898 = vadd.f32 %v832, %v879
      %v899 = vadd.f32 %v833, %v881
      %v900 = vadd.f32 %v834, %v884
      %v901 = vadd.f32 %v835, %v886
      %v902 = vadd.f32 %v836, %v889
      %v903 = vadd.f32 %v837, %v891
      %v904 = vadd.f32 %v838, %v894
      %v905 = vadd.f32 %v839, %v896
      %s906 = scalar_lea.vmem [#allocation2], 48
      %v907 = vld [vmem:[%s906 + $0x7] sm:$0xff]
      %v908 = vld [vmem:[%s906 + $0x1f] sm:$0xff]
      %v909 = vld [vmem:[%s906 + $0x37] sm:$0xff]
      %v910 = vld [vmem:[%s906 + $0x4f] sm:$0xff]
      %v911 = vld [vmem:[%s906 + $0x67] sm:$0xff]
      %v912 = vld [vmem:[%s906 + $0x7f] sm:$0xff]
      %v913 = vld [vmem:[%s906 + $0x97] sm:$0xff]
      %v914 = vld [vmem:[%s906 + $0xaf] sm:$0xff]
      %v915 = vpack.c.bf16 %v908, %v907
      %v916 = vpack.c.bf16 %v910, %v909
      %v917 = vpack.c.bf16 %v912, %v911
      %v918 = vpack.c.bf16 %v914, %v913
      %s919 = scalar_lea.vmem %s3, 24
      %v920 = vld [vmem:[%s919] sm:$0xf]
      %v922 = vsel %vm514, %v915, 0
      %v925 = vsel %vm514, %v916, 0
      %v928 = vsel %vm514, %v917, 0
      %v931 = vsel %vm514, %v918, 0
      %v934 = vsel %vm564, %v920, 0
      %936 = vmatpush.bf16.msra.mxu0 0
      %937 = vmatpush.bf16.msra.mxu0 0
      %938 = vmatpush.bf16.msra.mxu0 0
      %939 = vmatpush.bf16.msra.mxu0 0
      %940 = vmatpush.bf16.msra.mxu0 0
      %941 = vmatpush.bf16.msra.mxu0 0
      %942 = vmatpush.bf16.msra.mxu0 0
      %943 = vmatpush.bf16.msra.mxu0 %v934
      %944 = vmatmul.bf16.gmra.mxu0 %v922
      %v945 = vpop.f32.mrf.mxu0
      %v946 = vadd.f32 0.0, %v945
      %v947 = vpop.f32.mrf.mxu0
      %v948 = vadd.f32 0.0, %v947
      %949 = vmatmul.bf16.gmra.mxu0 %v925
      %v950 = vpop.f32.mrf.mxu0
      %v951 = vadd.f32 0.0, %v950
      %v952 = vpop.f32.mrf.mxu0
      %v953 = vadd.f32 0.0, %v952
      %954 = vmatmul.bf16.gmra.mxu0 %v928
      %v955 = vpop.f32.mrf.mxu0
      %v956 = vadd.f32 0.0, %v955
      %v957 = vpop.f32.mrf.mxu0
      %v958 = vadd.f32 0.0, %v957
      %959 = vmatmul.bf16.gmra.mxu0 %v931
      %v960 = vpop.f32.mrf.mxu0
      %v961 = vadd.f32 0.0, %v960
      %v962 = vpop.f32.mrf.mxu0
      %v963 = vadd.f32 0.0, %v962
      %964 = vdwg.mxu0
      %v965 = vadd.f32 %v898, %v946
      %v966 = vadd.f32 %v899, %v948
      %v967 = vadd.f32 %v900, %v951
      %v968 = vadd.f32 %v901, %v953
      %v969 = vadd.f32 %v902, %v956
      %v970 = vadd.f32 %v903, %v958
      %v971 = vadd.f32 %v904, %v961
      %v972 = vadd.f32 %v905, %v963
      %v973 = vld [vmem:[%s906 + $0x8] sm:$0xff]
      %v974 = vld [vmem:[%s906 + $0x20] sm:$0xff]
      %v975 = vld [vmem:[%s906 + $0x38] sm:$0xff]
      %v976 = vld [vmem:[%s906 + $0x50] sm:$0xff]
      %v977 = vld [vmem:[%s906 + $0x68] sm:$0xff]
      %v978 = vld [vmem:[%s906 + $0x80] sm:$0xff]
      %v979 = vld [vmem:[%s906 + $0x98] sm:$0xff]
      %v980 = vld [vmem:[%s906 + $0xb0] sm:$0xff]
      %v981 = vpack.c.bf16 %v974, %v973
      %v982 = vpack.c.bf16 %v976, %v975
      %v983 = vpack.c.bf16 %v978, %v977
      %v984 = vpack.c.bf16 %v980, %v979
      %s985 = scalar_lea.vmem %s3, 28
      %v986 = vld [vmem:[%s985] sm:$0xf]
      %v988 = vsel %vm514, %v981, 0
      %v991 = vsel %vm514, %v982, 0
      %v994 = vsel %vm514, %v983, 0
      %v997 = vsel %vm514, %v984, 0
      %v1000 = vsel %vm564, %v986, 0
      %1002 = vmatpush.bf16.msra.mxu0 0
      %1003 = vmatpush.bf16.msra.mxu0 0
      %1004 = vmatpush.bf16.msra.mxu0 0
      %1005 = vmatpush.bf16.msra.mxu0 0
      %1006 = vmatpush.bf16.msra.mxu0 0
      %1007 = vmatpush.bf16.msra.mxu0 0
      %1008 = vmatpush.bf16.msra.mxu0 0
      %1009 = vmatpush.bf16.msra.mxu0 %v1000
      %1010 = vmatmul.bf16.gmra.mxu0 %v988
      %v1011 = vpop.f32.mrf.mxu0
      %v1012 = vadd.f32 0.0, %v1011
      %v1013 = vpop.f32.mrf.mxu0
      %v1014 = vadd.f32 0.0, %v1013
      %1015 = vmatmul.bf16.gmra.mxu0 %v991
      %v1016 = vpop.f32.mrf.mxu0
      %v1017 = vadd.f32 0.0, %v1016
      %v1018 = vpop.f32.mrf.mxu0
      %v1019 = vadd.f32 0.0, %v1018
      %1020 = vmatmul.bf16.gmra.mxu0 %v994
      %v1021 = vpop.f32.mrf.mxu0
      %v1022 = vadd.f32 0.0, %v1021
      %v1023 = vpop.f32.mrf.mxu0
      %v1024 = vadd.f32 0.0, %v1023
      %1025 = vmatmul.bf16.gmra.mxu0 %v997
      %v1026 = vpop.f32.mrf.mxu0
      %v1027 = vadd.f32 0.0, %v1026
      %v1028 = vpop.f32.mrf.mxu0
      %v1029 = vadd.f32 0.0, %v1028
      %1030 = vdwg.mxu0
      %v1031 = vadd.f32 %v965, %v1012
      %v1032 = vadd.f32 %v966, %v1014
      %v1033 = vadd.f32 %v967, %v1017
      %v1034 = vadd.f32 %v968, %v1019
      %v1035 = vadd.f32 %v969, %v1022
      %v1036 = vadd.f32 %v970, %v1024
      %v1037 = vadd.f32 %v971, %v1027
      %v1038 = vadd.f32 %v972, %v1029
      %v1039 = vld [vmem:[%s906 + $0x9] sm:$0xff]
      %v1040 = vld [vmem:[%s906 + $0x21] sm:$0xff]
      %v1041 = vld [vmem:[%s906 + $0x39] sm:$0xff]
      %v1042 = vld [vmem:[%s906 + $0x51] sm:$0xff]
      %v1043 = vld [vmem:[%s906 + $0x69] sm:$0xff]
      %v1044 = vld [vmem:[%s906 + $0x81] sm:$0xff]
      %v1045 = vld [vmem:[%s906 + $0x99] sm:$0xff]
      %v1046 = vld [vmem:[%s906 + $0xb1] sm:$0xff]
      %v1047 = vpack.c.bf16 %v1040, %v1039
      %v1048 = vpack.c.bf16 %v1042, %v1041
      %v1049 = vpack.c.bf16 %v1044, %v1043
      %v1050 = vpack.c.bf16 %v1046, %v1045
      %s1051 = scalar_lea.vmem %s3, 32
      %v1052 = vld [vmem:[%s1051] sm:$0xf]
      %v1054 = vsel %vm514, %v1047, 0
      %v1057 = vsel %vm514, %v1048, 0
      %v1060 = vsel %vm514, %v1049, 0
      %v1063 = vsel %vm514, %v1050, 0
      %v1066 = vsel %vm564, %v1052, 0
      %1068 = vmatpush.bf16.msra.mxu0 0
      %1069 = vmatpush.bf16.msra.mxu0 0
      %1070 = vmatpush.bf16.msra.mxu0 0
      %1071 = vmatpush.bf16.msra.mxu0 0
      %1072 = vmatpush.bf16.msra.mxu0 0
      %1073 = vmatpush.bf16.msra.mxu0 0
      %1074 = vmatpush.bf16.msra.mxu0 0
      %1075 = vmatpush.bf16.msra.mxu0 %v1066
      %1076 = vmatmul.bf16.gmra.mxu0 %v1054
      %v1077 = vpop.f32.mrf.mxu0
      %v1078 = vadd.f32 0.0, %v1077
      %v1079 = vpop.f32.mrf.mxu0
      %v1080 = vadd.f32 0.0, %v1079
      %1081 = vmatmul.bf16.gmra.mxu0 %v1057
      %v1082 = vpop.f32.mrf.mxu0
      %v1083 = vadd.f32 0.0, %v1082
      %v1084 = vpop.f32.mrf.mxu0
      %v1085 = vadd.f32 0.0, %v1084
      %1086 = vmatmul.bf16.gmra.mxu0 %v1060
      %v1087 = vpop.f32.mrf.mxu0
      %v1088 = vadd.f32 0.0, %v1087
      %v1089 = vpop.f32.mrf.mxu0
      %v1090 = vadd.f32 0.0, %v1089
      %1091 = vmatmul.bf16.gmra.mxu0 %v1063
      %v1092 = vpop.f32.mrf.mxu0
      %v1093 = vadd.f32 0.0, %v1092
      %v1094 = vpop.f32.mrf.mxu0
      %v1095 = vadd.f32 0.0, %v1094
      %1096 = vdwg.mxu0
      %v1097 = vadd.f32 %v1031, %v1078
      %v1098 = vadd.f32 %v1032, %v1080
      %v1099 = vadd.f32 %v1033, %v1083
      %v1100 = vadd.f32 %v1034, %v1085
      %v1101 = vadd.f32 %v1035, %v1088
      %v1102 = vadd.f32 %v1036, %v1090
      %v1103 = vadd.f32 %v1037, %v1093
      %v1104 = vadd.f32 %v1038, %v1095
      %v1105 = vmul.f32 %v1097, 0.2
      %v1106 = vmul.f32 %v1098, 0.2
      %v1107 = vmul.f32 %v1099, 0.2
      %v1108 = vmul.f32 %v1100, 0.2
      %v1109 = vmul.f32 %v1101, 0.2
      %v1110 = vmul.f32 %v1102, 0.2
      %v1111 = vmul.f32 %v1103, 0.2
      %v1112 = vmul.f32 %v1104, 0.2
      %v1113 = vld [vmem:[%s272] sm:$0xf]
      %v1114 = vld [vmem:[%s272 + $0x4] sm:$0xf]
      %v1115 = vld [vmem:[%s272 + $0x8] sm:$0xf]
      %v1116 = vld [vmem:[%s272 + $0xc] sm:$0xf]
      %v1117 = vld [vmem:[%s272 + $0x10] sm:$0xf]
      %v1118 = vld [vmem:[%s272 + $0x14] sm:$0xf]
      %v1119 = vld [vmem:[%s272 + $0x18] sm:$0xf]
      %v1120 = vld [vmem:[%s272 + $0x1c] sm:$0xf]
      %v1121 = vunpack.c.l.bf16 %v1113
      %v1122 = vunpack.c.l.bf16 %v1114
      %v1123 = vunpack.c.l.bf16 %v1115
      %v1124 = vunpack.c.l.bf16 %v1116
      %v1125 = vunpack.c.l.bf16 %v1117
      %v1126 = vunpack.c.l.bf16 %v1118
      %v1127 = vunpack.c.l.bf16 %v1119
      %v1128 = vunpack.c.l.bf16 %v1120
      %v1129 = vadd.f32 %v1105, %v1121
      %v1130 = vadd.f32 %v1106, %v1122
      %v1131 = vadd.f32 %v1107, %v1123
      %v1132 = vadd.f32 %v1108, %v1124
      %v1133 = vadd.f32 %v1109, %v1125
      %v1134 = vadd.f32 %v1110, %v1126
      %v1135 = vadd.f32 %v1111, %v1127
      %v1136 = vadd.f32 %v1112, %v1128
      %1137 = vst.msk [vmem:[%s282] sm:$0xff] %vm514, %v1129
      %1138 = vst.msk [vmem:[%s282 + $0x8] sm:$0xff] %vm514, %v1130
      %1139 = vst.msk [vmem:[%s282 + $0x10] sm:$0xff] %vm514, %v1131
      %1140 = vst.msk [vmem:[%s282 + $0x18] sm:$0xff] %vm514, %v1132
      %1141 = vst.msk [vmem:[%s282 + $0x20] sm:$0xff] %vm514, %v1133
      %1142 = vst.msk [vmem:[%s282 + $0x28] sm:$0xff] %vm514, %v1134
      %1143 = vst.msk [vmem:[%s282 + $0x30] sm:$0xff] %vm514, %v1135
      %1144 = vst.msk [vmem:[%s282 + $0x38] sm:$0xff] %vm514, %v1136
      %s1145 = smul.u32 8, %s21
      %p1146 = scmp.lt.s32.totalorder %s20, 1
      %s1147 = scalar_select %p1146, %s20, 1
      %p1148 = scmp.lt.s32.totalorder %s1145, 7
      %s1149 = scalar_select %p1148, %s1145, 7
      %s1150 = smul.addr %s1147, 8
      %s1151 = sadd.s32 %s1149, %s1150
      %s1152 = smul.addr %s1151, 8
      %s1153 = scalar_lea.vmem %s5, %s1152
      // Predicated region
      $region41: #{residual_block_forward.3} parent=39 // pred_check
        %p1154 = pneg %p165
      $region42: #{residual_block_forward.3} parent=39 // pred_check_branch
        %1156 = sbr.rel (%p1154) target = $region44
      $region43: #{residual_block_forward.3} parent=39 // pred_region
        %s1157 = smul.u32 8, %s21
      $region44: #{residual_block_forward.3} parent=39 // pred_fallthru
        _
    $region40: #{residual_block_forward.3} parent=5 // pred_fallthru
      _
    %p1158 = scmp.le.s32.totalorder 2, %s11
    // Predicated region
    $region45: #{residual_block_forward.3} parent=5 // pred_check
      %p1159 = pneg %p1158
    $region46: #{residual_block_forward.3} parent=5 // pred_check_branch
      %1161 = sbr.rel (%p1159) target = $region48
    $region47: #{residual_block_forward.3} parent=5 // pred_region
      %s1162 = ssub.s32 %s11, 2
      // Predicated region
      $region49: #{residual_block_forward.3} parent=47 // pred_check
        %p1163 = pneg %p171
      $region50: #{residual_block_forward.3} parent=47 // pred_check_branch
        %1165 = sbr.rel (%p1163) target = $region52
      $region51: #{residual_block_forward.3} parent=47 // pred_region
        %s1166 = smul.u32 8, %s23
        %p1167 = scmp.lt.s32.totalorder %s22, 1
        %s1168 = scalar_select %p1167, %s22, 1
        %p1169 = scmp.lt.s32.totalorder %s1166, 7
        %s1170 = scalar_select %p1169, %s1166, 7
        %s1171 = smul.addr %s1168, 8
        %s1172 = sadd.s32 %s1170, %s1171
        %s1173 = smul.addr %s1172, 8
        %s1174 = scalar_lea.vmem %s5, %s1173
      $region52: #{residual_block_forward.3} parent=47 // pred_fallthru
        _
    $region48: #{residual_block_forward.3} parent=5 // pred_fallthru
      _
  $region6: #{residual_block_forward.3} parent=0 // loop_footer
    %s15 = sadd.s32 1, %s11
  $region7: #{residual_block_forward.3} parent=0 // loop_footer_branch
    %10 = sbr.rel target = $region3
  $region8: #{residual_block_forward.3} parent=0 // loop_exit
    _

// kernel: residual_block_forward.2
$region0: #{residual_block_forward.2}
  #allocation0 [shape = 'u32[]', space=smem, size = 0x4, offset = 0x4, fixed_abs, tag = 'smem constant byte address 0x4 - core index']
  #allocation1 [shape = 'u32[72,128]{1,0:T(1,128)}', space=vmem, size = 0x9000, scoped, tag = 'internal scratch']
  #allocation2 [shape = 'f32[17,25,4]{2,1,0:T(8,128)}', space=vmem, size = 0x44000, scoped, tag = 'scratch operand']
  %s0 = inlined_call_operand.vmem [shape: f32[2,16,16,4], index: 0, kind: input, shape index: {}]
  %s1 = inlined_call_operand.vmem [shape: f32[1,4], index: 1, kind: input, shape index: {}]
  %s2 = inlined_call_operand.vmem [shape: f32[1,4], index: 2, kind: input, shape index: {}]
  %s3 = inlined_call_operand.vmem [shape: bf16[9,4,8], index: 3, kind: input, shape index: {}]
  %s4 = inlined_call_operand.vmem [shape: bf16[4,8], index: 4, kind: input, shape index: {}]
  %s5 = inlined_call_operand.vmem [shape: bf16[2,8,8,8], index: 5, kind: output, shape index: {0}]
  %s6 = inlined_call_operand.vmem [shape: bf16[2,8,8,8], index: 6, kind: output, shape index: {1}]
  %s7 = inlined_call_operand.vmem [shape: f32[2,1,1,8], index: 7, kind: output, shape index: {2}]
  %s8 = inlined_call_operand.vmem [shape: f32[2,1,1,8], index: 8, kind: output, shape index: {3}]
  %9 = xla_tuple %s5, %s6, %s7, %s8
  %s10 = sld [smem:[#allocation0]]
  $region77: #{residual_block_forward.2} parent=0
    _
  %s12 = ssub.s32 1, %s10
  %s13 = scalar_select 0, %s12, %s10
  loop: start=0, step=1, limit=4
  $region2: #{residual_block_forward.2} parent=0 // loop_pre_header
    _
  $region3: #{residual_block_forward.2} parent=0 // loop_header
    %s15 = sphi 0, %s19
    %p16 = scmp.ge.s32.totalorder %s15, 4
    %s22 = sphi 0, %s34
    %s23 = sphi 0, %s30
    %s24 = sphi 0, %s22
    %s25 = sphi 0, %s23
    %s26 = sphi 0, %s24
    %s27 = sphi 0, %s25
    %s37 = sphi 0, %s39
    %s40 = sphi 0, %s37
    %s41 = sphi 0, %s40
    %s57 = sphi 0, %s41
    %s61 = sphi 0, %s61
    %s63 = sphi 0, %s61
    %s64 = sphi 0, %s63
    %s78 = sphi 0, %s64
    %s82 = sphi 0, %s82
    %s84 = sphi 0, %s82
    %s85 = sphi 0, %s84
    %s99 = sphi 0, %s85
    %s103 = sphi 0, %s103
    %s105 = sphi 0, %s103
    %s106 = sphi 0, %s105
    %s120 = sphi 0, %s106
    %s124 = sphi 0, %s124
    %s126 = sphi 0, %s124
    %s127 = sphi 0, %s126
    %s141 = sphi 0, %s127
    %s149 = sphi 0, %s151
    %s152 = sphi 0, %s149
    %s153 = sphi 0, %s152
    %s169 = sphi 0, %s153
    %s177 = sphi 0, %s179
    %s180 = sphi 0, %s177
    %s181 = sphi 0, %s180
    %s197 = sphi 0, %s181
    %s205 = sphi 0, %s207
    %s208 = sphi 0, %s205
    %s209 = sphi 0, %s208
    %s225 = sphi 0, %s209
    %s233 = sphi 0, %s235
    %s236 = sphi 0, %s233
    %s237 = sphi 0, %s236
    %s253 = sphi 0, %s237
  $region4: #{residual_block_forward.2} parent=0 // loop_header_branch
    %18 = sbr.rel (%p16) target = $region8
  $region5: #{residual_block_forward.2} parent=0 // loop_body
    %s20 = ssub.s32 %s15, 1
    %s21 = ssub.s32 %s15, 2
    %s28 = sadd.s32 1, %s23
    %p29 = scmp.ge.s32.totalorder %s28, 1
    %s30 = scalar_select %p29, 0, %s28
    %s31 = sadd.s32 1, %s22
    %s32 = scalar_select %p29, %s31, %s22
    %p33 = scmp.ge.s32.totalorder %s32, 2
    %s34 = scalar_select %p33, 0, %s32
    %s35 = ssub.s32 %s22, %s34
    %p36 = scmp.eq.s32.totalorder %s35, 0
    %s38 = sadd.s32 %s37, 1
    %s39 = scalar_select %p36, %s37, %s38
    %p42 = pneg %p36
    %p43 = scmp.eq.s32.totalorder %s15, 1
    %p44 = por %p42, %p43
    %p45 = scmp.ne.s32.totalorder %s37, %s40
    %p46 = scmp.eq.s32.totalorder %s15, 0
    %p47 = por %p45, %p46
    %p48 = scmp.ne.s32.totalorder %s37, %s40
    %p49 = scmp.eq.s32.totalorder %s20, 1
    %p50 = por %p48, %p49
    %p51 = scmp.ne.s32.totalorder %s40, %s41
    %p52 = scmp.eq.s32.totalorder %s20, 0
    %p53 = por %p51, %p52
    %p54 = scmp.ne.s32.totalorder %s40, %s41
    %p55 = scmp.eq.s32.totalorder %s21, 1
    %p56 = por %p54, %p55
    %p58 = scmp.ne.s32.totalorder %s41, %s57
    %p59 = scmp.eq.s32.totalorder %s21, 0
    %p60 = por %p58, %p59
    %s62 = sadd.s32 %s61, 1
    %p65 = scmp.eq.s32.totalorder %s15, 1
    %p66 = scmp.ne.s32.totalorder %s61, %s63
    %p67 = scmp.eq.s32.totalorder %s15, 0
    %p68 = por %p66, %p67
    %p69 = scmp.ne.s32.totalorder %s61, %s63
    %p70 = scmp.eq.s32.totalorder %s20, 1
    %p71 = por %p69, %p70
    %p72 = scmp.ne.s32.totalorder %s63, %s64
    %p73 = scmp.eq.s32.totalorder %s20, 0
    %p74 = por %p72, %p73
    %p75 = scmp.ne.s32.totalorder %s63, %s64
    %p76 = scmp.eq.s32.totalorder %s21, 1
    %p77 = por %p75, %p76
    %p79 = scmp.ne.s32.totalorder %s64, %s78
    %p80 = scmp.eq.s32.totalorder %s21, 0
    %p81 = por %p79, %p80
    %s83 = sadd.s32 %s82, 1
    %p86 = scmp.eq.s32.totalorder %s15, 1
    %p87 = scmp.ne.s32.totalorder %s82, %s84
    %p88 = scmp.eq.s32.totalorder %s15, 0
    %p89 = por %p87, %p88
    %p90 = scmp.ne.s32.totalorder %s82, %s84
    %p91 = scmp.eq.s32.totalorder %s20, 1
    %p92 = por %p90, %p91
    %p93 = scmp.ne.s32.totalorder %s84, %s85
    %p94 = scmp.eq.s32.totalorder %s20, 0
    %p95 = por %p93, %p94
    %p96 = scmp.ne.s32.totalorder %s84, %s85
    %p97 = scmp.eq.s32.totalorder %s21, 1
    %p98 = por %p96, %p97
    %p100 = scmp.ne.s32.totalorder %s85, %s99
    %p101 = scmp.eq.s32.totalorder %s21, 0
    %p102 = por %p100, %p101
    %s104 = sadd.s32 %s103, 1
    %p107 = scmp.eq.s32.totalorder %s15, 1
    %p108 = scmp.ne.s32.totalorder %s103, %s105
    %p109 = scmp.eq.s32.totalorder %s15, 0
    %p110 = por %p108, %p109
    %p111 = scmp.ne.s32.totalorder %s103, %s105
    %p112 = scmp.eq.s32.totalorder %s20, 1
    %p113 = por %p111, %p112
    %p114 = scmp.ne.s32.totalorder %s105, %s106
    %p115 = scmp.eq.s32.totalorder %s20, 0
    %p116 = por %p114, %p115
    %p117 = scmp.ne.s32.totalorder %s105, %s106
    %p118 = scmp.eq.s32.totalorder %s21, 1
    %p119 = por %p117, %p118
    %p121 = scmp.ne.s32.totalorder %s106, %s120
    %p122 = scmp.eq.s32.totalorder %s21, 0
    %p123 = por %p121, %p122
    %s125 = sadd.s32 %s124, 1
    %p128 = scmp.eq.s32.totalorder %s15, 1
    %p129 = scmp.ne.s32.totalorder %s124, %s126
    %p130 = scmp.eq.s32.totalorder %s15, 0
    %p131 = por %p129, %p130
    %p132 = scmp.ne.s32.totalorder %s124, %s126
    %p133 = scmp.eq.s32.totalorder %s20, 1
    %p134 = por %p132, %p133
    %p135 = scmp.ne.s32.totalorder %s126, %s127
    %p136 = scmp.eq.s32.totalorder %s20, 0
    %p137 = por %p135, %p136
    %p138 = scmp.ne.s32.totalorder %s126, %s127
    %p139 = scmp.eq.s32.totalorder %s21, 1
    %p140 = por %p138, %p139
    %p142 = scmp.ne.s32.totalorder %s127, %s141
    %p143 = scmp.eq.s32.totalorder %s21, 0
    %p144 = por %p142, %p143
    %s145 = ssub.s32 %s22, %s34
    %s146 = ssub.s32 %s23, %s30
    %s147 = sor.u32 %s145, %s146
    %p148 = scmp.eq.s32.totalorder %s147, 0
    %s150 = sadd.s32 %s149, 1
    %s151 = scalar_select %p148, %s149, %s150
    %p154 = pneg %p148
    %p155 = scmp.eq.s32.totalorder %s15, 1
    %p156 = por %p154, %p155
    %p157 = scmp.ne.s32.totalorder %s149, %s152
    %p158 = scmp.eq.s32.totalorder %s15, 0
    %p159 = por %p157, %p158
    %p160 = scmp.ne.s32.totalorder %s149, %s152
    %p161 = scmp.eq.s32.totalorder %s20, 1
    %p162 = por %p160, %p161
    %p163 = scmp.ne.s32.totalorder %s152, %s153
    %p164 = scmp.eq.s32.totalorder %s20, 0
    %p165 = por %p163, %p164
    %p166 = scmp.ne.s32.totalorder %s152, %s153
    %p167 = scmp.eq.s32.totalorder %s21, 1
    %p168 = por %p166, %p167
    %p170 = scmp.ne.s32.totalorder %s153, %s169
    %p171 = scmp.eq.s32.totalorder %s21, 0
    %p172 = por %p170, %p171
    %s173 = ssub.s32 %s22, %s34
    %s174 = ssub.s32 %s23, %s30
    %s175 = sor.u32 %s173, %s174
    %p176 = scmp.eq.s32.totalorder %s175, 0
    %s178 = sadd.s32 %s177, 1
    %s179 = scalar_select %p176, %s177, %s178
    %p182 = pneg %p176
    %p183 = scmp.eq.s32.totalorder %s15, 1
    %p184 = por %p182, %p183
    %p185 = scmp.ne.s32.totalorder %s177, %s180
    %p186 = scmp.eq.s32.totalorder %s15, 0
    %p187 = por %p185, %p186
    %p188 = scmp.ne.s32.totalorder %s177, %s180
    %p189 = scmp.eq.s32.totalorder %s20, 1
    %p190 = por %p188, %p189
    %p191 = scmp.ne.s32.totalorder %s180, %s181
    %p192 = scmp.eq.s32.totalorder %s20, 0
    %p193 = por %p191, %p192
    %p194 = scmp.ne.s32.totalorder %s180, %s181
    %p195 = scmp.eq.s32.totalorder %s21, 1
    %p196 = por %p194, %p195
    %p198 = scmp.ne.s32.totalorder %s181, %s197
    %p199 = scmp.eq.s32.totalorder %s21, 0
    %p200 = por %p198, %p199
    %s201 = ssub.s32 %s22, %s34
    %s202 = ssub.s32 %s23, %s30
    %s203 = sor.u32 %s201, %s202
    %p204 = scmp.eq.s32.totalorder %s203, 0
    %s206 = sadd.s32 %s205, 1
    %s207 = scalar_select %p204, %s205, %s206
    %p210 = pneg %p204
    %p211 = scmp.eq.s32.totalorder %s15, 1
    %p212 = por %p210, %p211
    %p213 = scmp.ne.s32.totalorder %s205, %s208
    %p214 = scmp.eq.s32.totalorder %s15, 0
    %p215 = por %p213, %p214
    %p216 = scmp.ne.s32.totalorder %s205, %s208
    %p217 = scmp.eq.s32.totalorder %s20, 1
    %p218 = por %p216, %p217
    %p219 = scmp.ne.s32.totalorder %s208, %s209
    %p220 = scmp.eq.s32.totalorder %s20, 0
    %p221 = por %p219, %p220
    %p222 = scmp.ne.s32.totalorder %s208, %s209
    %p223 = scmp.eq.s32.totalorder %s21, 1
    %p224 = por %p222, %p223
    %p226 = scmp.ne.s32.totalorder %s209, %s225
    %p227 = scmp.eq.s32.totalorder %s21, 0
    %p228 = por %p226, %p227
    %s229 = ssub.s32 %s22, %s34
    %s230 = ssub.s32 %s23, %s30
    %s231 = sor.u32 %s229, %s230
    %p232 = scmp.eq.s32.totalorder %s231, 0
    %s234 = sadd.s32 %s233, 1
    %s235 = scalar_select %p232, %s233, %s234
    %p238 = pneg %p232
    %p239 = scmp.eq.s32.totalorder %s15, 1
    %p240 = por %p238, %p239
    %p241 = scmp.ne.s32.totalorder %s233, %s236
    %p242 = scmp.eq.s32.totalorder %s15, 0
    %p243 = por %p241, %p242
    %p244 = scmp.ne.s32.totalorder %s233, %s236
    %p245 = scmp.eq.s32.totalorder %s20, 1
    %p246 = por %p244, %p245
    %p247 = scmp.ne.s32.totalorder %s236, %s237
    %p248 = scmp.eq.s32.totalorder %s20, 0
    %p249 = por %p247, %p248
    %p250 = scmp.ne.s32.totalorder %s236, %s237
    %p251 = scmp.eq.s32.totalorder %s21, 1
    %p252 = por %p250, %p251
    %p254 = scmp.ne.s32.totalorder %s237, %s253
    %p255 = scmp.eq.s32.totalorder %s21, 0
    %p256 = por %p254, %p255
    %p257 = scmp.le.s32.totalorder 1, %s15
    %p258 = scmp.lt.s32.totalorder %s15, 3
    %p259 = pnand %p257, %p258
    %p260 = pneg %p259
    // Predicated region
    $region9: #{residual_block_forward.2} parent=5 // pred_check
      _
    $region10: #{residual_block_forward.2} parent=5 // pred_check_branch
      %262 = sbr.rel (%p259) target = $region12
    $region11: #{residual_block_forward.2} parent=5 // pred_region
      %s263 = ssub.s32 %s15, 1
      // Predicated region
      $region13: #{residual_block_forward.2} parent=11 // pred_check
        %p264 = pneg %p74
      $region14: #{residual_block_forward.2} parent=11 // pred_check_branch
        %266 = sbr.rel (%p264) target = $region16
      $region15: #{residual_block_forward.2} parent=11 // pred_region
        _
      $region16: #{residual_block_forward.2} parent=11 // pred_fallthru
        _
      // Predicated region
      $region17: #{residual_block_forward.2} parent=11 // pred_check
        %p267 = pneg %p95
      $region18: #{residual_block_forward.2} parent=11 // pred_check_branch
        %269 = sbr.rel (%p267) target = $region20
      $region19: #{residual_block_forward.2} parent=11 // pred_region
        _
      $region20: #{residual_block_forward.2} parent=11 // pred_fallthru
        _
      // Predicated region
      $region21: #{residual_block_forward.2} parent=11 // pred_check
        %p270 = pneg %p116
      $region22: #{residual_block_forward.2} parent=11 // pred_check_branch
        %272 = sbr.rel (%p270) target = $region24
      $region23: #{residual_block_forward.2} parent=11 // pred_region
        _
      $region24: #{residual_block_forward.2} parent=11 // pred_fallthru
        _
      // Predicated region
      $region25: #{residual_block_forward.2} parent=11 // pred_check
        %p273 = pneg %p137
      $region26: #{residual_block_forward.2} parent=11 // pred_check_branch
        %275 = sbr.rel (%p273) target = $region28
      $region27: #{residual_block_forward.2} parent=11 // pred_region
        _
      $region28: #{residual_block_forward.2} parent=11 // pred_fallthru
        _
    $region12: #{residual_block_forward.2} parent=5 // pred_fallthru
      _
    %p276 = scmp.lt.s32.totalorder %s15, 2
    // Predicated region
    $region29: #{residual_block_forward.2} parent=5 // pred_check
      %p277 = pneg %p276
    $region30: #{residual_block_forward.2} parent=5 // pred_check_branch
      %279 = sbr.rel (%p277) target = $region32
    $region31: #{residual_block_forward.2} parent=5 // pred_region
      // Predicated region
      $region33: #{residual_block_forward.2} parent=31 // pred_check
        %p280 = pneg %p47
      $region34: #{residual_block_forward.2} parent=31 // pred_check_branch
        %282 = sbr.rel (%p280) target = $region36
      $region35: #{residual_block_forward.2} parent=31 // pred_region
        %p283 = scmp.lt.s32.totalorder %s22, 1
        %s284 = scalar_select %p283, %s22, 1
        %s285 = smul.addr %s284, 32
        %s286 = smul.addr %s285, 8
        %s287 = scalar_lea.vmem %s0, %s286
      $region36: #{residual_block_forward.2} parent=31 // pred_fallthru
        _
    $region32: #{residual_block_forward.2} parent=5 // pred_fallthru
      _
    %p288 = scmp.le.s32.totalorder 1, %s15
    %p289 = scmp.lt.s32.totalorder %s15, 3
    %p290 = pnand %p288, %p289
    %p291 = pneg %p290
    // Predicated region
    $region37: #{residual_block_forward.2} parent=5 // pred_check
      _
    $region38: #{residual_block_forward.2} parent=5 // pred_check_branch
      %293 = sbr.rel (%p290) target = $region40
    $region39: #{residual_block_forward.2} parent=5 // pred_region
      %s294 = ssub.s32 %s15, 1
      %p295 = scmp.lt.s32.totalorder %s24, 1
      %s296 = scalar_select %p295, %s24, 1
      %s297 = smul.addr %s296, 32
      %s298 = smul.addr %s297, 8
      %s299 = scalar_lea.vmem %s0, %s298
      %p300 = pneg %p53
      %p301 = pneg %p50
      %p302 = pneg %p74
      %p303 = pneg %p71
      %p304 = pneg %p95
      %p305 = pneg %p92
      %p306 = pneg %p116
      %p307 = pneg %p113
      %p308 = pneg %p137
      %p309 = pneg %p134
      %p310 = pneg %p165
      %p311 = pneg %p162
      %s312 = smul.u32 8, %s25
      %p313 = scmp.lt.s32.totalorder %s24, 1
      %s314 = scalar_select %p313, %s24, 1
      %p315 = scmp.lt.s32.totalorder %s312, 7
      %s316 = scalar_select %p315, %s312, 7
      %s317 = smul.addr %s314, 8
      %s318 = sadd.s32 %s316, %s317
      %s319 = smul.addr %s318, 4
      %s320 = scalar_lea.vmem %s5, %s319
      %p321 = pneg %p193
      %p322 = pneg %p190
      %s323 = smul.u32 8, %s25
      %p324 = scmp.lt.s32.totalorder %s24, 1
      %s325 = scalar_select %p324, %s24, 1
      %p326 = scmp.lt.s32.totalorder %s323, 7
      %s327 = scalar_select %p326, %s323, 7
      %s328 = smul.addr %s325, 8
      %s329 = sadd.s32 %s327, %s328
      %s330 = smul.addr %s329, 4
      %s331 = scalar_lea.vmem %s6, %s330
      %p332 = pneg %p221
      %p333 = pneg %p218
      %p334 = scmp.lt.s32.totalorder %s24, 1
      %s335 = scalar_select %p334, %s24, 1
      %p336 = scmp.lt.s32.totalorder %s25, 0
      %s337 = scalar_select %p336, %s25, 0
      %s338 = sadd.s32 %s337, %s335
      %s339 = scalar_lea.vmem %s7, %s338
      %p340 = pneg %p249
      %p341 = pneg %p246
      %p342 = scmp.lt.s32.totalorder %s24, 1
      %s343 = scalar_select %p342, %s24, 1
      %p344 = scmp.lt.s32.totalorder %s25, 0
      %s345 = scalar_select %p344, %s25, 0
      %s346 = sadd.s32 %s345, %s343
      %s347 = scalar_lea.vmem %s8, %s346
      %p348 = scmp.lt.s32.totalorder %s24, 1
      %s349 = scalar_select %p348, %s24, 1
      %s350 = smul.addr %s349, 32
      %s351 = smul.addr %s350, 8
      %s352 = scalar_lea.vmem %s0, %s351
      %s353 = smul.u32 8, %s25
      %p354 = scmp.lt.s32.totalorder %s24, 1
      %s355 = scalar_select %p354, %s24, 1
      %p356 = scmp.lt.s32.totalorder %s353, 7
      %s357 = scalar_select %p356, %s353, 7
      %s358 = smul.addr %s355, 8
      %s359 = sadd.s32 %s357, %s358
      %s360 = smul.addr %s359, 4
      %s361 = scalar_lea.vmem %s5, %s360
      %s362 = smul.u32 8, %s25
      %s363 = smul.u32 8, %s25
      %p364 = scmp.lt.s32.totalorder %s24, 1
      %s365 = scalar_select %p364, %s24, 1
      %p366 = scmp.lt.s32.totalorder %s363, 7
      %s367 = scalar_select %p366, %s363, 7
      %s368 = smul.addr %s365, 8
      %s369 = sadd.s32 %s367, %s368
      %s370 = smul.addr %s369, 4
      %s371 = scalar_lea.vmem %s6, %s370
      %s372 = smul.u32 8, %s25
      %p373 = scmp.lt.s32.totalorder %s24, 1
      %s374 = scalar_select %p373, %s24, 1
      %p375 = scmp.lt.s32.totalorder %s25, 0
      %s376 = scalar_select %p375, %s25, 0
      %s377 = sadd.s32 %s376, %s374
      %s378 = scalar_lea.vmem %s7, %s377
      %p379 = scmp.lt.s32.totalorder %s24, 1
      %s380 = scalar_select %p379, %s24, 1
      %p381 = scmp.lt.s32.totalorder %s25, 0
      %s382 = scalar_select %p381, %s25, 0
      %s383 = sadd.s32 %s382, %s380
      %s384 = scalar_lea.vmem %s8, %s383
      %s386 = smul.u32 %s25, 16
      %s387 = ssub.s32 %s386, 1
      %v388 = vld [vmem:[%s1] sm:$0x1]
      %v389 = vld [vmem:[%s2] sm:$0x1]
      %p390 = scmp.gt.s32.totalorder %s387, 0
      %s391 = scalar_select %p390, %s387, 0
      %p392 = scmp.lt.s32.totalorder %s391, 15
      %s393 = scalar_select %p392, %s391, 15
      %p394 = scmp.ge.s32.totalorder %s387, 0
      %p395 = scmp.lt.s32.totalorder %s387, 16
      %p396 = pnand %p394, %p395
      %p397 = pneg %p396
      %s398 = scalar_select %p397, 1, 0
      %s399 = scvt.s32.f32 %s398
      %s400 = smul.u32 %s393, 16
      %s401 = scalar_lea.vmem %s352, %s400
      %v402 = vld [vmem:[%s401] sm:$0xff]
      %v403 = vld [vmem:[%s401 + $0x8] sm:$0xff]
      %v405 = vperm.slane %v388, 0
      %v407 = vmul.f32 %v402, %v405
      %v408 = vmul.f32 %v403, %v405
      %v410 = vperm.slane %v389, 0
      %v412 = vadd.f32 %v407, %v410
      %v413 = vadd.f32 %v408, %v410
      %v414 = vmax.f32 %v412, 0.0
      %v415 = vmax.f32 %v413, 0.0
      %v416 = vstv %s399
      %v417 = vmul.f32 %v414, %v416
      %v418 = vmul.f32 %v415, %v416
      %p419 = scmp.gt.s32.totalorder %s386, 0
      %s420 = scalar_select %p419, %s386, 0
      %p421 = scmp.lt.s32.totalorder %s420, 15
      %s422 = scalar_select %p421, %s420, 15
      %p423 = scmp.ge.s32.totalorder %s386, 0
      %p424 = scmp.lt.s32.totalorder %s386, 16
      %p425 = pnand %p423, %p424
      %p426 = pneg %p425
      %s427 = scalar_select %p426, 1, 0
      %s428 = scvt.s32.f32 %s427
      %s429 = smul.u32 %s422, 16
      %s430 = scalar_lea.vmem %s352, %s429
      %v431 = vld [vmem:[%s430] sm:$0xff]
      %v432 = vld [vmem:[%s430 + $0x8] sm:$0xff]
      %v433 = vmul.f32 %v431, %v405
      %v434 = vmul.f32 %v432, %v405
      %v435 = vadd.f32 %v433, %v410
      %v436 = vadd.f32 %v434, %v410
      %v437 = vmax.f32 %v435, 0.0
      %v438 = vmax.f32 %v436, 0.0
      %v439 = vstv %s428
      %v440 = vmul.f32 %v437, %v439
      %v441 = vmul.f32 %v438, %v439
      %s442 = sadd.s32 %s386, 1
      %p443 = scmp.gt.s32.totalorder %s442, 0
      %s444 = scalar_select %p443, %s442, 0
      %p445 = scmp.lt.s32.totalorder %s444, 15
      %s446 = scalar_select %p445, %s444, 15
      %p447 = scmp.ge.s32.totalorder %s442, 0
      %p448 = scmp.lt.s32.totalorder %s442, 16
      %p449 = pnand %p447, %p448
      %p450 = pneg %p449
      %s451 = scalar_select %p450, 1, 0
      %s452 = scvt.s32.f32 %s451
      %s453 = smul.u32 %s446, 16
      %s454 = scalar_lea.vmem %s352, %s453
      %v455 = vld [vmem:[%s454] sm:$0xff]
      %v456 = vld [vmem:[%s454 + $0x8] sm:$0xff]
      %v457 = vmul.f32 %v455, %v405
      %v458 = vmul.f32 %v456, %v405
      %v459 = vadd.f32 %v457, %v410
      %v460 = vadd.f32 %v458, %v410
      %v461 = vmax.f32 %v459, 0.0
      %v462 = vmax.f32 %v460, 0.0
      %v463 = vstv %s452
      %v464 = vmul.f32 %v461, %v463
      %v465 = vmul.f32 %v462, %v463
      %s466 = sadd.s32 %s386, 2
      %p467 = scmp.gt.s32.totalorder %s466, 0
      %s468 = scalar_select %p467, %s466, 0
      %p469 = scmp.lt.s32.totalorder %s468, 15
      %s470 = scalar_select %p469, %s468, 15
      %p471 = scmp.ge.s32.totalorder %s466, 0
      %p472 = scmp.lt.s32.totalorder %s466, 16
      %p473 = pnand %p471, %p472
      %p474 = pneg %p473
      %s475 = scalar_select %p474, 1, 0
      %s476 = scvt.s32.f32 %s475
      %s477 = smul.u32 %s470, 16
      %s478 = scalar_lea.vmem %s352, %s477
      %v479 = vld [vmem:[%s478] sm:$0xff]
      %v480 = vld [vmem:[%s478 + $0x8] sm:$0xff]
      %v481 = vmul.f32 %v479, %v405
      %v482 = vmul.f32 %v480, %v405
      %v483 = vadd.f32 %v481, %v410
      %v484 = vadd.f32 %v482, %v410
      %v485 = vmax.f32 %v483, 0.0
      %v486 = vmax.f32 %v484, 0.0
      %v487 = vstv %s476
      %v488 = vmul.f32 %v485, %v487
      %v489 = vmul.f32 %v486, %v487
      %s490 = sadd.s32 %s386, 3
      %p491 = scmp.gt.s32.totalorder %s490, 0
      %s492 = scalar_select %p491, %s490, 0
      %p493 = scmp.lt.s32.totalorder %s492, 15
      %s494 = scalar_select %p493, %s492, 15
      %p495 = scmp.ge.s32.totalorder %s490, 0
      %p496 = scmp.lt.s32.totalorder %s490, 16
      %p497 = pnand %p495, %p496
      %p498 = pneg %p497
      %s499 = scalar_select %p498, 1, 0
      %s500 = scvt.s32.f32 %s499
      %s501 = smul.u32 %s494, 16
      %s502 = scalar_lea.vmem %s352, %s501
      %v503 = vld [vmem:[%s502] sm:$0xff]
      %v504 = vld [vmem:[%s502 + $0x8] sm:$0xff]
      %v505 = vmul.f32 %v503, %v405
      %v506 = vmul.f32 %v504, %v405
      %v507 = vadd.f32 %v505, %v410
      %v508 = vadd.f32 %v506, %v410
      %v509 = vmax.f32 %v507, 0.0
      %v510 = vmax.f32 %v508, 0.0
      %v511 = vstv %s500
      %v512 = vmul.f32 %v509, %v511
      %v513 = vmul.f32 %v510, %v511
      %s514 = sadd.s32 %s386, 4
      %p515 = scmp.gt.s32.totalorder %s514, 0
      %s516 = scalar_select %p515, %s514, 0
      %p517 = scmp.lt.s32.totalorder %s516, 15
      %s518 = scalar_select %p517, %s516, 15
      %p519 = scmp.ge.s32.totalorder %s514, 0
      %p520 = scmp.lt.s32.totalorder %s514, 16
      %p521 = pnand %p519, %p520
      %p522 = pneg %p521
      %s523 = scalar_select %p522, 1, 0
      %s524 = scvt.s32.f32 %s523
      %s525 = smul.u32 %s518, 16
      %s526 = scalar_lea.vmem %s352, %s525
      %v527 = vld [vmem:[%s526] sm:$0xff]
      %v528 = vld [vmem:[%s526 + $0x8] sm:$0xff]
      %v529 = vmul.f32 %v527, %v405
      %v530 = vmul.f32 %v528, %v405
      %v531 = vadd.f32 %v529, %v410
      %v532 = vadd.f32 %v530, %v410
      %v533 = vmax.f32 %v531, 0.0
      %v534 = vmax.f32 %v532, 0.0
      %v535 = vstv %s524
      %v536 = vmul.f32 %v533, %v535
      %v537 = vmul.f32 %v534, %v535
      %s538 = sadd.s32 %s386, 5
      %p539 = scmp.gt.s32.totalorder %s538, 0
      %s540 = scalar_select %p539, %s538, 0
      %p541 = scmp.lt.s32.totalorder %s540, 15
      %s542 = scalar_select %p541, %s540, 15
      %p543 = scmp.ge.s32.totalorder %s538, 0
      %p544 = scmp.lt.s32.totalorder %s538, 16
      %p545 = pnand %p543, %p544
      %p546 = pneg %p545
      %s547 = scalar_select %p546, 1, 0
      %s548 = scvt.s32.f32 %s547
      %s549 = smul.u32 %s542, 16
      %s550 = scalar_lea.vmem %s352, %s549
      %v551 = vld [vmem:[%s550] sm:$0xff]
      %v552 = vld [vmem:[%s550 + $0x8] sm:$0xff]
      %v553 = vmul.f32 %v551, %v405
      %v554 = vmul.f32 %v552, %v405
      %v555 = vadd.f32 %v553, %v410
      %v556 = vadd.f32 %v554, %v410
      %v557 = vmax.f32 %v555, 0.0
      %v558 = vmax.f32 %v556, 0.0
      %v559 = vstv %s548
      %v560 = vmul.f32 %v557, %v559
      %v561 = vmul.f32 %v558, %v559
      %s562 = sadd.s32 %s386, 6
      %p563 = scmp.gt.s32.totalorder %s562, 0
      %s564 = scalar_select %p563, %s562, 0
      %p565 = scmp.lt.s32.totalorder %s564, 15
      %s566 = scalar_select %p565, %s564, 15
      %p567 = scmp.ge.s32.totalorder %s562, 0
      %p568 = scmp.lt.s32.totalorder %s562, 16
      %p569 = pnand %p567, %p568
      %p570 = pneg %p569
      %s571 = scalar_select %p570, 1, 0
      %s572 = scvt.s32.f32 %s571
      %s573 = smul.u32 %s566, 16
      %s574 = scalar_lea.vmem %s352, %s573
      %v575 = vld [vmem:[%s574] sm:$0xff]
      %v576 = vld [vmem:[%s574 + $0x8] sm:$0xff]
      %v577 = vmul.f32 %v575, %v405
      %v578 = vmul.f32 %v576, %v405
      %v579 = vadd.f32 %v577, %v410
      %v580 = vadd.f32 %v578, %v410
      %v581 = vmax.f32 %v579, 0.0
      %v582 = vmax.f32 %v580, 0.0
      %v583 = vstv %s572
      %v584 = vmul.f32 %v581, %v583
      %v585 = vmul.f32 %v582, %v583
      %s586 = sadd.s32 %s386, 7
      %p587 = scmp.gt.s32.totalorder %s586, 0
      %s588 = scalar_select %p587, %s586, 0
      %p589 = scmp.lt.s32.totalorder %s588, 15
      %s590 = scalar_select %p589, %s588, 15
      %p591 = scmp.ge.s32.totalorder %s586, 0
      %p592 = scmp.lt.s32.totalorder %s586, 16
      %p593 = pnand %p591, %p592
      %p594 = pneg %p593
      %s595 = scalar_select %p594, 1, 0
      %s596 = scvt.s32.f32 %s595
      %s597 = smul.u32 %s590, 16
      %s598 = scalar_lea.vmem %s352, %s597
      %v599 = vld [vmem:[%s598] sm:$0xff]
      %v600 = vld [vmem:[%s598 + $0x8] sm:$0xff]
      %v601 = vmul.f32 %v599, %v405
      %v602 = vmul.f32 %v600, %v405
      %v603 = vadd.f32 %v601, %v410
      %v604 = vadd.f32 %v602, %v410
      %v605 = vmax.f32 %v603, 0.0
      %v606 = vmax.f32 %v604, 0.0
      %v607 = vstv %s596
      %v608 = vmul.f32 %v605, %v607
      %v609 = vmul.f32 %v606, %v607
      %s610 = sadd.s32 %s386, 8
      %p611 = scmp.gt.s32.totalorder %s610, 0
      %s612 = scalar_select %p611, %s610, 0
      %p613 = scmp.lt.s32.totalorder %s612, 15
      %s614 = scalar_select %p613, %s612, 15
      %p615 = scmp.ge.s32.totalorder %s610, 0
      %p616 = scmp.lt.s32.totalorder %s610, 16
      %p617 = pnand %p615, %p616
      %p618 = pneg %p617
      %s619 = scalar_select %p618, 1, 0
      %s620 = scvt.s32.f32 %s619
      %s621 = smul.u32 %s614, 16
      %s622 = scalar_lea.vmem %s352, %s621
      %v623 = vld [vmem:[%s622] sm:$0xff]
      %v624 = vld [vmem:[%s622 + $0x8] sm:$0xff]
      %v625 = vmul.f32 %v623, %v405
      %v626 = vmul.f32 %v624, %v405
      %v627 = vadd.f32 %v625, %v410
      %v628 = vadd.f32 %v626, %v410
      %v629 = vmax.f32 %v627, 0.0
      %v630 = vmax.f32 %v628, 0.0
      %v631 = vstv %s620
      %v632 = vmul.f32 %v629, %v631
      %v633 = vmul.f32 %v630, %v631
      %s634 = sadd.s32 %s386, 9
      %p635 = scmp.gt.s32.totalorder %s634, 0
      %s636 = scalar_select %p635, %s634, 0
      %p637 = scmp.lt.s32.totalorder %s636, 15
      %s638 = scalar_select %p637, %s636, 15
      %p639 = scmp.ge.s32.totalorder %s634, 0
      %p640 = scmp.lt.s32.totalorder %s634, 16
      %p641 = pnand %p639, %p640
      %p642 = pneg %p641
      %s643 = scalar_select %p642, 1, 0
      %s644 = scvt.s32.f32 %s643
      %s645 = smul.u32 %s638, 16
      %s646 = scalar_lea.vmem %s352, %s645
      %v647 = vld [vmem:[%s646] sm:$0xff]
      %v648 = vld [vmem:[%s646 + $0x8] sm:$0xff]
      %v649 = vmul.f32 %v647, %v405
      %v650 = vmul.f32 %v648, %v405
      %v651 = vadd.f32 %v649, %v410
      %v652 = vadd.f32 %v650, %v410
      %v653 = vmax.f32 %v651, 0.0
      %v654 = vmax.f32 %v652, 0.0
      %v655 = vstv %s644
      %v656 = vmul.f32 %v653, %v655
      %v657 = vmul.f32 %v654, %v655
      %s658 = sadd.s32 %s386, 10
      %p659 = scmp.gt.s32.totalorder %s658, 0
      %s660 = scalar_select %p659, %s658, 0
      %p661 = scmp.lt.s32.totalorder %s660, 15
      %s662 = scalar_select %p661, %s660, 15
      %p663 = scmp.ge.s32.totalorder %s658, 0
      %p664 = scmp.lt.s32.totalorder %s658, 16
      %p665 = pnand %p663, %p664
      %p666 = pneg %p665
      %s667 = scalar_select %p666, 1, 0
      %s668 = scvt.s32.f32 %s667
      %s669 = smul.u32 %s662, 16
      %s670 = scalar_lea.vmem %s352, %s669
      %v671 = vld [vmem:[%s670] sm:$0xff]
      %v672 = vld [vmem:[%s670 + $0x8] sm:$0xff]
      %v673 = vmul.f32 %v671, %v405
      %v674 = vmul.f32 %v672, %v405
      %v675 = vadd.f32 %v673, %v410
      %v676 = vadd.f32 %v674, %v410
      %v677 = vmax.f32 %v675, 0.0
      %v678 = vmax.f32 %v676, 0.0
      %v679 = vstv %s668
      %v680 = vmul.f32 %v677, %v679
      %v681 = vmul.f32 %v678, %v679
      %s682 = sadd.s32 %s386, 11
      %p683 = scmp.gt.s32.totalorder %s682, 0
      %s684 = scalar_select %p683, %s682, 0
      %p685 = scmp.lt.s32.totalorder %s684, 15
      %s686 = scalar_select %p685, %s684, 15
      %p687 = scmp.ge.s32.totalorder %s682, 0
      %p688 = scmp.lt.s32.totalorder %s682, 16
      %p689 = pnand %p687, %p688
      %p690 = pneg %p689
      %s691 = scalar_select %p690, 1, 0
      %s692 = scvt.s32.f32 %s691
      %s693 = smul.u32 %s686, 16
      %s694 = scalar_lea.vmem %s352, %s693
      %v695 = vld [vmem:[%s694] sm:$0xff]
      %v696 = vld [vmem:[%s694 + $0x8] sm:$0xff]
      %v697 = vmul.f32 %v695, %v405
      %v698 = vmul.f32 %v696, %v405
      %v699 = vadd.f32 %v697, %v410
      %v700 = vadd.f32 %v698, %v410
      %v701 = vmax.f32 %v699, 0.0
      %v702 = vmax.f32 %v700, 0.0
      %v703 = vstv %s692
      %v704 = vmul.f32 %v701, %v703
      %v705 = vmul.f32 %v702, %v703
      %s706 = sadd.s32 %s386, 12
      %p707 = scmp.gt.s32.totalorder %s706, 0
      %s708 = scalar_select %p707, %s706, 0
      %p709 = scmp.lt.s32.totalorder %s708, 15
      %s710 = scalar_select %p709, %s708, 15
      %p711 = scmp.ge.s32.totalorder %s706, 0
      %p712 = scmp.lt.s32.totalorder %s706, 16
      %p713 = pnand %p711, %p712
      %p714 = pneg %p713
      %s715 = scalar_select %p714, 1, 0
      %s716 = scvt.s32.f32 %s715
      %s717 = smul.u32 %s710, 16
      %s718 = scalar_lea.vmem %s352, %s717
      %v719 = vld [vmem:[%s718] sm:$0xff]
      %v720 = vld [vmem:[%s718 + $0x8] sm:$0xff]
      %v721 = vmul.f32 %v719, %v405
      %v722 = vmul.f32 %v720, %v405
      %v723 = vadd.f32 %v721, %v410
      %v724 = vadd.f32 %v722, %v410
      %v725 = vmax.f32 %v723, 0.0
      %v726 = vmax.f32 %v724, 0.0
      %v727 = vstv %s716
      %v728 = vmul.f32 %v725, %v727
      %v729 = vmul.f32 %v726, %v727
      %s730 = sadd.s32 %s386, 13
      %p731 = scmp.gt.s32.totalorder %s730, 0
      %s732 = scalar_select %p731, %s730, 0
      %p733 = scmp.lt.s32.totalorder %s732, 15
      %s734 = scalar_select %p733, %s732, 15
      %p735 = scmp.ge.s32.totalorder %s730, 0
      %p736 = scmp.lt.s32.totalorder %s730, 16
      %p737 = pnand %p735, %p736
      %p738 = pneg %p737
      %s739 = scalar_select %p738, 1, 0
      %s740 = scvt.s32.f32 %s739
      %s741 = smul.u32 %s734, 16
      %s742 = scalar_lea.vmem %s352, %s741
      %v743 = vld [vmem:[%s742] sm:$0xff]
      %v744 = vld [vmem:[%s742 + $0x8] sm:$0xff]
      %v745 = vmul.f32 %v743, %v405
      %v746 = vmul.f32 %v744, %v405
      %v747 = vadd.f32 %v745, %v410
      %v748 = vadd.f32 %v746, %v410
      %v749 = vmax.f32 %v747, 0.0
      %v750 = vmax.f32 %v748, 0.0
      %v751 = vstv %s740
      %v752 = vmul.f32 %v749, %v751
      %v753 = vmul.f32 %v750, %v751
      %s754 = sadd.s32 %s386, 14
      %p755 = scmp.gt.s32.totalorder %s754, 0
      %s756 = scalar_select %p755, %s754, 0
      %p757 = scmp.lt.s32.totalorder %s756, 15
      %s758 = scalar_select %p757, %s756, 15
      %p759 = scmp.ge.s32.totalorder %s754, 0
      %p760 = scmp.lt.s32.totalorder %s754, 16
      %p761 = pnand %p759, %p760
      %p762 = pneg %p761
      %s763 = scalar_select %p762, 1, 0
      %s764 = scvt.s32.f32 %s763
      %s765 = smul.u32 %s758, 16
      %s766 = scalar_lea.vmem %s352, %s765
      %v767 = vld [vmem:[%s766] sm:$0xff]
      %v768 = vld [vmem:[%s766 + $0x8] sm:$0xff]
      %v769 = vmul.f32 %v767, %v405
      %v770 = vmul.f32 %v768, %v405
      %v771 = vadd.f32 %v769, %v410
      %v772 = vadd.f32 %v770, %v410
      %v773 = vmax.f32 %v771, 0.0
      %v774 = vmax.f32 %v772, 0.0
      %v775 = vstv %s764
      %v776 = vmul.f32 %v773, %v775
      %v777 = vmul.f32 %v774, %v775
      %s778 = sadd.s32 %s386, 15
      %p779 = scmp.gt.s32.totalorder %s778, 0
      %s780 = scalar_select %p779, %s778, 0
      %p781 = scmp.lt.s32.totalorder %s780, 15
      %s782 = scalar_select %p781, %s780, 15
      %p783 = scmp.ge.s32.totalorder %s778, 0
      %p784 = scmp.lt.s32.totalorder %s778, 16
      %p785 = pnand %p783, %p784
      %p786 = pneg %p785
      %s787 = scalar_select %p786, 1, 0
      %s788 = scvt.s32.f32 %s787
      %s789 = smul.u32 %s782, 16
      %s790 = scalar_lea.vmem %s352, %s789
      %v791 = vld [vmem:[%s790] sm:$0xff]
      %v792 = vld [vmem:[%s790 + $0x8] sm:$0xff]
      %v793 = vmul.f32 %v791, %v405
      %v794 = vmul.f32 %v792, %v405
      %v795 = vadd.f32 %v793, %v410
      %v796 = vadd.f32 %v794, %v410
      %v797 = vmax.f32 %v795, 0.0
      %v798 = vmax.f32 %v796, 0.0
      %v799 = vstv %s788
      %v800 = vmul.f32 %v797, %v799
      %v801 = vmul.f32 %v798, %v799
      %vm802 = vcmask 24576
      %803 = vst.msk [vmem:[#allocation2 + $0x7] sm:$0x1] %vm802, 0.0
      %804 = vst.msk [vmem:[#allocation2 + $0x27] sm:$0x1] %vm802, 0.0
      %805 = vst.msk [vmem:[#allocation2 + $0x47] sm:$0x1] %vm802, 0.0
      %806 = vst.msk [vmem:[#allocation2 + $0x67] sm:$0x1] %vm802, 0.0
      %807 = vst.msk [vmem:[#allocation2 + $0x87] sm:$0x1] %vm802, 0.0
      %808 = vst.msk [vmem:[#allocation2 + $0xa7] sm:$0x1] %vm802, 0.0
      %809 = vst.msk [vmem:[#allocation2 + $0xc7] sm:$0x1] %vm802, 0.0
      %810 = vst.msk [vmem:[#allocation2 + $0xe7] sm:$0x1] %vm802, 0.0
      %811 = vst.msk [vmem:[#allocation2 + $0x107] sm:$0x1] %vm802, 0.0
      %812 = vst.msk [vmem:[#allocation2 + $0x127] sm:$0x1] %vm802, 0.0
      %813 = vst.msk [vmem:[#allocation2 + $0x147] sm:$0x1] %vm802, 0.0
      %814 = vst.msk [vmem:[#allocation2 + $0x167] sm:$0x1] %vm802, 0.0
      %815 = vst.msk [vmem:[#allocation2 + $0x187] sm:$0x1] %vm802, 0.0
      %816 = vst.msk [vmem:[#allocation2 + $0x1a7] sm:$0x1] %vm802, 0.0
      %817 = vst.msk [vmem:[#allocation2 + $0x1c7] sm:$0x1] %vm802, 0.0
      %818 = vst.msk [vmem:[#allocation2 + $0x1e7] sm:$0x1] %vm802, 0.0
      %819 = vst.msk [vmem:[#allocation2 + $0x207] sm:$0x1] %vm802, 0.0
      %820 = vst.msk [vmem:[#allocation2 + $0x18] sm:$0x1] %vm802, 0.0
      %821 = vst.msk [vmem:[#allocation2 + $0x38] sm:$0x1] %vm802, 0.0
      %822 = vst.msk [vmem:[#allocation2 + $0x58] sm:$0x1] %vm802, 0.0
      %823 = vst.msk [vmem:[#allocation2 + $0x78] sm:$0x1] %vm802, 0.0
      %824 = vst.msk [vmem:[#allocation2 + $0x98] sm:$0x1] %vm802, 0.0
      %825 = vst.msk [vmem:[#allocation2 + $0xb8] sm:$0x1] %vm802, 0.0
      %826 = vst.msk [vmem:[#allocation2 + $0xd8] sm:$0x1] %vm802, 0.0
      %827 = vst.msk [vmem:[#allocation2 + $0xf8] sm:$0x1] %vm802, 0.0
      %828 = vst.msk [vmem:[#allocation2 + $0x118] sm:$0x1] %vm802, 0.0
      %829 = vst.msk [vmem:[#allocation2 + $0x138] sm:$0x1] %vm802, 0.0
      %830 = vst.msk [vmem:[#allocation2 + $0x158] sm:$0x1] %vm802, 0.0
      %831 = vst.msk [vmem:[#allocation2 + $0x178] sm:$0x1] %vm802, 0.0
      %832 = vst.msk [vmem:[#allocation2 + $0x198] sm:$0x1] %vm802, 0.0
      %833 = vst.msk [vmem:[#allocation2 + $0x1b8] sm:$0x1] %vm802, 0.0
      %834 = vst.msk [vmem:[#allocation2 + $0x1d8] sm:$0x1] %vm802, 0.0
      %835 = vst.msk [vmem:[#allocation2 + $0x1f8] sm:$0x1] %vm802, 0.0
      %836 = vst.msk [vmem:[#allocation2 + $0x218] sm:$0x1] %vm802, 0.0
      %vm837 = vcmask 31744
      %838 = vst.msk [vmem:[#allocation2 + $0x8] sm:$0xff] %vm837, %v417
      %839 = vst.msk [vmem:[#allocation2 + $0x10] sm:$0xff] %vm837, %v418
      %840 = vst.msk [vmem:[#allocation2 + $0x28] sm:$0xff] %vm837, %v440
      %841 = vst.msk [vmem:[#allocation2 + $0x30] sm:$0xff] %vm837, %v441
      %842 = vst.msk [vmem:[#allocation2 + $0x48] sm:$0xff] %vm837, %v464
      %843 = vst.msk [vmem:[#allocation2 + $0x50] sm:$0xff] %vm837, %v465
      %844 = vst.msk [vmem:[#allocation2 + $0x68] sm:$0xff] %vm837, %v488
      %845 = vst.msk [vmem:[#allocation2 + $0x70] sm:$0xff] %vm837, %v489
      %846 = vst.msk [vmem:[#allocation2 + $0x88] sm:$0xff] %vm837, %v512
      %847 = vst.msk [vmem:[#allocation2 + $0x90] sm:$0xff] %vm837, %v513
      %848 = vst.msk [vmem:[#allocation2 + $0xa8] sm:$0xff] %vm837, %v536
      %849 = vst.msk [vmem:[#allocation2 + $0xb0] sm:$0xff] %vm837, %v537
      %850 = vst.msk [vmem:[#allocation2 + $0xc8] sm:$0xff] %vm837, %v560
      %851 = vst.msk [vmem:[#allocation2 + $0xd0] sm:$0xff] %vm837, %v561
      %852 = vst.msk [vmem:[#allocation2 + $0xe8] sm:$0xff] %vm837, %v584
      %853 = vst.msk [vmem:[#allocation2 + $0xf0] sm:$0xff] %vm837, %v585
      %854 = vst.msk [vmem:[#allocation2 + $0x108] sm:$0xff] %vm837, %v608
      %855 = vst.msk [vmem:[#allocation2 + $0x110] sm:$0xff] %vm837, %v609
      %856 = vst.msk [vmem:[#allocation2 + $0x128] sm:$0xff] %vm837, %v632
      %857 = vst.msk [vmem:[#allocation2 + $0x130] sm:$0xff] %vm837, %v633
      %858 = vst.msk [vmem:[#allocation2 + $0x148] sm:$0xff] %vm837, %v656
      %859 = vst.msk [vmem:[#allocation2 + $0x150] sm:$0xff] %vm837, %v657
      %860 = vst.msk [vmem:[#allocation2 + $0x168] sm:$0xff] %vm837, %v680
      %861 = vst.msk [vmem:[#allocation2 + $0x170] sm:$0xff] %vm837, %v681
      %862 = vst.msk [vmem:[#allocation2 + $0x188] sm:$0xff] %vm837, %v704
      %863 = vst.msk [vmem:[#allocation2 + $0x190] sm:$0xff] %vm837, %v705
      %864 = vst.msk [vmem:[#allocation2 + $0x1a8] sm:$0xff] %vm837, %v728
      %865 = vst.msk [vmem:[#allocation2 + $0x1b0] sm:$0xff] %vm837, %v729
      %866 = vst.msk [vmem:[#allocation2 + $0x1c8] sm:$0xff] %vm837, %v752
      %867 = vst.msk [vmem:[#allocation2 + $0x1d0] sm:$0xff] %vm837, %v753
      %868 = vst.msk [vmem:[#allocation2 + $0x1e8] sm:$0xff] %vm837, %v776
      %869 = vst.msk [vmem:[#allocation2 + $0x1f0] sm:$0xff] %vm837, %v777
      %870 = vst.msk [vmem:[#allocation2 + $0x208] sm:$0xff] %vm837, %v800
      %871 = vst.msk [vmem:[#allocation2 + $0x210] sm:$0xff] %vm837, %v801
      %s872 = scalar_lea.vmem [#allocation2], 7
      %v873 = vld [vmem:[%s872] ss:$2 sm:$0xff]
      %s874 = scalar_lea.vmem [#allocation2], 71
      %v875 = vld [vmem:[%s874] ss:$2 sm:$0xff]
      %s876 = scalar_lea.vmem [#allocation2], 135
      %v877 = vld [vmem:[%s876] ss:$2 sm:$0xff]
      %s878 = scalar_lea.vmem [#allocation2], 199
      %v879 = vld [vmem:[%s878] ss:$2 sm:$0xff]
      %s880 = scalar_lea.vmem [#allocation2], 263
      %v881 = vld [vmem:[%s880] ss:$2 sm:$0xff]
      %s882 = scalar_lea.vmem [#allocation2], 327
      %v883 = vld [vmem:[%s882] ss:$2 sm:$0xff]
      %s884 = scalar_lea.vmem [#allocation2], 391
      %v885 = vld [vmem:[%s884] ss:$2 sm:$0xff]
      %s886 = scalar_lea.vmem [#allocation2], 455
      %v887 = vld [vmem:[%s886] ss:$2 sm:$0xff]
      %v888 = vpack.c.bf16 %v875, %v873
      %v889 = vpack.c.bf16 %v879, %v877
      %v890 = vpack.c.bf16 %v883, %v881
      %v891 = vpack.c.bf16 %v887, %v885
      %v892 = vld [vmem:[%s3] sm:$0x3]
      %s893 = scalar_lea.vmem [#allocation2], 8
      %v894 = vld [vmem:[%s893] ss:$2 sm:$0xff]
      %s895 = scalar_lea.vmem [#allocation2], 72
      %v896 = vld [vmem:[%s895] ss:$2 sm:$0xff]
      %s897 = scalar_lea.vmem [#allocation2], 136
      %v898 = vld [vmem:[%s897] ss:$2 sm:$0xff]
      %s899 = scalar_lea.vmem [#allocation2], 200
      %v900 = vld [vmem:[%s899] ss:$2 sm:$0xff]
      %s901 = scalar_lea.vmem [#allocation2], 264
      %v902 = vld [vmem:[%s901] ss:$2 sm:$0xff]
      %s903 = scalar_lea.vmem [#allocation2], 328
      %v904 = vld [vmem:[%s903] ss:$2 sm:$0xff]
      %s905 = scalar_lea.vmem [#allocation2], 392
      %v906 = vld [vmem:[%s905] ss:$2 sm:$0xff]
      %s907 = scalar_lea.vmem [#allocation2], 456
      %v908 = vld [vmem:[%s907] ss:$2 sm:$0xff]
      %v909 = vpack.c.bf16 %v896, %v894
      %v910 = vpack.c.bf16 %v900, %v898
      %v911 = vpack.c.bf16 %v904, %v902
      %v912 = vpack.c.bf16 %v908, %v906
      %s913 = scalar_lea.vmem %s3, 2
      %v914 = vld [vmem:[%s913] sm:$0x3]
      %v916 = vsel %vm837, %v909, 0
      %v919 = vsel %vm837, %v910, 0
      %v922 = vsel %vm837, %v911, 0
      %v925 = vsel %vm837, %v912, 0
      %vm927 = vcmask 1041408
      %v929 = vsel %vm927, %v914, 0
      %931 = vmatpush.bf16.msra.mxu0 0
      %932 = vmatpush.bf16.msra.mxu0 0
      %933 = vmatpush.bf16.msra.mxu0 0
      %934 = vmatpush.bf16.msra.mxu0 0
      %935 = vmatpush.bf16.msra.mxu0 0
      %936 = vmatpush.bf16.msra.mxu0 0
      %937 = vmatpush.bf16.msra.mxu0 0
      %938 = vmatpush.bf16.msra.mxu0 %v929
      %939 = vmatmul.bf16.gmra.mxu0 %v916
      %v940 = vpop.f32.mrf.mxu0
      %v941 = vadd.f32 0.0, %v940
      %v942 = vpop.f32.mrf.mxu0
      %v943 = vadd.f32 0.0, %v942
      %944 = vmatmul.bf16.gmra.mxu0 %v919
      %v945 = vpop.f32.mrf.mxu0
      %v946 = vadd.f32 0.0, %v945
      %v947 = vpop.f32.mrf.mxu0
      %v948 = vadd.f32 0.0, %v947
      %949 = vmatmul.bf16.gmra.mxu0 %v922
      %v950 = vpop.f32.mrf.mxu0
      %v951 = vadd.f32 0.0, %v950
      %v952 = vpop.f32.mrf.mxu0
      %v953 = vadd.f32 0.0, %v952
      %954 = vmatmul.bf16.gmra.mxu0 %v925
      %v955 = vpop.f32.mrf.mxu0
      %v956 = vadd.f32 0.0, %v955
      %v957 = vpop.f32.mrf.mxu0
      %v958 = vadd.f32 0.0, %v957
      %959 = vdwg.mxu0
      %v961 = vsel %vm837, %v888, 0
      %v964 = vsel %vm837, %v889, 0
      %v967 = vsel %vm837, %v890, 0
      %v970 = vsel %vm837, %v891, 0
      %v973 = vsel %vm927, %v892, 0
      %975 = vmatpush.bf16.msra.mxu0 0
      %976 = vmatpush.bf16.msra.mxu0 0
      %977 = vmatpush.bf16.msra.mxu0 0
      %978 = vmatpush.bf16.msra.mxu0 0
      %979 = vmatpush.bf16.msra.mxu0 0
      %980 = vmatpush.bf16.msra.mxu0 0
      %981 = vmatpush.bf16.msra.mxu0 0
      %982 = vmatpush.bf16.msra.mxu0 %v973
      %983 = vmatmul.bf16.gmra.mxu0 %v961
      %v984 = vpop.f32.mrf.mxu0
      %v985 = vadd.f32 %v941, %v984
      %v986 = vpop.f32.mrf.mxu0
      %v987 = vadd.f32 %v943, %v986
      %988 = vmatmul.bf16.gmra.mxu0 %v964
      %v989 = vpop.f32.mrf.mxu0
      %v990 = vadd.f32 %v946, %v989
      %v991 = vpop.f32.mrf.mxu0
      %v992 = vadd.f32 %v948, %v991
      %993 = vmatmul.bf16.gmra.mxu0 %v967
      %v994 = vpop.f32.mrf.mxu0
      %v995 = vadd.f32 %v951, %v994
      %v996 = vpop.f32.mrf.mxu0
      %v997 = vadd.f32 %v953, %v996
      %998 = vmatmul.bf16.gmra.mxu0 %v970
      %v999 = vpop.f32.mrf.mxu0
      %v1000 = vadd.f32 %v956, %v999
      %v1001 = vpop.f32.mrf.mxu0
      %v1002 = vadd.f32 %v958, %v1001
      %1003 = vdwg.mxu0
      %s1004 = scalar_lea.vmem [#allocation2], 9
      %v1005 = vld [vmem:[%s1004] ss:$2 sm:$0xff]
      %s1006 = scalar_lea.vmem [#allocation2], 73
      %v1007 = vld [vmem:[%s1006] ss:$2 sm:$0xff]
      %s1008 = scalar_lea.vmem [#allocation2], 137
      %v1009 = vld [vmem:[%s1008] ss:$2 sm:$0xff]
      %s1010 = scalar_lea.vmem [#allocation2], 201
      %v1011 = vld [vmem:[%s1010] ss:$2 sm:$0xff]
      %s1012 = scalar_lea.vmem [#allocation2], 265
      %v1013 = vld [vmem:[%s1012] ss:$2 sm:$0xff]
      %s1014 = scalar_lea.vmem [#allocation2], 329
      %v1015 = vld [vmem:[%s1014] ss:$2 sm:$0xff]
      %s1016 = scalar_lea.vmem [#allocation2], 393
      %v1017 = vld [vmem:[%s1016] ss:$2 sm:$0xff]
      %s1018 = scalar_lea.vmem [#allocation2], 457
      %v1019 = vld [vmem:[%s1018] ss:$2 sm:$0xff]
      %v1020 = vpack.c.bf16 %v1007, %v1005
      %v1021 = vpack.c.bf16 %v1011, %v1009
      %v1022 = vpack.c.bf16 %v1015, %v1013
      %v1023 = vpack.c.bf16 %v1019, %v1017
      %s1024 = scalar_lea.vmem %s3, 4
      %v1025 = vld [vmem:[%s1024] sm:$0x3]
      %v1027 = vsel %vm837, %v1020, 0
      %v1030 = vsel %vm837, %v1021, 0
      %v1033 = vsel %vm837, %v1022, 0
      %v1036 = vsel %vm837, %v1023, 0
      %v1039 = vsel %vm927, %v1025, 0
      %1041 = vmatpush.bf16.msra.mxu0 0
      %1042 = vmatpush.bf16.msra.mxu0 0
      %1043 = vmatpush.bf16.msra.mxu0 0
      %1044 = vmatpush.bf16.msra.mxu0 0
      %1045 = vmatpush.bf16.msra.mxu0 0
      %1046 = vmatpush.bf16.msra.mxu0 0
      %1047 = vmatpush.bf16.msra.mxu0 0
      %1048 = vmatpush.bf16.msra.mxu0 %v1039
      %1049 = vmatmul.bf16.gmra.mxu0 %v1027
      %v1050 = vpop.f32.mrf.mxu0
      %v1051 = vadd.f32 0.0, %v1050
      %v1052 = vpop.f32.mrf.mxu0
      %v1053 = vadd.f32 0.0, %v1052
      %1054 = vmatmul.bf16.gmra.mxu0 %v1030
      %v1055 = vpop.f32.mrf.mxu0
      %v1056 = vadd.f32 0.0, %v1055
      %v1057 = vpop.f32.mrf.mxu0
      %v1058 = vadd.f32 0.0, %v1057
      %1059 = vmatmul.bf16.gmra.mxu0 %v1033
      %v1060 = vpop.f32.mrf.mxu0
      %v1061 = vadd.f32 0.0, %v1060
      %v1062 = vpop.f32.mrf.mxu0
      %v1063 = vadd.f32 0.0, %v1062
      %1064 = vmatmul.bf16.gmra.mxu0 %v1036
      %v1065 = vpop.f32.mrf.mxu0
      %v1066 = vadd.f32 0.0, %v1065
      %v1067 = vpop.f32.mrf.mxu0
      %v1068 = vadd.f32 0.0, %v1067
      %1069 = vdwg.mxu0
      %v1070 = vadd.f32 %v985, %v1051
      %v1071 = vadd.f32 %v987, %v1053
      %v1072 = vadd.f32 %v990, %v1056
      %v1073 = vadd.f32 %v992, %v1058
      %v1074 = vadd.f32 %v995, %v1061
      %v1075 = vadd.f32 %v997, %v1063
      %v1076 = vadd.f32 %v1000, %v1066
      %v1077 = vadd.f32 %v1002, %v1068
      %s1078 = scalar_lea.vmem [#allocation2], 32
      %s1079 = scalar_lea.vmem %s1078, 7 [#allocation2]
      %v1080 = vld [vmem:[%s1079] ss:$2 sm:$0xff]
      %s1081 = scalar_lea.vmem %s1078, 71 [#allocation2]
      %v1082 = vld [vmem:[%s1081] ss:$2 sm:$0xff]
      %s1083 = scalar_lea.vmem %s1078, 135 [#allocation2]
      %v1084 = vld [vmem:[%s1083] ss:$2 sm:$0xff]
      %s1085 = scalar_lea.vmem %s1078, 199 [#allocation2]
      %v1086 = vld [vmem:[%s1085] ss:$2 sm:$0xff]
      %s1087 = scalar_lea.vmem %s1078, 263 [#allocation2]
      %v1088 = vld [vmem:[%s1087] ss:$2 sm:$0xff]
      %s1089 = scalar_lea.vmem %s1078, 327 [#allocation2]
      %v1090 = vld [vmem:[%s1089] ss:$2 sm:$0xff]
      %s1091 = scalar_lea.vmem %s1078, 391 [#allocation2]
      %v1092 = vld [vmem:[%s1091] ss:$2 sm:$0xff]
      %s1093 = scalar_lea.vmem %s1078, 455 [#allocation2]
      %v1094 = vld [vmem:[%s1093] ss:$2 sm:$0xff]
      %v1095 = vpack.c.bf16 %v1082, %v1080
      %v1096 = vpack.c.bf16 %v1086, %v1084
      %v1097 = vpack.c.bf16 %v1090, %v1088
      %v1098 = vpack.c.bf16 %v1094, %v1092
      %s1099 = scalar_lea.vmem %s3, 6
      %v1100 = vld [vmem:[%s1099] sm:$0x3]
      %v1102 = vsel %vm837, %v1095, 0
      %v1105 = vsel %vm837, %v1096, 0
      %v1108 = vsel %vm837, %v1097, 0
      %v1111 = vsel %vm837, %v1098, 0
      %v1114 = vsel %vm927, %v1100, 0
      %1116 = vmatpush.bf16.msra.mxu0 0
      %1117 = vmatpush.bf16.msra.mxu0 0
      %1118 = vmatpush.bf16.msra.mxu0 0
      %1119 = vmatpush.bf16.msra.mxu0 0
      %1120 = vmatpush.bf16.msra.mxu0 0
      %1121 = vmatpush.bf16.msra.mxu0 0
      %1122 = vmatpush.bf16.msra.mxu0 0
      %1123 = vmatpush.bf16.msra.mxu0 %v1114
      %1124 = vmatmul.bf16.gmra.mxu0 %v1102
      %v1125 = vpop.f32.mrf.mxu0
      %v1126 = vadd.f32 0.0, %v1125
      %v1127 = vpop.f32.mrf.mxu0
      %v1128 = vadd.f32 0.0, %v1127
      %1129 = vmatmul.bf16.gmra.mxu0 %v1105
      %v1130 = vpop.f32.mrf.mxu0
      %v1131 = vadd.f32 0.0, %v1130
      %v1132 = vpop.f32.mrf.mxu0
      %v1133 = vadd.f32 0.0, %v1132
      %1134 = vmatmul.bf16.gmra.mxu0 %v1108
      %v1135 = vpop.f32.mrf.mxu0
      %v1136 = vadd.f32 0.0, %v1135
      %v1137 = vpop.f32.mrf.mxu0
      %v1138 = vadd.f32 0.0, %v1137
      %1139 = vmatmul.bf16.gmra.mxu0 %v1111
      %v1140 = vpop.f32.mrf.mxu0
      %v1141 = vadd.f32 0.0, %v1140
      %v1142 = vpop.f32.mrf.mxu0
      %v1143 = vadd.f32 0.0, %v1142
      %1144 = vdwg.mxu0
      %v1145 = vadd.f32 %v1070, %v1126
      %v1146 = vadd.f32 %v1071, %v1128
      %v1147 = vadd.f32 %v1072, %v1131
      %v1148 = vadd.f32 %v1073, %v1133
      %v1149 = vadd.f32 %v1074, %v1136
      %v1150 = vadd.f32 %v1075, %v1138
      %v1151 = vadd.f32 %v1076, %v1141
      %v1152 = vadd.f32 %v1077, %v1143
      %s1153 = scalar_lea.vmem %s1078, 8 [#allocation2]
      %v1154 = vld [vmem:[%s1153] ss:$2 sm:$0xff]
      %s1155 = scalar_lea.vmem %s1078, 72 [#allocation2]
      %v1156 = vld [vmem:[%s1155] ss:$2 sm:$0xff]
      %s1157 = scalar_lea.vmem %s1078, 136 [#allocation2]
      %v1158 = vld [vmem:[%s1157] ss:$2 sm:$0xff]
      %s1159 = scalar_lea.vmem %s1078, 200 [#allocation2]
      %v1160 = vld [vmem:[%s1159] ss:$2 sm:$0xff]
      %s1161 = scalar_lea.vmem %s1078, 264 [#allocation2]
      %v1162 = vld [vmem:[%s1161] ss:$2 sm:$0xff]
      %s1163 = scalar_lea.vmem %s1078, 328 [#allocation2]
      %v1164 = vld [vmem:[%s1163] ss:$2 sm:$0xff]
      %s1165 = scalar_lea.vmem %s1078, 392 [#allocation2]
      %v1166 = vld [vmem:[%s1165] ss:$2 sm:$0xff]
      %s1167 = scalar_lea.vmem %s1078, 456 [#allocation2]
      %v1168 = vld [vmem:[%s1167] ss:$2 sm:$0xff]
      %v1169 = vpack.c.bf16 %v1156, %v1154
      %v1170 = vpack.c.bf16 %v1160, %v1158
      %v1171 = vpack.c.bf16 %v1164, %v1162
      %v1172 = vpack.c.bf16 %v1168, %v1166
      %s1173 = scalar_lea.vmem %s3, 8
      %v1174 = vld [vmem:[%s1173] sm:$0x3]
      %v1176 = vsel %vm837, %v1169, 0
      %v1179 = vsel %vm837, %v1170, 0
      %v1182 = vsel %vm837, %v1171, 0
      %v1185 = vsel %vm837, %v1172, 0
      %v1188 = vsel %vm927, %v1174, 0
      %1190 = vmatpush.bf16.msra.mxu0 0
      %1191 = vmatpush.bf16.msra.mxu0 0
      %1192 = vmatpush.bf16.msra.mxu0 0
      %1193 = vmatpush.bf16.msra.mxu0 0
      %1194 = vmatpush.bf16.msra.mxu0 0
      %1195 = vmatpush.bf16.msra.mxu0 0
      %1196 = vmatpush.bf16.msra.mxu0 0
      %1197 = vmatpush.bf16.msra.mxu0 %v1188
      %1198 = vmatmul.bf16.gmra.mxu0 %v1176
      %v1199 = vpop.f32.mrf.mxu0
      %v1200 = vadd.f32 0.0, %v1199
      %v1201 = vpop.f32.mrf.mxu0
      %v1202 = vadd.f32 0.0, %v1201
      %1203 = vmatmul.bf16.gmra.mxu0 %v1179
      %v1204 = vpop.f32.mrf.mxu0
      %v1205 = vadd.f32 0.0, %v1204
      %v1206 = vpop.f32.mrf.mxu0
      %v1207 = vadd.f32 0.0, %v1206
      %1208 = vmatmul.bf16.gmra.mxu0 %v1182
      %v1209 = vpop.f32.mrf.mxu0
      %v1210 = vadd.f32 0.0, %v1209
      %v1211 = vpop.f32.mrf.mxu0
      %v1212 = vadd.f32 0.0, %v1211
      %1213 = vmatmul.bf16.gmra.mxu0 %v1185
      %v1214 = vpop.f32.mrf.mxu0
      %v1215 = vadd.f32 0.0, %v1214
      %v1216 = vpop.f32.mrf.mxu0
      %v1217 = vadd.f32 0.0, %v1216
      %1218 = vdwg.mxu0
      %v1219 = vadd.f32 %v1145, %v1200
      %v1220 = vadd.f32 %v1146, %v1202
      %v1221 = vadd.f32 %v1147, %v1205
      %v1222 = vadd.f32 %v1148, %v1207
      %v1223 = vadd.f32 %v1149, %v1210
      %v1224 = vadd.f32 %v1150, %v1212
      %v1225 = vadd.f32 %v1151, %v1215
      %v1226 = vadd.f32 %v1152, %v1217
      %v1227 = vld [vmem:[%s4] sm:$0x3]
      %v1229 = vsel %vm927, %v1227, 0
      %1231 = vmatpush.bf16.msra.mxu0 0
      %1232 = vmatpush.bf16.msra.mxu0 0
      %1233 = vmatpush.bf16.msra.mxu0 0
      %1234 = vmatpush.bf16.msra.mxu0 0
      %1235 = vmatpush.bf16.msra.mxu0 0
      %1236 = vmatpush.bf16.msra.mxu0 0
      %1237 = vmatpush.bf16.msra.mxu0 0
      %1238 = vmatpush.bf16.msra.mxu0 %v1229
      %1239 = vmatmul.bf16.gmra.mxu0 %v1176
      %v1240 = vpop.f32.mrf.mxu0
      %v1241 = vadd.f32 0.0, %v1240
      %v1242 = vpop.f32.mrf.mxu0
      %v1243 = vadd.f32 0.0, %v1242
      %1244 = vmatmul.bf16.gmra.mxu0 %v1179
      %v1245 = vpop.f32.mrf.mxu0
      %v1246 = vadd.f32 0.0, %v1245
      %v1247 = vpop.f32.mrf.mxu0
      %v1248 = vadd.f32 0.0, %v1247
      %1249 = vmatmul.bf16.gmra.mxu0 %v1182
      %v1250 = vpop.f32.mrf.mxu0
      %v1251 = vadd.f32 0.0, %v1250
      %v1252 = vpop.f32.mrf.mxu0
      %v1253 = vadd.f32 0.0, %v1252
      %1254 = vmatmul.bf16.gmra.mxu0 %v1185
      %v1255 = vpop.f32.mrf.mxu0
      %v1256 = vadd.f32 0.0, %v1255
      %v1257 = vpop.f32.mrf.mxu0
      %v1258 = vadd.f32 0.0, %v1257
      %1259 = vdwg.mxu0
      %s1260 = scalar_lea.vmem %s1078, 9 [#allocation2]
      %v1261 = vld [vmem:[%s1260] ss:$2 sm:$0xff]
      %s1262 = scalar_lea.vmem %s1078, 73 [#allocation2]
      %v1263 = vld [vmem:[%s1262] ss:$2 sm:$0xff]
      %s1264 = scalar_lea.vmem %s1078, 137 [#allocation2]
      %v1265 = vld [vmem:[%s1264] ss:$2 sm:$0xff]
      %s1266 = scalar_lea.vmem %s1078, 201 [#allocation2]
      %v1267 = vld [vmem:[%s1266] ss:$2 sm:$0xff]
      %s1268 = scalar_lea.vmem %s1078, 265 [#allocation2]
      %v1269 = vld [vmem:[%s1268] ss:$2 sm:$0xff]
      %s1270 = scalar_lea.vmem %s1078, 329 [#allocation2]
      %v1271 = vld [vmem:[%s1270] ss:$2 sm:$0xff]
      %s1272 = scalar_lea.vmem %s1078, 393 [#allocation2]
      %v1273 = vld [vmem:[%s1272] ss:$2 sm:$0xff]
      %s1274 = scalar_lea.vmem %s1078, 457 [#allocation2]
      %v1275 = vld [vmem:[%s1274] ss:$2 sm:$0xff]
      %v1276 = vpack.c.bf16 %v1263, %v1261
      %v1277 = vpack.c.bf16 %v1267, %v1265
      %v1278 = vpack.c.bf16 %v1271, %v1269
      %v1279 = vpack.c.bf16 %v1275, %v1273
      %s1280 = scalar_lea.vmem %s3, 10
      %v1281 = vld [vmem:[%s1280] sm:$0x3]
      %v1283 = vsel %vm837, %v1276, 0
      %v1286 = vsel %vm837, %v1277, 0
      %v1289 = vsel %vm837, %v1278, 0
      %v1292 = vsel %vm837, %v1279, 0
      %v1295 = vsel %vm927, %v1281, 0
      %1297 = vmatpush.bf16.msra.mxu0 0
      %1298 = vmatpush.bf16.msra.mxu0 0
      %1299 = vmatpush.bf16.msra.mxu0 0
      %1300 = vmatpush.bf16.msra.mxu0 0
      %1301 = vmatpush.bf16.msra.mxu0 0
      %1302 = vmatpush.bf16.msra.mxu0 0
      %1303 = vmatpush.bf16.msra.mxu0 0
      %1304 = vmatpush.bf16.msra.mxu0 %v1295
      %1305 = vmatmul.bf16.gmra.mxu0 %v1283
      %v1306 = vpop.f32.mrf.mxu0
      %v1307 = vadd.f32 0.0, %v1306
      %v1308 = vpop.f32.mrf.mxu0
      %v1309 = vadd.f32 0.0, %v1308
      %1310 = vmatmul.bf16.gmra.mxu0 %v1286
      %v1311 = vpop.f32.mrf.mxu0
      %v1312 = vadd.f32 0.0, %v1311
      %v1313 = vpop.f32.mrf.mxu0
      %v1314 = vadd.f32 0.0, %v1313
      %1315 = vmatmul.bf16.gmra.mxu0 %v1289
      %v1316 = vpop.f32.mrf.mxu0
      %v1317 = vadd.f32 0.0, %v1316
      %v1318 = vpop.f32.mrf.mxu0
      %v1319 = vadd.f32 0.0, %v1318
      %1320 = vmatmul.bf16.gmra.mxu0 %v1292
      %v1321 = vpop.f32.mrf.mxu0
      %v1322 = vadd.f32 0.0, %v1321
      %v1323 = vpop.f32.mrf.mxu0
      %v1324 = vadd.f32 0.0, %v1323
      %1325 = vdwg.mxu0
      %v1326 = vadd.f32 %v1219, %v1307
      %v1327 = vadd.f32 %v1220, %v1309
      %v1328 = vadd.f32 %v1221, %v1312
      %v1329 = vadd.f32 %v1222, %v1314
      %v1330 = vadd.f32 %v1223, %v1317
      %v1331 = vadd.f32 %v1224, %v1319
      %v1332 = vadd.f32 %v1225, %v1322
      %v1333 = vadd.f32 %v1226, %v1324
      %s1334 = scalar_lea.vmem [#allocation2], 64
      %s1335 = scalar_lea.vmem %s1334, 7 [#allocation2]
      %v1336 = vld [vmem:[%s1335] ss:$2 sm:$0xff]
      %s1337 = scalar_lea.vmem %s1334, 71 [#allocation2]
      %v1338 = vld [vmem:[%s1337] ss:$2 sm:$0xff]
      %s1339 = scalar_lea.vmem %s1334, 135 [#allocation2]
      %v1340 = vld [vmem:[%s1339] ss:$2 sm:$0xff]
      %s1341 = scalar_lea.vmem %s1334, 199 [#allocation2]
      %v1342 = vld [vmem:[%s1341] ss:$2 sm:$0xff]
      %s1343 = scalar_lea.vmem %s1334, 263 [#allocation2]
      %v1344 = vld [vmem:[%s1343] ss:$2 sm:$0xff]
      %s1345 = scalar_lea.vmem %s1334, 327 [#allocation2]
      %v1346 = vld [vmem:[%s1345] ss:$2 sm:$0xff]
      %s1347 = scalar_lea.vmem %s1334, 391 [#allocation2]
      %v1348 = vld [vmem:[%s1347] ss:$2 sm:$0xff]
      %s1349 = scalar_lea.vmem %s1334, 455 [#allocation2]
      %v1350 = vld [vmem:[%s1349] ss:$2 sm:$0xff]
      %v1351 = vpack.c.bf16 %v1338, %v1336
      %v1352 = vpack.c.bf16 %v1342, %v1340
      %v1353 = vpack.c.bf16 %v1346, %v1344
      %v1354 = vpack.c.bf16 %v1350, %v1348
      %s1355 = scalar_lea.vmem %s3, 12
      %v1356 = vld [vmem:[%s1355] sm:$0x3]
      %v1358 = vsel %vm837, %v1351, 0
      %v1361 = vsel %vm837, %v1352, 0
      %v1364 = vsel %vm837, %v1353, 0
      %v1367 = vsel %vm837, %v1354, 0
      %v1370 = vsel %vm927, %v1356, 0
      %1372 = vmatpush.bf16.msra.mxu0 0
      %1373 = vmatpush.bf16.msra.mxu0 0
      %1374 = vmatpush.bf16.msra.mxu0 0
      %1375 = vmatpush.bf16.msra.mxu0 0
      %1376 = vmatpush.bf16.msra.mxu0 0
      %1377 = vmatpush.bf16.msra.mxu0 0
      %1378 = vmatpush.bf16.msra.mxu0 0
      %1379 = vmatpush.bf16.msra.mxu0 %v1370
      %1380 = vmatmul.bf16.gmra.mxu0 %v1358
      %v1381 = vpop.f32.mrf.mxu0
      %v1382 = vadd.f32 0.0, %v1381
      %v1383 = vpop.f32.mrf.mxu0
      %v1384 = vadd.f32 0.0, %v1383
      %1385 = vmatmul.bf16.gmra.mxu0 %v1361
      %v1386 = vpop.f32.mrf.mxu0
      %v1387 = vadd.f32 0.0, %v1386
      %v1388 = vpop.f32.mrf.mxu0
      %v1389 = vadd.f32 0.0, %v1388
      %1390 = vmatmul.bf16.gmra.mxu0 %v1364
      %v1391 = vpop.f32.mrf.mxu0
      %v1392 = vadd.f32 0.0, %v1391
      %v1393 = vpop.f32.mrf.mxu0
      %v1394 = vadd.f32 0.0, %v1393
      %1395 = vmatmul.bf16.gmra.mxu0 %v1367
      %v1396 = vpop.f32.mrf.mxu0
      %v1397 = vadd.f32 0.0, %v1396
      %v1398 = vpop.f32.mrf.mxu0
      %v1399 = vadd.f32 0.0, %v1398
      %1400 = vdwg.mxu0
      %v1401 = vadd.f32 %v1326, %v1382
      %v1402 = vadd.f32 %v1327, %v1384
      %v1403 = vadd.f32 %v1328, %v1387
      %v1404 = vadd.f32 %v1329, %v1389
      %v1405 = vadd.f32 %v1330, %v1392
      %v1406 = vadd.f32 %v1331, %v1394
      %v1407 = vadd.f32 %v1332, %v1397
      %v1408 = vadd.f32 %v1333, %v1399
      %s1409 = scalar_lea.vmem %s1334, 8 [#allocation2]
      %v1410 = vld [vmem:[%s1409] ss:$2 sm:$0xff]
      %s1411 = scalar_lea.vmem %s1334, 72 [#allocation2]
      %v1412 = vld [vmem:[%s1411] ss:$2 sm:$0xff]
      %s1413 = scalar_lea.vmem %s1334, 136 [#allocation2]
      %v1414 = vld [vmem:[%s1413] ss:$2 sm:$0xff]
      %s1415 = scalar_lea.vmem %s1334, 200 [#allocation2]
      %v1416 = vld [vmem:[%s1415] ss:$2 sm:$0xff]
      %s1417 = scalar_lea.vmem %s1334, 264 [#allocation2]
      %v1418 = vld [vmem:[%s1417] ss:$2 sm:$0xff]
      %s1419 = scalar_lea.vmem %s1334, 328 [#allocation2]
      %v1420 = vld [vmem:[%s1419] ss:$2 sm:$0xff]
      %s1421 = scalar_lea.vmem %s1334, 392 [#allocation2]
      %v1422 = vld [vmem:[%s1421] ss:$2 sm:$0xff]
      %s1423 = scalar_lea.vmem %s1334, 456 [#allocation2]
      %v1424 = vld [vmem:[%s1423] ss:$2 sm:$0xff]
      %v1425 = vpack.c.bf16 %v1412, %v1410
      %v1426 = vpack.c.bf16 %v1416, %v1414
      %v1427 = vpack.c.bf16 %v1420, %v1418
      %v1428 = vpack.c.bf16 %v1424, %v1422
      %s1429 = scalar_lea.vmem %s3, 14
      %v1430 = vld [vmem:[%s1429] sm:$0x3]
      %v1432 = vsel %vm837, %v1425, 0
      %v1435 = vsel %vm837, %v1426, 0
      %v1438 = vsel %vm837, %v1427, 0
      %v1441 = vsel %vm837, %v1428, 0
      %v1444 = vsel %vm927, %v1430, 0
      %1446 = vmatpush.bf16.msra.mxu0 0
      %1447 = vmatpush.bf16.msra.mxu0 0
      %1448 = vmatpush.bf16.msra.mxu0 0
      %1449 = vmatpush.bf16.msra.mxu0 0
      %1450 = vmatpush.bf16.msra.mxu0 0
      %1451 = vmatpush.bf16.msra.mxu0 0
      %1452 = vmatpush.bf16.msra.mxu0 0
      %1453 = vmatpush.bf16.msra.mxu0 %v1444
      %1454 = vmatmul.bf16.gmra.mxu0 %v1432
      %v1455 = vpop.f32.mrf.mxu0
      %v1456 = vadd.f32 0.0, %v1455
      %v1457 = vpop.f32.mrf.mxu0
      %v1458 = vadd.f32 0.0, %v1457
      %1459 = vmatmul.bf16.gmra.mxu0 %v1435
      %v1460 = vpop.f32.mrf.mxu0
      %v1461 = vadd.f32 0.0, %v1460
      %v1462 = vpop.f32.mrf.mxu0
      %v1463 = vadd.f32 0.0, %v1462
      %1464 = vmatmul.bf16.gmra.mxu0 %v1438
      %v1465 = vpop.f32.mrf.mxu0
      %v1466 = vadd.f32 0.0, %v1465
      %v1467 = vpop.f32.mrf.mxu0
      %v1468 = vadd.f32 0.0, %v1467
      %1469 = vmatmul.bf16.gmra.mxu0 %v1441
      %v1470 = vpop.f32.mrf.mxu0
      %v1471 = vadd.f32 0.0, %v1470
      %v1472 = vpop.f32.mrf.mxu0
      %v1473 = vadd.f32 0.0, %v1472
      %1474 = vdwg.mxu0
      %v1475 = vadd.f32 %v1401, %v1456
      %v1476 = vadd.f32 %v1402, %v1458
      %v1477 = vadd.f32 %v1403, %v1461
      %v1478 = vadd.f32 %v1404, %v1463
      %v1479 = vadd.f32 %v1405, %v1466
      %v1480 = vadd.f32 %v1406, %v1468
      %v1481 = vadd.f32 %v1407, %v1471
      %v1482 = vadd.f32 %v1408, %v1473
      %s1483 = scalar_lea.vmem %s1334, 9 [#allocation2]
      %v1484 = vld [vmem:[%s1483] ss:$2 sm:$0xff]
      %s1485 = scalar_lea.vmem %s1334, 73 [#allocation2]
      %v1486 = vld [vmem:[%s1485] ss:$2 sm:$0xff]
      %s1487 = scalar_lea.vmem %s1334, 137 [#allocation2]
      %v1488 = vld [vmem:[%s1487] ss:$2 sm:$0xff]
      %s1489 = scalar_lea.vmem %s1334, 201 [#allocation2]
      %v1490 = vld [vmem:[%s1489] ss:$2 sm:$0xff]
      %s1491 = scalar_lea.vmem %s1334, 265 [#allocation2]
      %v1492 = vld [vmem:[%s1491] ss:$2 sm:$0xff]
      %s1493 = scalar_lea.vmem %s1334, 329 [#allocation2]
      %v1494 = vld [vmem:[%s1493] ss:$2 sm:$0xff]
      %s1495 = scalar_lea.vmem %s1334, 393 [#allocation2]
      %v1496 = vld [vmem:[%s1495] ss:$2 sm:$0xff]
      %s1497 = scalar_lea.vmem %s1334, 457 [#allocation2]
      %v1498 = vld [vmem:[%s1497] ss:$2 sm:$0xff]
      %v1499 = vpack.c.bf16 %v1486, %v1484
      %v1500 = vpack.c.bf16 %v1490, %v1488
      %v1501 = vpack.c.bf16 %v1494, %v1492
      %v1502 = vpack.c.bf16 %v1498, %v1496
      %s1503 = scalar_lea.vmem %s3, 16
      %v1504 = vld [vmem:[%s1503] sm:$0x3]
      %v1506 = vsel %vm837, %v1499, 0
      %v1509 = vsel %vm837, %v1500, 0
      %v1512 = vsel %vm837, %v1501, 0
      %v1515 = vsel %vm837, %v1502, 0
      %v1518 = vsel %vm927, %v1504, 0
      %1520 = vmatpush.bf16.msra.mxu0 0
      %1521 = vmatpush.bf16.msra.mxu0 0
      %1522 = vmatpush.bf16.msra.mxu0 0
      %1523 = vmatpush.bf16.msra.mxu0 0
      %1524 = vmatpush.bf16.msra.mxu0 0
      %1525 = vmatpush.bf16.msra.mxu0 0
      %1526 = vmatpush.bf16.msra.mxu0 0
      %1527 = vmatpush.bf16.msra.mxu0 %v1518
      %1528 = vmatmul.bf16.gmra.mxu0 %v1506
      %v1529 = vpop.f32.mrf.mxu0
      %v1530 = vadd.f32 0.0, %v1529
      %v1531 = vpop.f32.mrf.mxu0
      %v1532 = vadd.f32 0.0, %v1531
      %1533 = vmatmul.bf16.gmra.mxu0 %v1509
      %v1534 = vpop.f32.mrf.mxu0
      %v1535 = vadd.f32 0.0, %v1534
      %v1536 = vpop.f32.mrf.mxu0
      %v1537 = vadd.f32 0.0, %v1536
      %1538 = vmatmul.bf16.gmra.mxu0 %v1512
      %v1539 = vpop.f32.mrf.mxu0
      %v1540 = vadd.f32 0.0, %v1539
      %v1541 = vpop.f32.mrf.mxu0
      %v1542 = vadd.f32 0.0, %v1541
      %1543 = vmatmul.bf16.gmra.mxu0 %v1515
      %v1544 = vpop.f32.mrf.mxu0
      %v1545 = vadd.f32 0.0, %v1544
      %v1546 = vpop.f32.mrf.mxu0
      %v1547 = vadd.f32 0.0, %v1546
      %1548 = vdwg.mxu0
      %v1549 = vadd.f32 %v1475, %v1530
      %v1550 = vadd.f32 %v1476, %v1532
      %v1551 = vadd.f32 %v1477, %v1535
      %v1552 = vadd.f32 %v1478, %v1537
      %v1553 = vadd.f32 %v1479, %v1540
      %v1554 = vadd.f32 %v1480, %v1542
      %v1555 = vadd.f32 %v1481, %v1545
      %v1556 = vadd.f32 %v1482, %v1547
      %vm1557 = vcmask 64512
      %v1558 = vsel %vm1557, %v1549, 0.0
      %v1559 = vsel %vm1557, %v1550, 0.0
      %v1560 = vadd.f32 %v1558, %v1559
      %v1561 = vsel %vm1557, %v1551, 0.0
      %v1562 = vadd.f32 %v1560, %v1561
      %v1563 = vsel %vm1557, %v1552, 0.0
      %v1564 = vadd.f32 %v1562, %v1563
      %v1565 = vsel %vm1557, %v1553, 0.0
      %v1566 = vadd.f32 %v1564, %v1565
      %v1567 = vsel %vm1557, %v1554, 0.0
      %v1568 = vadd.f32 %v1566, %v1567
      %v1569 = vsel %vm1557, %v1555, 0.0
      %v1570 = vadd.f32 %v1568, %v1569
      %v1571 = vsel %vm1557, %v1556, 0.0
      %v1572 = vadd.f32 %v1570, %v1571
      %v1573 = vrot.slane %v1572, 4
      %v1574 = vadd.f32 %v1572, %v1573
      %v1575 = vrot.slane %v1574, 2
      %v1576 = vadd.f32 %v1574, %v1575
      %v1577 = vrot.slane %v1576, 1
      %v1578 = vadd.f32 %v1576, %v1577
      %vm1579 = vcmask 57344
      %1580 = vst.msk [vmem:[%s378] sm:$0x1] %vm1579, %v1578
      %v1581 = vmul.f32 %v1549, %v1549
      %v1582 = vmul.f32 %v1550, %v1550
      %v1583 = vmul.f32 %v1551, %v1551
      %v1584 = vmul.f32 %v1552, %v1552
      %v1585 = vmul.f32 %v1553, %v1553
      %v1586 = vmul.f32 %v1554, %v1554
      %v1587 = vmul.f32 %v1555, %v1555
      %v1588 = vmul.f32 %v1556, %v1556
      %v1589 = vsel %vm1557, %v1581, 0.0
      %v1590 = vsel %vm1557, %v1582, 0.0
      %v1591 = vadd.f32 %v1589, %v1590
      %v1592 = vsel %vm1557, %v1583, 0.0
      %v1593 = vadd.f32 %v1591, %v1592
      %v1594 = vsel %vm1557, %v1584, 0.0
      %v1595 = vadd.f32 %v1593, %v1594
      %v1596 = vsel %vm1557, %v1585, 0.0
      %v1597 = vadd.f32 %v1595, %v1596
      %v1598 = vsel %vm1557, %v1586, 0.0
      %v1599 = vadd.f32 %v1597, %v1598
      %v1600 = vsel %vm1557, %v1587, 0.0
      %v1601 = vadd.f32 %v1599, %v1600
      %v1602 = vsel %vm1557, %v1588, 0.0
      %v1603 = vadd.f32 %v1601, %v1602
      %v1604 = vrot.slane %v1603, 4
      %v1605 = vadd.f32 %v1603, %v1604
      %v1606 = vrot.slane %v1605, 2
      %v1607 = vadd.f32 %v1605, %v1606
      %v1608 = vrot.slane %v1607, 1
      %v1609 = vadd.f32 %v1607, %v1608
      %1610 = vst.msk [vmem:[%s384] sm:$0x1] %vm1579, %v1609
      %v1611 = vpack.c.bf16 %v1549, %v1549
      %v1612 = vpack.c.bf16 %v1550, %v1550
      %v1613 = vpack.c.bf16 %v1551, %v1551
      %v1614 = vpack.c.bf16 %v1552, %v1552
      %v1615 = vpack.c.bf16 %v1553, %v1553
      %v1616 = vpack.c.bf16 %v1554, %v1554
      %v1617 = vpack.c.bf16 %v1555, %v1555
      %v1618 = vpack.c.bf16 %v1556, %v1556
      %vm1619 = vcmask 60416
      %1620 = vst.msk [vmem:[%s361] sm:$0xf] %vm1619, %v1611
      %1621 = vst.msk [vmem:[%s361 + $0x4] sm:$0xf] %vm1619, %v1612
      %1622 = vst.msk [vmem:[%s361 + $0x8] sm:$0xf] %vm1619, %v1613
      %1623 = vst.msk [vmem:[%s361 + $0xc] sm:$0xf] %vm1619, %v1614
      %1624 = vst.msk [vmem:[%s361 + $0x10] sm:$0xf] %vm1619, %v1615
      %1625 = vst.msk [vmem:[%s361 + $0x14] sm:$0xf] %vm1619, %v1616
      %1626 = vst.msk [vmem:[%s361 + $0x18] sm:$0xf] %vm1619, %v1617
      %1627 = vst.msk [vmem:[%s361 + $0x1c] sm:$0xf] %vm1619, %v1618
      %v1628 = vpack.c.bf16 %v1241, %v1241
      %v1629 = vpack.c.bf16 %v1243, %v1243
      %v1630 = vpack.c.bf16 %v1246, %v1246
      %v1631 = vpack.c.bf16 %v1248, %v1248
      %v1632 = vpack.c.bf16 %v1251, %v1251
      %v1633 = vpack.c.bf16 %v1253, %v1253
      %v1634 = vpack.c.bf16 %v1256, %v1256
      %v1635 = vpack.c.bf16 %v1258, %v1258
      %1636 = vst.msk [vmem:[%s371] sm:$0xf] %vm1619, %v1628
      %1637 = vst.msk [vmem:[%s371 + $0x4] sm:$0xf] %vm1619, %v1629
      %1638 = vst.msk [vmem:[%s371 + $0x8] sm:$0xf] %vm1619, %v1630
      %1639 = vst.msk [vmem:[%s371 + $0xc] sm:$0xf] %vm1619, %v1631
      %1640 = vst.msk [vmem:[%s371 + $0x10] sm:$0xf] %vm1619, %v1632
      %1641 = vst.msk [vmem:[%s371 + $0x14] sm:$0xf] %vm1619, %v1633
      %1642 = vst.msk [vmem:[%s371 + $0x18] sm:$0xf] %vm1619, %v1634
      %1643 = vst.msk [vmem:[%s371 + $0x1c] sm:$0xf] %vm1619, %v1635
      %s1644 = smul.u32 8, %s25
      %p1645 = scmp.lt.s32.totalorder %s24, 1
      %s1646 = scalar_select %p1645, %s24, 1
      %p1647 = scmp.lt.s32.totalorder %s1644, 7
      %s1648 = scalar_select %p1647, %s1644, 7
      %s1649 = smul.addr %s1646, 8
      %s1650 = sadd.s32 %s1648, %s1649
      %s1651 = smul.addr %s1650, 4
      %s1652 = scalar_lea.vmem %s5, %s1651
      %s1653 = smul.u32 8, %s25
      %p1654 = scmp.lt.s32.totalorder %s24, 1
      %s1655 = scalar_select %p1654, %s24, 1
      %p1656 = scmp.lt.s32.totalorder %s1653, 7
      %s1657 = scalar_select %p1656, %s1653, 7
      %s1658 = smul.addr %s1655, 8
      %s1659 = sadd.s32 %s1657, %s1658
      %s1660 = smul.addr %s1659, 4
      %s1661 = scalar_lea.vmem %s6, %s1660
      %p1662 = scmp.lt.s32.totalorder %s24, 1
      %s1663 = scalar_select %p1662, %s24, 1
      %p1664 = scmp.lt.s32.totalorder %s25, 0
      %s1665 = scalar_select %p1664, %s25, 0
      %s1666 = sadd.s32 %s1665, %s1663
      %s1667 = scalar_lea.vmem %s7, %s1666
      %p1668 = scmp.lt.s32.totalorder %s24, 1
      %s1669 = scalar_select %p1668, %s24, 1
      %p1670 = scmp.lt.s32.totalorder %s25, 0
      %s1671 = scalar_select %p1670, %s25, 0
      %s1672 = sadd.s32 %s1671, %s1669
      %s1673 = scalar_lea.vmem %s8, %s1672
      // Predicated region
      $region41: #{residual_block_forward.2} parent=39 // pred_check
        %p1674 = pneg %p162
      $region42: #{residual_block_forward.2} parent=39 // pred_check_branch
        %1676 = sbr.rel (%p1674) target = $region44
      $region43: #{residual_block_forward.2} parent=39 // pred_region
        %s1677 = smul.u32 8, %s25
      $region44: #{residual_block_forward.2} parent=39 // pred_fallthru
        _
      // Predicated region
      $region45: #{residual_block_forward.2} parent=39 // pred_check
        %p1678 = pneg %p190
      $region46: #{residual_block_forward.2} parent=39 // pred_check_branch
        %1680 = sbr.rel (%p1678) target = $region48
      $region47: #{residual_block_forward.2} parent=39 // pred_region
        %s1681 = smul.u32 8, %s25
      $region48: #{residual_block_forward.2} parent=39 // pred_fallthru
        _
      // Predicated region
      $region49: #{residual_block_forward.2} parent=39 // pred_check
        %p1682 = pneg %p218
      $region50: #{residual_block_forward.2} parent=39 // pred_check_branch
        %1684 = sbr.rel (%p1682) target = $region52
      $region51: #{residual_block_forward.2} parent=39 // pred_region
        _
      $region52: #{residual_block_forward.2} parent=39 // pred_fallthru
        _
      // Predicated region
      $region53: #{residual_block_forward.2} parent=39 // pred_check
        %p1685 = pneg %p246
      $region54: #{residual_block_forward.2} parent=39 // pred_check_branch
        %1687 = sbr.rel (%p1685) target = $region56
      $region55: #{residual_block_forward.2} parent=39 // pred_region
        _
      $region56: #{residual_block_forward.2} parent=39 // pred_fallthru
        _
    $region40: #{residual_block_forward.2} parent=5 // pred_fallthru
      _
    %p1688 = scmp.le.s32.totalorder 2, %s15
    // Predicated region
    $region57: #{residual_block_forward.2} parent=5 // pred_check
      %p1689 = pneg %p1688
    $region58: #{residual_block_forward.2} parent=5 // pred_check_branch
      %1691 = sbr.rel (%p1689) target = $region60
    $region59: #{residual_block_forward.2} parent=5 // pred_region
      %s1692 = ssub.s32 %s15, 2
      // Predicated region
      $region61: #{residual_block_forward.2} parent=59 // pred_check
        %p1693 = pneg %p168
      $region62: #{residual_block_forward.2} parent=59 // pred_check_branch
        %1695 = sbr.rel (%p1693) target = $region64
      $region63: #{residual_block_forward.2} parent=59 // pred_region
        %s1696 = smul.u32 8, %s27
        %p1697 = scmp.lt.s32.totalorder %s26, 1
        %s1698 = scalar_select %p1697, %s26, 1
        %p1699 = scmp.lt.s32.totalorder %s1696, 7
        %s1700 = scalar_select %p1699, %s1696, 7
        %s1701 = smul.addr %s1698, 8
        %s1702 = sadd.s32 %s1700, %s1701
        %s1703 = smul.addr %s1702, 4
        %s1704 = scalar_lea.vmem %s5, %s1703
      $region64: #{residual_block_forward.2} parent=59 // pred_fallthru
        _
      // Predicated region
      $region65: #{residual_block_forward.2} parent=59 // pred_check
        %p1705 = pneg %p196
      $region66: #{residual_block_forward.2} parent=59 // pred_check_branch
        %1707 = sbr.rel (%p1705) target = $region68
      $region67: #{residual_block_forward.2} parent=59 // pred_region
        %s1708 = smul.u32 8, %s27
        %p1709 = scmp.lt.s32.totalorder %s26, 1
        %s1710 = scalar_select %p1709, %s26, 1
        %p1711 = scmp.lt.s32.totalorder %s1708, 7
        %s1712 = scalar_select %p1711, %s1708, 7
        %s1713 = smul.addr %s1710, 8
        %s1714 = sadd.s32 %s1712, %s1713
        %s1715 = smul.addr %s1714, 4
        %s1716 = scalar_lea.vmem %s6, %s1715
      $region68: #{residual_block_forward.2} parent=59 // pred_fallthru
        _
      // Predicated region
      $region69: #{residual_block_forward.2} parent=59 // pred_check
        %p1717 = pneg %p224
      $region70: #{residual_block_forward.2} parent=59 // pred_check_branch
        %1719 = sbr.rel (%p1717) target = $region72
      $region71: #{residual_block_forward.2} parent=59 // pred_region
        %p1720 = scmp.lt.s32.totalorder %s26, 1
        %s1721 = scalar_select %p1720, %s26, 1
        %p1722 = scmp.lt.s32.totalorder %s27, 0
        %s1723 = scalar_select %p1722, %s27, 0
        %s1724 = sadd.s32 %s1723, %s1721
        %s1725 = scalar_lea.vmem %s7, %s1724
      $region72: #{residual_block_forward.2} parent=59 // pred_fallthru
        _
      // Predicated region
      $region73: #{residual_block_forward.2} parent=59 // pred_check
        %p1726 = pneg %p252
      $region74: #{residual_block_forward.2} parent=59 // pred_check_branch
        %1728 = sbr.rel (%p1726) target = $region76
      $region75: #{residual_block_forward.2} parent=59 // pred_region
        %p1729 = scmp.lt.s32.totalorder %s26, 1
        %s1730 = scalar_select %p1729, %s26, 1
        %p1731 = scmp.lt.s32.totalorder %s27, 0
        %s1732 = scalar_select %p1731, %s27, 0
        %s1733 = sadd.s32 %s1732, %s1730
        %s1734 = scalar_lea.vmem %s8, %s1733
      $region76: #{residual_block_forward.2} parent=59 // pred_fallthru
        _
    $region60: #{residual_block_forward.2} parent=5 // pred_fallthru
      _
  $region6: #{residual_block_forward.2} parent=0 // loop_footer
    %s19 = sadd.s32 1, %s15
  $region7: #{residual_block_forward.2} parent=0 // loop_footer_branch
    %14 = sbr.rel target = $region3
  $region8: #{residual_block_forward.2} parent=0 // loop_exit
    _

</llo_original>
